<compile_context>
chip_gen: v7x
topology: tpu7x:2x2x1
jax: 0.10.0
libtpu: 0.0.40
codegen_flags: <defaults>
</compile_context>

<pallas_src>
import functools
import math

import numpy as np
import jax
import jax.numpy as jnp
from jax.experimental import pallas as pl
from jax.experimental.pallas import tpu as pltpu


# ----------------------------------------------------------------------------
# Generation-aware VMEM budgeting.
# ----------------------------------------------------------------------------
def _vmem_budget():
    try:
        phys = int(pltpu.get_tpu_info().vmem_capacity_bytes)
    except Exception:
        phys = 64 << 20
    limit = min(phys // 2, 64 << 20)   # scoped-VMEM limit we request
    budget = limit // 4                # per-step block-bytes target (double-buffer headroom)
    return limit, budget


_VMEM_LIMIT, _BLOCK_BUDGET = _vmem_budget()


def _cparams(grid_rank):
    return pltpu.CompilerParams(
        dimension_semantics=("parallel",) * grid_rank,
        vmem_limit_bytes=_VMEM_LIMIT)


# ----------------------------------------------------------------------------
# Tile pickers (lane-dense, BlockSpec-legal: tiles divide the dim and are
# (8,128)-aligned, or cover the full extent).
# ----------------------------------------------------------------------------
def _pick_spatial_tile(s, rows, budget):
    if s % 128 != 0:
        return s
    cap = max(budget // (max(rows, 1) * 4), 128)
    ts = 128
    while ts * 2 <= cap and s % (ts * 2) == 0:
        ts *= 2
    return ts


def _pick_row_tile(h, bytes_per_row, budget):
    if h % 8 != 0 or h * bytes_per_row <= budget:
        return h
    th = 8
    while th * 2 <= h and h % (th * 2) == 0 and (th * 2) * bytes_per_row <= budget:
        th *= 2
    return th


# ----------------------------------------------------------------------------
# Kernel 1a: 1x1 conv, single output channel (full-block VPU mul + XLU reduce).
# ----------------------------------------------------------------------------
def _conv1x1_single_kernel(x_ref, w_ref, b_ref, o_ref):
    # x: (1, Cin, TS); w: (Cin, 1); b: (1, 1); o: (1, 1, TS)
    x = x_ref[0].astype(jnp.float32)
    o_ref[0] = jnp.sum(x * w_ref[...], axis=0, keepdims=True) + b_ref[...]


def conv1x1_single(x_ncs, w, b):
    """(N, Cin, S) x (Cin,) -> (N, 1, S), spatial dim on lanes."""
    n, cin, s = x_ncs.shape
    ts = _pick_spatial_tile(s, cin + 1, _BLOCK_BUDGET)
    return pl.pallas_call(
        _conv1x1_single_kernel,
        out_shape=jax.ShapeDtypeStruct((n, 1, s), jnp.float32),
        grid=(n, s // ts),
        in_specs=[
            pl.BlockSpec((1, cin, ts), lambda i, j: (i, 0, j)),
            pl.BlockSpec((cin, 1), lambda i, j: (0, 0)),
            pl.BlockSpec((1, 1), lambda i, j: (0, 0)),
        ],
        out_specs=pl.BlockSpec((1, 1, ts), lambda i, j: (i, 0, j)),
        compiler_params=_cparams(2),
    )(x_ncs, w.reshape(cin, 1).astype(jnp.float32),
      b.reshape(1, 1).astype(jnp.float32))


# ----------------------------------------------------------------------------
# Kernel 1b: 1x1 conv to nclasses channels (one MXU dot per spatial tile).
# ----------------------------------------------------------------------------
def _conv1x1_multi_kernel(x_ref, w_ref, b_ref, o_ref):
    # x: (1, Cin, TS); w: (Cout, Cin); b: (Cout, 1); o: (1, Cout, TS)
    x = x_ref[0].astype(jnp.float32)
    o_ref[0] = jnp.dot(w_ref[...], x, preferred_element_type=jnp.float32) + b_ref[...]


def conv1x1_multi(x_ncs, w, b):
    """(N, Cin, S) x (Cout, Cin) -> (N, Cout, S)."""
    n, cin, s = x_ncs.shape
    cout = w.shape[0]
    ts = _pick_spatial_tile(s, cin + cout, _BLOCK_BUDGET)
    return pl.pallas_call(
        _conv1x1_multi_kernel,
        out_shape=jax.ShapeDtypeStruct((n, cout, s), jnp.float32),
        grid=(n, s // ts),
        in_specs=[
            pl.BlockSpec((1, cin, ts), lambda i, j: (i, 0, j)),
            pl.BlockSpec((cout, cin), lambda i, j: (0, 0)),
            pl.BlockSpec((cout, 1), lambda i, j: (0, 0)),
        ],
        out_specs=pl.BlockSpec((1, cout, ts), lambda i, j: (i, 0, j)),
        compiler_params=_cparams(2),
    )(x_ncs, w.astype(jnp.float32), b.reshape(cout, 1).astype(jnp.float32))


# ----------------------------------------------------------------------------
# Kernel 2: depthwise ConvTranspose2d (k = 2*s, pad 0, no bias) + symmetric
# center crop to (Hin*s, Win*s), in 2x2-tap phase form.
#
# For output (oy, ox) with crop offset cc = s//2:
#   iy0 = (oy+cc)//s, ty0 = (oy+cc)%s   (row taps ty0 and ty0+s, rows iy0, iy0-1)
#   ix0 = (ox+cc)//s, tx0 = (ox+cc)%s   (col taps tx0 and tx0+s, cols ix0, ix0-1)
# The lane expansion xr[r,u] = x_pad[r, (u+cc)//s] is done once per tile with a
# 0/1 matrix on the MXU; the per-lane tap weights are precomputed host-side.
# ----------------------------------------------------------------------------
def _build_expansion(win, wout, s, cc):
    u = jnp.arange(wout + s)
    j = jnp.arange(win + 2)
    return ((u[None, :] + cc) // s == j[:, None]).astype(jnp.float32)


def _build_lane_weights(w_ckk, wout, s, cc):
    # WL[c, 2*ty + b, ox] = w[c, ty, (ox+cc) % s + s*b]
    c, k, _ = w_ckk.shape
    phase = (jnp.arange(wout) + cc) % s
    w4 = w_ckk.astype(jnp.float32).reshape(c, k, 2, s)
    return w4[:, :, :, phase].reshape(c, 2 * k, wout)


def _pick_deconv_rowtile(hin, s, wout, budget):
    row_bytes = s * wout * 4
    if hin % 8 != 0 or hin * row_bytes <= budget:
        return hin
    th = 8
    while th * 2 <= hin and hin % (th * 2) == 0 and (th * 2) * row_bytes <= budget:
        th *= 2
    return th


def _deconv_kernel(xp_ref, e_ref, wl_ref, o_ref, *, s, th, cc, wout):
    # xp: (1, 1, hin+2, win+2) compact input with 1-pixel zero halo
    # e : (win+2, wout+s) 0/1 lane-expansion matrix
    # wl: (1, 2k, wout) per-phase tap weights for this channel
    # o : (1, 1, th, s*wout); (hin, s) merges to Hout for free after the call
    t = pl.program_id(2)
    r0 = t * th
    if th % 8 == 0:
        r0 = pl.multiple_of(r0, 8)
    xp = xp_ref[0, 0, pl.ds(r0, th + 2), :].astype(jnp.float32)
    xr = jnp.dot(xp, e_ref[...], preferred_element_type=jnp.float32)   # (th+2, wout+s)
    xr_b0 = xr[:, s:s + wout]      # input column ix0      (col-tap set b=0)
    xr_b1 = xr[:, 0:wout]          # input column ix0 - 1  (col-tap set b=1)
    wl = wl_ref[0].astype(jnp.float32)                                  # (2k, wout)
    for rh in range(s):            # output row phase
        ty = (rh + cc) % s
        d = (rh + cc) // s         # 0 or 1: iy0 = ih + d
        acc = (xr_b0[d + 1:d + 1 + th, :] * wl[2 * ty:2 * ty + 1, :]
               + xr_b1[d + 1:d + 1 + th, :] * wl[2 * ty + 1:2 * ty + 2, :]
               + xr_b0[d:d + th, :] * wl[2 * (ty + s):2 * (ty + s) + 1, :]
               + xr_b1[d:d + th, :] * wl[2 * (ty + s) + 1:2 * (ty + s) + 2, :])
        o_ref[0, 0, :, rh * wout:(rh + 1) * wout] = acc


def deconv_bilinear_crop(x_nchw, w_ckk, *, k, s):
    """Depthwise ConvTranspose2d(kernel=k, stride=s, pad=0, groups=C, no bias)
    followed by a symmetric center crop to (Hin*s, Win*s).  Requires k == 2*s."""
    assert k == 2 * s
    n, c, hin, win = x_nchw.shape
    hout, wout = hin * s, win * s
    cc = (k - s) // 2
    xp = jnp.pad(x_nchw, ((0, 0), (0, 0), (1, 1), (1, 1)))     # tiny (+1 halo only)
    e = _build_expansion(win, wout, s, cc)
    wl = _build_lane_weights(w_ckk, wout, s, cc)
    th = _pick_deconv_rowtile(hin, s, wout, _BLOCK_BUDGET // 2)
    kern = functools.partial(_deconv_kernel, s=s, th=th, cc=cc, wout=wout)
    out = pl.pallas_call(
        kern,
        out_shape=jax.ShapeDtypeStruct((n, c, hin, s * wout), jnp.float32),
        grid=(n, c, hin // th),
        in_specs=[
            pl.BlockSpec((1, 1, hin + 2, win + 2), lambda i, j, t: (i, j, 0, 0)),
            pl.BlockSpec((win + 2, wout + s), lambda i, j, t: (0, 0)),
            pl.BlockSpec((1, 2 * k, wout), lambda i, j, t: (j, 0, 0)),
        ],
        out_specs=pl.BlockSpec((1, 1, th, s * wout), lambda i, j, t: (i, j, t, 0)),
        compiler_params=_cparams(3),
    )(xp, e, wl)
    return out.reshape(n, c, hout, wout)


# ----------------------------------------------------------------------------
# Kernel 3: sliced-concat + grouped 1x1 fusion, with side_1 computed in-kernel.
#   acts[n,c] = fw[c,0]*side5[n,c] + fw[c,1]*side1[n] + fw[c,2]*side2[n]
#               + fw[c,3]*side3[n] + fb[c],  side1[n] = sum_ci res1[n,ci]*w1[ci] + b1
# ----------------------------------------------------------------------------
def _fusion_kernel(s5_ref, s2_ref, s3_ref, r1_ref, w1_ref, b1_ref, fw_ref, o_ref):
    # s5: (1,C,TH,W); s2/s3: (1,TH,W); r1: (1,C1,TH,W)
    # w1: (C1,1,1); b1: (1,1,1); fw: (5,C,1,1) rows = [w_s5, w_s1, w_s2, w_s3, bias]
    s1 = jnp.sum(r1_ref[0].astype(jnp.float32) * w1_ref[...], axis=0) + b1_ref[0]
    s5 = s5_ref[0].astype(jnp.float32)
    s2 = s2_ref[...].astype(jnp.float32)
    s3 = s3_ref[...].astype(jnp.float32)
    fw = fw_ref[...]
    o_ref[0] = (s5 * fw[0]
                + s1[None, :, :] * fw[1]
                + s2 * fw[2]
                + s3 * fw[3]
                + fw[4])


def fuse(side5, side2, side3, res1, w1, b1, fw, fb):
    n, c, h, w = side5.shape
    c1 = res1.shape[1]
    bytes_per_row = 4 * w * (2 * c + c1 + 3)
    th = _pick_row_tile(h, bytes_per_row, _BLOCK_BUDGET)
    fwall = jnp.concatenate([fw.T.astype(jnp.float32),
                             fb.astype(jnp.float32)[None, :]], axis=0).reshape(5, c, 1, 1)
    w1c = w1.reshape(c1, 1, 1).astype(jnp.float32)
    b1c = b1.reshape(1, 1, 1).astype(jnp.float32)
    return pl.pallas_call(
        _fusion_kernel,
        out_shape=jax.ShapeDtypeStruct((n, c, h, w), jnp.float32),
        grid=(n, h // th),
        in_specs=[
            pl.BlockSpec((1, c, th, w), lambda i, j: (i, 0, j, 0)),
            pl.BlockSpec((1, th, w), lambda i, j: (i, j, 0)),
            pl.BlockSpec((1, th, w), lambda i, j: (i, j, 0)),
            pl.BlockSpec((1, c1, th, w), lambda i, j: (i, 0, j, 0)),
            pl.BlockSpec((c1, 1, 1), lambda i, j: (0, 0, 0)),
            pl.BlockSpec((1, 1, 1), lambda i, j: (0, 0, 0)),
            pl.BlockSpec((5, c, 1, 1), lambda i, j: (0, 0, 0, 0)),
        ],
        out_specs=pl.BlockSpec((1, c, th, w), lambda i, j: (i, 0, j, 0)),
        compiler_params=_cparams(2),
    )(side5, side2, side3, res1, w1c, b1c, fwall)


# ----------------------------------------------------------------------------
# Parameters (mirrors the module's __init__ shapes / init values).
# ----------------------------------------------------------------------------
def bilinear_upsample_filter(size):
    factor = (size + 1) // 2
    center = factor - 1 if size % 2 == 1 else factor - 0.5
    og = np.ogrid[:size, :size]
    filt = (1 - abs(og[0] - center) / factor) * (1 - abs(og[1] - center) / factor)
    return jnp.asarray(filt, jnp.float32)


def init_params(key, nclasses, feat_chans):
    k0, k1, k2, k3, k4 = jax.random.split(key, 5)
    return {
        # side1/2/3: Conv2d(Cin, 1, 1): weight ~ N(0, 0.01), bias = 0
        "w1": 0.01 * jax.random.normal(k0, (feat_chans[0],), jnp.float32),
        "b1": jnp.zeros((1,), jnp.float32),
        "w2": 0.01 * jax.random.normal(k1, (feat_chans[0],), jnp.float32),
        "b2": jnp.zeros((1,), jnp.float32),
        "w3": 0.01 * jax.random.normal(k2, (feat_chans[1],), jnp.float32),
        "b3": jnp.zeros((1,), jnp.float32),
        # side5: Conv2d(feat_chans[3], nclasses, 1): He init (n = nclasses)
        "w5": math.sqrt(2.0 / nclasses)
              * jax.random.normal(k3, (nclasses, feat_chans[3]), jnp.float32),
        "b5": 0.01 * jax.random.normal(k4, (nclasses,), jnp.float32),
        # ConvTranspose2d weights: bilinear upsampling filters, one per channel
        "up2": bilinear_upsample_filter(4)[None, :, :],
        "up3": bilinear_upsample_filter(8)[None, :, :],
        "up5": jnp.tile(bilinear_upsample_filter(16)[None, :, :], (nclasses, 1, 1)),
        # ce_fusion: grouped 1x1 conv, weight (C, 4) filled 0.25, bias 0
        "fw": jnp.full((nclasses, 4), 0.25, jnp.float32),
        "fb": jnp.zeros((nclasses,), jnp.float32),
    }


# ----------------------------------------------------------------------------
# Forward (mirrors CASENet.forward; NCHW in / out).
# ----------------------------------------------------------------------------
def casenet_forward(params, inp, res1, res2, res3, res4, res5):
    del inp, res4   # `inp` only fixes the reference spatial size; res4 is unused.
    # TODO(synk): the `res1 is None` bilinear-interpolate fallback in the PyTorch
    # forward is host-side Python control flow and is not taken here.
    n, _, h, w = res1.shape
    nclasses = params["w5"].shape[0]

    # side 2: 1x1 conv + 2x depthwise bilinear upsample + crop
    n2, c2, h2, w2 = res2.shape
    s2p = conv1x1_single(res2.reshape(n2, c2, h2 * w2), params["w2"], params["b2"])
    side_2 = deconv_bilinear_crop(s2p.reshape(n2, 1, h2, w2), params["up2"], k=4, s=2)

    # side 3: 1x1 conv + 4x depthwise bilinear upsample + crop
    n3, c3, h3, w3 = res3.shape
    s3p = conv1x1_single(res3.reshape(n3, c3, h3 * w3), params["w3"], params["b3"])
    side_3 = deconv_bilinear_crop(s3p.reshape(n3, 1, h3, w3), params["up3"], k=8, s=4)

    # side 5: 1x1 conv to nclasses (MXU) + 8x depthwise bilinear upsample + crop
    n5, c5, h5, w5 = res5.shape
    s5p = conv1x1_multi(res5.reshape(n5, c5, h5 * w5), params["w5"], params["b5"])
    side_5 = deconv_bilinear_crop(s5p.reshape(n5, nclasses, h5, w5),
                                  params["up5"], k=16, s=8)

    # sliced concat + grouped 1x1 fusion (side_1 computed inside the kernel)
    acts = fuse(side_5, side_2.reshape(n, h, w), side_3.reshape(n, h, w),
                res1, params["w1"], params["b1"], params["fw"], params["fb"])
    return side_5, acts


# ----------------------------------------------------------------------------
# Pure-JAX reference (same crop convention) for numerical validation.
# ----------------------------------------------------------------------------
def _ref_deconv(x, w_ckk, k, s):
    n, c, hin, win = x.shape
    cc = (k - s) // 2
    wf = w_ckk[:, ::-1, ::-1][:, None, :, :].astype(jnp.float32)
    full = jax.lax.conv_general_dilated(
        x.astype(jnp.float32), wf, window_strides=(1, 1),
        padding=[(k - 1, k - 1), (k - 1, k - 1)], lhs_dilation=(s, s),
        dimension_numbers=("NCHW", "OIHW", "NCHW"), feature_group_count=c,
        precision=jax.lax.Precision.HIGHEST)
    return full[:, :, cc:cc + hin * s, cc:cc + win * s]


def casenet_reference(params, res1, res2, res3, res5):
    hp = jax.lax.Precision.HIGHEST
    s1 = jnp.einsum("nchw,c->nhw", res1, params["w1"], precision=hp) + params["b1"][0]
    s2p = jnp.einsum("nchw,c->nhw", res2, params["w2"], precision=hp) + params["b2"][0]
    s3p = jnp.einsum("nchw,c->nhw", res3, params["w3"], precision=hp) + params["b3"][0]
    s5p = (jnp.einsum("nchw,oc->nohw", res5, params["w5"], precision=hp)
           + params["b5"][None, :, None, None])
    side2 = _ref_deconv(s2p[:, None], params["up2"], 4, 2)[:, 0]
    side3 = _ref_deconv(s3p[:, None], params["up3"], 8, 4)[:, 0]
    side5 = _ref_deconv(s5p, params["up5"], 16, 8)
    fw, fb = params["fw"], params["fb"]
    acts = (fw[None, :, 0, None, None] * side5
            + fw[None, :, 1, None, None] * s1[:, None]
            + fw[None, :, 2, None, None] * side2[:, None]
            + fw[None, :, 3, None, None] * side3[:, None]
            + fb[None, :, None, None])
    return side5, acts


if __name__ == "__main__":
    nclasses = 20                     # classical SBD CASENet branch
    feat_chans = (4, 8, 8, 16)
    N, H, W = 2, 16, 16

    key = jax.random.PRNGKey(0)
    kp, k_in, k1, k2, k3, k4, k5 = jax.random.split(key, 7)
    params = init_params(kp, nclasses, feat_chans)

    inp  = jax.random.normal(k_in, (N, 3, H, W), jnp.float32)
    res1 = jax.random.normal(k1, (N, feat_chans[0], H, W), jnp.float32)
    res2 = jax.random.normal(k2, (N, feat_chans[0], H // 2, W // 2), jnp.float32)
    res3 = jax.random.normal(k3, (N, feat_chans[1], H // 4, W // 4), jnp.float32)
    res4 = jax.random.normal(k4, (N, feat_chans[2], H // 8, W // 8), jnp.float32)
    res5 = jax.random.normal(k5, (N, feat_chans[3], H // 8, W // 8), jnp.float32)

    fwd = jax.jit(casenet_forward)
    side_5, acts = fwd(params, inp, res1, res2, res3, res4, res5)
    jax.block_until_ready((side_5, acts))

    assert side_5.shape == (N, nclasses, H, W)
    assert acts.shape == (N, nclasses, H, W)

    ref_side_5, ref_acts = jax.jit(casenet_reference)(params, res1, res2, res3, res5)
    jax.block_until_ready((ref_side_5, ref_acts))
    np.testing.assert_allclose(np.asarray(side_5), np.asarray(ref_side_5),
                               rtol=1e-2, atol=1e-4)
    np.testing.assert_allclose(np.asarray(acts), np.asarray(ref_acts),
                               rtol=1e-2, atol=1e-4)
    print("KERNEL_OK")
</pallas_src>

<mosaic_0001>
module attributes {stable_mosaic.version = 11 : i64} {
  func.func @_conv1x1_single_kernel(%arg0: i32, %arg1: i32, %arg2: memref<1x4x64xf32, #tpu.memory_space<vmem>>, %arg3: memref<4x1xf32, #tpu.memory_space<vmem>>, %arg4: memref<1x1xf32, #tpu.memory_space<vmem>>, %arg5: memref<1x1x64xf32, #tpu.memory_space<vmem>>) attributes {dimension_semantics = [#tpu.dimension_semantics<parallel>, #tpu.dimension_semantics<parallel>], iteration_bounds = array<i64: 2, 1>, scalar_prefetch = 0 : i64, scratch_operands = 0 : i64, tpu.core_type = #tpu.core_type<tc>, window_params = [{transform_indices = @transform_0, window_bounds = array<i64: 1, 4, 64>}, {pipeline_mode = #tpu.pipeline_mode<synchronous>, transform_indices = @transform_1, window_bounds = array<i64: 4, 1>}, {pipeline_mode = #tpu.pipeline_mode<synchronous>, transform_indices = @transform_2, window_bounds = array<i64: 1, 1>}, {transform_indices = @transform_3, window_bounds = array<i64: 1, 1, 64>}]} {
    %c0 = arith.constant 0 : index
    %c0_0 = arith.constant 0 : index
    %c0_1 = arith.constant 0 : index
    %0 = vector.load %arg2[%c0, %c0_0, %c0_1] : memref<1x4x64xf32, #tpu.memory_space<vmem>>, vector<1x4x64xf32>
    %1 = vector.shape_cast %0 : vector<1x4x64xf32> to vector<4x64xf32>
    %c0_2 = arith.constant 0 : index
    %c0_3 = arith.constant 0 : index
    %2 = vector.load %arg3[%c0_2, %c0_3] : memref<4x1xf32, #tpu.memory_space<vmem>>, vector<4x1xf32>
    %3 = vector.broadcast %2 : vector<4x1xf32> to vector<4x64xf32>
    %4 = arith.mulf %1, %3 : vector<4x64xf32>
    %cst = arith.constant dense<0.000000e+00> : vector<64xf32>
    %5 = vector.multi_reduction <add>, %4, %cst [0] : vector<4x64xf32> to vector<64xf32>
    %6 = vector.shape_cast %5 : vector<64xf32> to vector<1x64xf32>
    %c0_4 = arith.constant 0 : index
    %c0_5 = arith.constant 0 : index
    %7 = vector.load %arg4[%c0_4, %c0_5] : memref<1x1xf32, #tpu.memory_space<vmem>>, vector<1x1xf32>
    %8 = vector.broadcast %7 : vector<1x1xf32> to vector<1x64xf32>
    %9 = arith.addf %6, %8 : vector<1x64xf32>
    %c0_6 = arith.constant 0 : index
    %c0_7 = arith.constant 0 : index
    %c0_8 = arith.constant 0 : index
    %10 = vector.load %arg5[%c0_6, %c0_7, %c0_8] : memref<1x1x64xf32, #tpu.memory_space<vmem>>, vector<1x1x64xf32>
    %11 = vector.shape_cast %10 : vector<1x1x64xf32> to vector<1x64xf32>
    %12 = vector.shape_cast %9 : vector<1x64xf32> to vector<1x1x64xf32>
    tpu.vector_store %arg5[%c0_6, %c0_7, %c0_8], %12 {strides = array<i32>} : memref<1x1x64xf32, #tpu.memory_space<vmem>>, vector<1x1x64xf32>,
    return
  }
  func.func @transform_0(%arg0: i32, %arg1: i32) -> (i32, i32, i32) {
    %c0_i32 = arith.constant 0 : i32
    %c0_i32_0 = arith.constant 0 : i32
    return %arg0, %c0_i32, %arg1 : i32, i32, i32
  }
  func.func @transform_1(%arg0: i32, %arg1: i32) -> (i32, i32) {
    %c0_i32 = arith.constant 0 : i32
    %c0_i32_0 = arith.constant 0 : i32
    %c0_i32_1 = arith.constant 0 : i32
    return %c0_i32, %c0_i32_0 : i32, i32
  }
  func.func @transform_2(%arg0: i32, %arg1: i32) -> (i32, i32) {
    %c0_i32 = arith.constant 0 : i32
    %c0_i32_0 = arith.constant 0 : i32
    %c0_i32_1 = arith.constant 0 : i32
    return %c0_i32, %c0_i32_0 : i32, i32
  }
  func.func @transform_3(%arg0: i32, %arg1: i32) -> (i32, i32, i32) {
    %c0_i32 = arith.constant 0 : i32
    %c0_i32_0 = arith.constant 0 : i32
    return %arg0, %c0_i32, %arg1 : i32, i32, i32
  }
}

module attributes {stable_mosaic.version = 11 : i64} {
  func.func @_conv1x1_single_kernel(%arg0: i32, %arg1: i32, %arg2: memref<1x8x16xf32, #tpu.memory_space<vmem>>, %arg3: memref<8x1xf32, #tpu.memory_space<vmem>>, %arg4: memref<1x1xf32, #tpu.memory_space<vmem>>, %arg5: memref<1x1x16xf32, #tpu.memory_space<vmem>>) attributes {dimension_semantics = [#tpu.dimension_semantics<parallel>, #tpu.dimension_semantics<parallel>], iteration_bounds = array<i64: 2, 1>, scalar_prefetch = 0 : i64, scratch_operands = 0 : i64, tpu.core_type = #tpu.core_type<tc>, window_params = [{transform_indices = @transform_0, window_bounds = array<i64: 1, 8, 16>}, {pipeline_mode = #tpu.pipeline_mode<synchronous>, transform_indices = @transform_1, window_bounds = array<i64: 8, 1>}, {pipeline_mode = #tpu.pipeline_mode<synchronous>, transform_indices = @transform_2, window_bounds = array<i64: 1, 1>}, {transform_indices = @transform_3, window_bounds = array<i64: 1, 1, 16>}]} {
    %c0 = arith.constant 0 : index
    %c0_0 = arith.constant 0 : index
    %c0_1 = arith.constant 0 : index
    %0 = vector.load %arg2[%c0, %c0_0, %c0_1] : memref<1x8x16xf32, #tpu.memory_space<vmem>>, vector<1x8x16xf32>
    %1 = vector.shape_cast %0 : vector<1x8x16xf32> to vector<8x16xf32>
    %c0_2 = arith.constant 0 : index
    %c0_3 = arith.constant 0 : index
    %2 = vector.load %arg3[%c0_2, %c0_3] : memref<8x1xf32, #tpu.memory_space<vmem>>, vector<8x1xf32>
    %3 = vector.broadcast %2 : vector<8x1xf32> to vector<8x16xf32>
    %4 = arith.mulf %1, %3 : vector<8x16xf32>
    %cst = arith.constant dense<0.000000e+00> : vector<16xf32>
    %5 = vector.multi_reduction <add>, %4, %cst [0] : vector<8x16xf32> to vector<16xf32>
    %6 = vector.shape_cast %5 : vector<16xf32> to vector<1x16xf32>
    %c0_4 = arith.constant 0 : index
    %c0_5 = arith.constant 0 : index
    %7 = vector.load %arg4[%c0_4, %c0_5] : memref<1x1xf32, #tpu.memory_space<vmem>>, vector<1x1xf32>
    %8 = vector.broadcast %7 : vector<1x1xf32> to vector<1x16xf32>
    %9 = arith.addf %6, %8 : vector<1x16xf32>
    %c0_6 = arith.constant 0 : index
    %c0_7 = arith.constant 0 : index
    %c0_8 = arith.constant 0 : index
    %10 = vector.load %arg5[%c0_6, %c0_7, %c0_8] : memref<1x1x16xf32, #tpu.memory_space<vmem>>, vector<1x1x16xf32>
    %11 = vector.shape_cast %10 : vector<1x1x16xf32> to vector<1x16xf32>
    %12 = vector.shape_cast %9 : vector<1x16xf32> to vector<1x1x16xf32>
    tpu.vector_store %arg5[%c0_6, %c0_7, %c0_8], %12 {strides = array<i32>} : memref<1x1x16xf32, #tpu.memory_space<vmem>>, vector<1x1x16xf32>,
    return
  }
  func.func @transform_0(%arg0: i32, %arg1: i32) -> (i32, i32, i32) {
    %c0_i32 = arith.constant 0 : i32
    %c0_i32_0 = arith.constant 0 : i32
    return %arg0, %c0_i32, %arg1 : i32, i32, i32
  }
  func.func @transform_1(%arg0: i32, %arg1: i32) -> (i32, i32) {
    %c0_i32 = arith.constant 0 : i32
    %c0_i32_0 = arith.constant 0 : i32
    %c0_i32_1 = arith.constant 0 : i32
    return %c0_i32, %c0_i32_0 : i32, i32
  }
  func.func @transform_2(%arg0: i32, %arg1: i32) -> (i32, i32) {
    %c0_i32 = arith.constant 0 : i32
    %c0_i32_0 = arith.constant 0 : i32
    %c0_i32_1 = arith.constant 0 : i32
    return %c0_i32, %c0_i32_0 : i32, i32
  }
  func.func @transform_3(%arg0: i32, %arg1: i32) -> (i32, i32, i32) {
    %c0_i32 = arith.constant 0 : i32
    %c0_i32_0 = arith.constant 0 : i32
    return %arg0, %c0_i32, %arg1 : i32, i32, i32
  }
}

module attributes {stable_mosaic.version = 11 : i64} {
  func.func @_deconv_kernel(%arg0: i32, %arg1: i32, %arg2: i32, %arg3: memref<1x1x6x6xf32, #tpu.memory_space<vmem>>, %arg4: memref<6x20xf32, #tpu.memory_space<vmem>>, %arg5: memref<1x16x16xf32, #tpu.memory_space<vmem>>, %arg6: memref<1x1x4x64xf32, #tpu.memory_space<vmem>>) attributes {dimension_semantics = [#tpu.dimension_semantics<parallel>, #tpu.dimension_semantics<parallel>, #tpu.dimension_semantics<parallel>], iteration_bounds = array<i64: 2, 1, 1>, scalar_prefetch = 0 : i64, scratch_operands = 0 : i64, tpu.core_type = #tpu.core_type<tc>, window_params = [{transform_indices = @transform_0, window_bounds = array<i64: 1, 1, 6, 6>}, {pipeline_mode = #tpu.pipeline_mode<synchronous>, transform_indices = @transform_1, window_bounds = array<i64: 6, 20>}, {transform_indices = @transform_2, window_bounds = array<i64: 1, 16, 16>}, {transform_indices = @transform_3, window_bounds = array<i64: 1, 1, 4, 64>}]} {
    %c4_i32 = arith.constant 4 : i32
    %0 = arith.muli %arg2, %c4_i32 : i32
    %c0 = arith.constant 0 : index
    %c0_0 = arith.constant 0 : index
    %1 = arith.index_cast %0 : i32 to index
    %c0_1 = arith.constant 0 : index
    %2 = vector.load %arg3[%c0, %c0_0, %1, %c0_1] : memref<1x1x6x6xf32, #tpu.memory_space<vmem>>, vector<1x1x6x6xf32>
    %3 = vector.shape_cast %2 : vector<1x1x6x6xf32> to vector<6x6xf32>
    %c0_2 = arith.constant 0 : index
    %c0_3 = arith.constant 0 : index
    %4 = vector.load %arg4[%c0_2, %c0_3] : memref<6x20xf32, #tpu.memory_space<vmem>>, vector<6x20xf32>
    %cst = arith.constant dense<0.000000e+00> : vector<6x20xf32>
    %5 = tpu.matmul %3, %4, %cst {dimension_numbers = #tpu.dot_dimension_numbers<[1], [0], [0], [1], [0, 0, 1, 1], [], []>} : vector<6x6xf32>, vector<6x20xf32>, vector<6x20xf32> -> vector<6x20xf32>
    %6 = vector.extract_strided_slice %5 {offsets = [0, 4], sizes = [6, 16], strides = [1, 1]} : vector<6x20xf32> to vector<6x16xf32>
    %7 = vector.extract_strided_slice %5 {offsets = [0, 0], sizes = [6, 16], strides = [1, 1]} : vector<6x20xf32> to vector<6x16xf32>
    %c0_4 = arith.constant 0 : index
    %c0_5 = arith.constant 0 : index
    %c0_6 = arith.constant 0 : index
    %8 = vector.load %arg5[%c0_4, %c0_5, %c0_6] : memref<1x16x16xf32, #tpu.memory_space<vmem>>, vector<1x16x16xf32>
    %9 = vector.shape_cast %8 : vector<1x16x16xf32> to vector<16x16xf32>
    %10 = vector.extract_strided_slice %6 {offsets = [1, 0], sizes = [4, 16], strides = [1, 1]} : vector<6x16xf32> to vector<4x16xf32>
    %11 = vector.extract_strided_slice %9 {offsets = [4, 0], sizes = [1, 16], strides = [1, 1]} : vector<16x16xf32> to vector<1x16xf32>
    %12 = vector.broadcast %11 : vector<1x16xf32> to vector<4x16xf32>
    %13 = arith.mulf %10, %12 : vector<4x16xf32>
    %14 = vector.extract_strided_slice %7 {offsets = [1, 0], sizes = [4, 16], strides = [1, 1]} : vector<6x16xf32> to vector<4x16xf32>
    %15 = vector.extract_strided_slice %9 {offsets = [5, 0], sizes = [1, 16], strides = [1, 1]} : vector<16x16xf32> to vector<1x16xf32>
    %16 = vector.broadcast %15 : vector<1x16xf32> to vector<4x16xf32>
    %17 = arith.mulf %14, %16 : vector<4x16xf32>
    %18 = arith.addf %13, %17 : vector<4x16xf32>
    %19 = vector.extract_strided_slice %6 {offsets = [0, 0], sizes = [4, 16], strides = [1, 1]} : vector<6x16xf32> to vector<4x16xf32>
    %20 = vector.extract_strided_slice %9 {offsets = [12, 0], sizes = [1, 16], strides = [1, 1]} : vector<16x16xf32> to vector<1x16xf32>
    %21 = vector.broadcast %20 : vector<1x16xf32> to vector<4x16xf32>
    %22 = arith.mulf %19, %21 : vector<4x16xf32>
    %23 = arith.addf %18, %22 : vector<4x16xf32>
    %24 = vector.extract_strided_slice %7 {offsets = [0, 0], sizes = [4, 16], strides = [1, 1]} : vector<6x16xf32> to vector<4x16xf32>
    %25 = vector.extract_strided_slice %9 {offsets = [13, 0], sizes = [1, 16], strides = [1, 1]} : vector<16x16xf32> to vector<1x16xf32>
    %26 = vector.broadcast %25 : vector<1x16xf32> to vector<4x16xf32>
    %27 = arith.mulf %24, %26 : vector<4x16xf32>
    %28 = arith.addf %23, %27 : vector<4x16xf32>
    %c0_7 = arith.constant 0 : index
    %c0_8 = arith.constant 0 : index
    %c0_9 = arith.constant 0 : index
    %c0_10 = arith.constant 0 : index
    %29 = vector.load %arg6[%c0_7, %c0_8, %c0_9, %c0_10] : memref<1x1x4x64xf32, #tpu.memory_space<vmem>>, vector<1x1x4x16xf32>
    %30 = vector.shape_cast %29 : vector<1x1x4x16xf32> to vector<4x16xf32>
    %31 = vector.shape_cast %28 : vector<4x16xf32> to vector<1x1x4x16xf32>
    tpu.vector_store %arg6[%c0_7, %c0_8, %c0_9, %c0_10], %31 {strides = array<i32>} : memref<1x1x4x64xf32, #tpu.memory_space<vmem>>, vector<1x1x4x16xf32>,
    %32 = vector.extract_strided_slice %6 {offsets = [1, 0], sizes = [4, 16], strides = [1, 1]} : vector<6x16xf32> to vector<4x16xf32>
    %33 = vector.extract_strided_slice %9 {offsets = [6, 0], sizes = [1, 16], strides = [1, 1]} : vector<16x16xf32> to vector<1x16xf32>
    %34 = vector.broadcast %33 : vector<1x16xf32> to vector<4x16xf32>
    %35 = arith.mulf %32, %34 : vector<4x16xf32>
    %36 = vector.extract_strided_slice %7 {offsets = [1, 0], sizes = [4, 16], strides = [1, 1]} : vector<6x16xf32> to vector<4x16xf32>
    %37 = vector.extract_strided_slice %9 {offsets = [7, 0], sizes = [1, 16], strides = [1, 1]} : vector<16x16xf32> to vector<1x16xf32>
    %38 = vector.broadcast %37 : vector<1x16xf32> to vector<4x16xf32>
    %39 = arith.mulf %36, %38 : vector<4x16xf32>
    %40 = arith.addf %35, %39 : vector<4x16xf32>
    %41 = vector.extract_strided_slice %6 {offsets = [0, 0], sizes = [4, 16], strides = [1, 1]} : vector<6x16xf32> to vector<4x16xf32>
    %42 = vector.extract_strided_slice %9 {offsets = [14, 0], sizes = [1, 16], strides = [1, 1]} : vector<16x16xf32> to vector<1x16xf32>
    %43 = vector.broadcast %42 : vector<1x16xf32> to vector<4x16xf32>
    %44 = arith.mulf %41, %43 : vector<4x16xf32>
    %45 = arith.addf %40, %44 : vector<4x16xf32>
    %46 = vector.extract_strided_slice %7 {offsets = [0, 0], sizes = [4, 16], strides = [1, 1]} : vector<6x16xf32> to vector<4x16xf32>
    %47 = vector.extract_strided_slice %9 {offsets = [15, 0], sizes = [1, 16], strides = [1, 1]} : vector<16x16xf32> to vector<1x16xf32>
    %48 = vector.broadcast %47 : vector<1x16xf32> to vector<4x16xf32>
    %49 = arith.mulf %46, %48 : vector<4x16xf32>
    %50 = arith.addf %45, %49 : vector<4x16xf32>
    %c0_11 = arith.constant 0 : index
    %c0_12 = arith.constant 0 : index
    %c0_13 = arith.constant 0 : index
    %c16 = arith.constant 16 : index
    %51 = vector.load %arg6[%c0_11, %c0_12, %c0_13, %c16] : memref<1x1x4x64xf32, #tpu.memory_space<vmem>>, vector<1x1x4x16xf32>
    %52 = vector.shape_cast %51 : vector<1x1x4x16xf32> to vector<4x16xf32>
    %53 = vector.shape_cast %50 : vector<4x16xf32> to vector<1x1x4x16xf32>
    tpu.vector_store %arg6[%c0_11, %c0_12, %c0_13, %c16], %53 {strides = array<i32>} : memref<1x1x4x64xf32, #tpu.memory_space<vmem>>, vector<1x1x4x16xf32>,
    %54 = vector.extract_strided_slice %6 {offsets = [2, 0], sizes = [4, 16], strides = [1, 1]} : vector<6x16xf32> to vector<4x16xf32>
    %55 = vector.extract_strided_slice %9 {offsets = [0, 0], sizes = [1, 16], strides = [1, 1]} : vector<16x16xf32> to vector<1x16xf32>
    %56 = vector.broadcast %55 : vector<1x16xf32> to vector<4x16xf32>
    %57 = arith.mulf %54, %56 : vector<4x16xf32>
    %58 = vector.extract_strided_slice %7 {offsets = [2, 0], sizes = [4, 16], strides = [1, 1]} : vector<6x16xf32> to vector<4x16xf32>
    %59 = vector.extract_strided_slice %9 {offsets = [1, 0], sizes = [1, 16], strides = [1, 1]} : vector<16x16xf32> to vector<1x16xf32>
    %60 = vector.broadcast %59 : vector<1x16xf32> to vector<4x16xf32>
    %61 = arith.mulf %58, %60 : vector<4x16xf32>
    %62 = arith.addf %57, %61 : vector<4x16xf32>
    %63 = vector.extract_strided_slice %6 {offsets = [1, 0], sizes = [4, 16], strides = [1, 1]} : vector<6x16xf32> to vector<4x16xf32>
    %64 = vector.extract_strided_slice %9 {offsets = [8, 0], sizes = [1, 16], strides = [1, 1]} : vector<16x16xf32> to vector<1x16xf32>
    %65 = vector.broadcast %64 : vector<1x16xf32> to vector<4x16xf32>
    %66 = arith.mulf %63, %65 : vector<4x16xf32>
    %67 = arith.addf %62, %66 : vector<4x16xf32>
    %68 = vector.extract_strided_slice %7 {offsets = [1, 0], sizes = [4, 16], strides = [1, 1]} : vector<6x16xf32> to vector<4x16xf32>
    %69 = vector.extract_strided_slice %9 {offsets = [9, 0], sizes = [1, 16], strides = [1, 1]} : vector<16x16xf32> to vector<1x16xf32>
    %70 = vector.broadcast %69 : vector<1x16xf32> to vector<4x16xf32>
    %71 = arith.mulf %68, %70 : vector<4x16xf32>
    %72 = arith.addf %67, %71 : vector<4x16xf32>
    %c0_14 = arith.constant 0 : index
    %c0_15 = arith.constant 0 : index
    %c0_16 = arith.constant 0 : index
    %c32 = arith.constant 32 : index
    %73 = vector.load %arg6[%c0_14, %c0_15, %c0_16, %c32] : memref<1x1x4x64xf32, #tpu.memory_space<vmem>>, vector<1x1x4x16xf32>
    %74 = vector.shape_cast %73 : vector<1x1x4x16xf32> to vector<4x16xf32>
    %75 = vector.shape_cast %72 : vector<4x16xf32> to vector<1x1x4x16xf32>
    tpu.vector_store %arg6[%c0_14, %c0_15, %c0_16, %c32], %75 {strides = array<i32>} : memref<1x1x4x64xf32, #tpu.memory_space<vmem>>, vector<1x1x4x16xf32>,
    %76 = vector.extract_strided_slice %6 {offsets = [2, 0], sizes = [4, 16], strides = [1, 1]} : vector<6x16xf32> to vector<4x16xf32>
    %77 = vector.extract_strided_slice %9 {offsets = [2, 0], sizes = [1, 16], strides = [1, 1]} : vector<16x16xf32> to vector<1x16xf32>
    %78 = vector.broadcast %77 : vector<1x16xf32> to vector<4x16xf32>
    %79 = arith.mulf %76, %78 : vector<4x16xf32>
    %80 = vector.extract_strided_slice %7 {offsets = [2, 0], sizes = [4, 16], strides = [1, 1]} : vector<6x16xf32> to vector<4x16xf32>
    %81 = vector.extract_strided_slice %9 {offsets = [3, 0], sizes = [1, 16], strides = [1, 1]} : vector<16x16xf32> to vector<1x16xf32>
    %82 = vector.broadcast %81 : vector<1x16xf32> to vector<4x16xf32>
    %83 = arith.mulf %80, %82 : vector<4x16xf32>
    %84 = arith.addf %79, %83 : vector<4x16xf32>
    %85 = vector.extract_strided_slice %6 {offsets = [1, 0], sizes = [4, 16], strides = [1, 1]} : vector<6x16xf32> to vector<4x16xf32>
    %86 = vector.extract_strided_slice %9 {offsets = [10, 0], sizes = [1, 16], strides = [1, 1]} : vector<16x16xf32> to vector<1x16xf32>
    %87 = vector.broadcast %86 : vector<1x16xf32> to vector<4x16xf32>
    %88 = arith.mulf %85, %87 : vector<4x16xf32>
    %89 = arith.addf %84, %88 : vector<4x16xf32>
    %90 = vector.extract_strided_slice %7 {offsets = [1, 0], sizes = [4, 16], strides = [1, 1]} : vector<6x16xf32> to vector<4x16xf32>
    %91 = vector.extract_strided_slice %9 {offsets = [11, 0], sizes = [1, 16], strides = [1, 1]} : vector<16x16xf32> to vector<1x16xf32>
    %92 = vector.broadcast %91 : vector<1x16xf32> to vector<4x16xf32>
    %93 = arith.mulf %90, %92 : vector<4x16xf32>
    %94 = arith.addf %89, %93 : vector<4x16xf32>
    %c0_17 = arith.constant 0 : index
    %c0_18 = arith.constant 0 : index
    %c0_19 = arith.constant 0 : index
    %c48 = arith.constant 48 : index
    %95 = vector.load %arg6[%c0_17, %c0_18, %c0_19, %c48] : memref<1x1x4x64xf32, #tpu.memory_space<vmem>>, vector<1x1x4x16xf32>
    %96 = vector.shape_cast %95 : vector<1x1x4x16xf32> to vector<4x16xf32>
    %97 = vector.shape_cast %94 : vector<4x16xf32> to vector<1x1x4x16xf32>
    tpu.vector_store %arg6[%c0_17, %c0_18, %c0_19, %c48], %97 {strides = array<i32>} : memref<1x1x4x64xf32, #tpu.memory_space<vmem>>, vector<1x1x4x16xf32>,
    return
  }
  func.func @transform_0(%arg0: i32, %arg1: i32, %arg2: i32) -> (i32, i32, i32, i32) {
    %c0_i32 = arith.constant 0 : i32
    %c0_i32_0 = arith.constant 0 : i32
    %c0_i32_1 = arith.constant 0 : i32
    return %arg0, %arg1, %c0_i32, %c0_i32_0 : i32, i32, i32, i32
  }
  func.func @transform_1(%arg0: i32, %arg1: i32, %arg2: i32) -> (i32, i32) {
    %c0_i32 = arith.constant 0 : i32
    %c0_i32_0 = arith.constant 0 : i32
    %c0_i32_1 = arith.constant 0 : i32
    return %c0_i32, %c0_i32_0 : i32, i32
  }
  func.func @transform_2(%arg0: i32, %arg1: i32, %arg2: i32) -> (i32, i32, i32) {
    %c0_i32 = arith.constant 0 : i32
    %c0_i32_0 = arith.constant 0 : i32
    %c0_i32_1 = arith.constant 0 : i32
    return %arg1, %c0_i32, %c0_i32_0 : i32, i32, i32
  }
  func.func @transform_3(%arg0: i32, %arg1: i32, %arg2: i32) -> (i32, i32, i32, i32) {
    %c0_i32 = arith.constant 0 : i32
    %c0_i32_0 = arith.constant 0 : i32
    return %arg0, %arg1, %arg2, %c0_i32 : i32, i32, i32, i32
  }
}

module attributes {stable_mosaic.version = 11 : i64} {
  func.func @_deconv_kernel(%arg0: i32, %arg1: i32, %arg2: i32, %arg3: memref<1x1x10x10xf32, #tpu.memory_space<vmem>>, %arg4: memref<10x18xf32, #tpu.memory_space<vmem>>, %arg5: memref<1x8x16xf32, #tpu.memory_space<vmem>>, %arg6: memref<1x1x8x32xf32, #tpu.memory_space<vmem>>) attributes {dimension_semantics = [#tpu.dimension_semantics<parallel>, #tpu.dimension_semantics<parallel>, #tpu.dimension_semantics<parallel>], iteration_bounds = array<i64: 2, 1, 1>, scalar_prefetch = 0 : i64, scratch_operands = 0 : i64, tpu.core_type = #tpu.core_type<tc>, window_params = [{transform_indices = @transform_0, window_bounds = array<i64: 1, 1, 10, 10>}, {pipeline_mode = #tpu.pipeline_mode<synchronous>, transform_indices = @transform_1, window_bounds = array<i64: 10, 18>}, {transform_indices = @transform_2, window_bounds = array<i64: 1, 8, 16>}, {transform_indices = @transform_3, window_bounds = array<i64: 1, 1, 8, 32>}]} {
    %c8_i32 = arith.constant 8 : i32
    %0 = arith.muli %arg2, %c8_i32 : i32
    %1 = tpu.assume_multiple %0, 8 : i32
    %c0 = arith.constant 0 : index
    %c0_0 = arith.constant 0 : index
    %2 = arith.index_cast %1 : i32 to index
    %c0_1 = arith.constant 0 : index
    %3 = vector.load %arg3[%c0, %c0_0, %2, %c0_1] : memref<1x1x10x10xf32, #tpu.memory_space<vmem>>, vector<1x1x10x10xf32>
    %4 = vector.shape_cast %3 : vector<1x1x10x10xf32> to vector<10x10xf32>
    %c0_2 = arith.constant 0 : index
    %c0_3 = arith.constant 0 : index
    %5 = vector.load %arg4[%c0_2, %c0_3] : memref<10x18xf32, #tpu.memory_space<vmem>>, vector<10x18xf32>
    %cst = arith.constant dense<0.000000e+00> : vector<10x18xf32>
    %6 = tpu.matmul %4, %5, %cst {dimension_numbers = #tpu.dot_dimension_numbers<[1], [0], [0], [1], [0, 0, 1, 1], [], []>} : vector<10x10xf32>, vector<10x18xf32>, vector<10x18xf32> -> vector<10x18xf32>
    %7 = vector.extract_strided_slice %6 {offsets = [0, 2], sizes = [10, 16], strides = [1, 1]} : vector<10x18xf32> to vector<10x16xf32>
    %8 = vector.extract_strided_slice %6 {offsets = [0, 0], sizes = [10, 16], strides = [1, 1]} : vector<10x18xf32> to vector<10x16xf32>
    %c0_4 = arith.constant 0 : index
    %c0_5 = arith.constant 0 : index
    %c0_6 = arith.constant 0 : index
    %9 = vector.load %arg5[%c0_4, %c0_5, %c0_6] : memref<1x8x16xf32, #tpu.memory_space<vmem>>, vector<1x8x16xf32>
    %10 = vector.shape_cast %9 : vector<1x8x16xf32> to vector<8x16xf32>
    %11 = vector.extract_strided_slice %7 {offsets = [1, 0], sizes = [8, 16], strides = [1, 1]} : vector<10x16xf32> to vector<8x16xf32>
    %12 = vector.extract_strided_slice %10 {offsets = [2, 0], sizes = [1, 16], strides = [1, 1]} : vector<8x16xf32> to vector<1x16xf32>
    %13 = vector.broadcast %12 : vector<1x16xf32> to vector<8x16xf32>
    %14 = arith.mulf %11, %13 : vector<8x16xf32>
    %15 = vector.extract_strided_slice %8 {offsets = [1, 0], sizes = [8, 16], strides = [1, 1]} : vector<10x16xf32> to vector<8x16xf32>
    %16 = vector.extract_strided_slice %10 {offsets = [3, 0], sizes = [1, 16], strides = [1, 1]} : vector<8x16xf32> to vector<1x16xf32>
    %17 = vector.broadcast %16 : vector<1x16xf32> to vector<8x16xf32>
    %18 = arith.mulf %15, %17 : vector<8x16xf32>
    %19 = arith.addf %14, %18 : vector<8x16xf32>
    %20 = vector.extract_strided_slice %7 {offsets = [0, 0], sizes = [8, 16], strides = [1, 1]} : vector<10x16xf32> to vector<8x16xf32>
    %21 = vector.extract_strided_slice %10 {offsets = [6, 0], sizes = [1, 16], strides = [1, 1]} : vector<8x16xf32> to vector<1x16xf32>
    %22 = vector.broadcast %21 : vector<1x16xf32> to vector<8x16xf32>
    %23 = arith.mulf %20, %22 : vector<8x16xf32>
    %24 = arith.addf %19, %23 : vector<8x16xf32>
    %25 = vector.extract_strided_slice %8 {offsets = [0, 0], sizes = [8, 16], strides = [1, 1]} : vector<10x16xf32> to vector<8x16xf32>
    %26 = vector.extract_strided_slice %10 {offsets = [7, 0], sizes = [1, 16], strides = [1, 1]} : vector<8x16xf32> to vector<1x16xf32>
    %27 = vector.broadcast %26 : vector<1x16xf32> to vector<8x16xf32>
    %28 = arith.mulf %25, %27 : vector<8x16xf32>
    %29 = arith.addf %24, %28 : vector<8x16xf32>
    %c0_7 = arith.constant 0 : index
    %c0_8 = arith.constant 0 : index
    %c0_9 = arith.constant 0 : index
    %c0_10 = arith.constant 0 : index
    %30 = vector.load %arg6[%c0_7, %c0_8, %c0_9, %c0_10] : memref<1x1x8x32xf32, #tpu.memory_space<vmem>>, vector<1x1x8x16xf32>
    %31 = vector.shape_cast %30 : vector<1x1x8x16xf32> to vector<8x16xf32>
    %32 = vector.shape_cast %29 : vector<8x16xf32> to vector<1x1x8x16xf32>
    tpu.vector_store %arg6[%c0_7, %c0_8, %c0_9, %c0_10], %32 {strides = array<i32>} : memref<1x1x8x32xf32, #tpu.memory_space<vmem>>, vector<1x1x8x16xf32>,
    %33 = vector.extract_strided_slice %7 {offsets = [2, 0], sizes = [8, 16], strides = [1, 1]} : vector<10x16xf32> to vector<8x16xf32>
    %34 = vector.extract_strided_slice %10 {offsets = [0, 0], sizes = [1, 16], strides = [1, 1]} : vector<8x16xf32> to vector<1x16xf32>
    %35 = vector.broadcast %34 : vector<1x16xf32> to vector<8x16xf32>
    %36 = arith.mulf %33, %35 : vector<8x16xf32>
    %37 = vector.extract_strided_slice %8 {offsets = [2, 0], sizes = [8, 16], strides = [1, 1]} : vector<10x16xf32> to vector<8x16xf32>
    %38 = vector.extract_strided_slice %10 {offsets = [1, 0], sizes = [1, 16], strides = [1, 1]} : vector<8x16xf32> to vector<1x16xf32>
    %39 = vector.broadcast %38 : vector<1x16xf32> to vector<8x16xf32>
    %40 = arith.mulf %37, %39 : vector<8x16xf32>
    %41 = arith.addf %36, %40 : vector<8x16xf32>
    %42 = vector.extract_strided_slice %7 {offsets = [1, 0], sizes = [8, 16], strides = [1, 1]} : vector<10x16xf32> to vector<8x16xf32>
    %43 = vector.extract_strided_slice %10 {offsets = [4, 0], sizes = [1, 16], strides = [1, 1]} : vector<8x16xf32> to vector<1x16xf32>
    %44 = vector.broadcast %43 : vector<1x16xf32> to vector<8x16xf32>
    %45 = arith.mulf %42, %44 : vector<8x16xf32>
    %46 = arith.addf %41, %45 : vector<8x16xf32>
    %47 = vector.extract_strided_slice %8 {offsets = [1, 0], sizes = [8, 16], strides = [1, 1]} : vector<10x16xf32> to vector<8x16xf32>
    %48 = vector.extract_strided_slice %10 {offsets = [5, 0], sizes = [1, 16], strides = [1, 1]} : vector<8x16xf32> to vector<1x16xf32>
    %49 = vector.broadcast %48 : vector<1x16xf32> to vector<8x16xf32>
    %50 = arith.mulf %47, %49 : vector<8x16xf32>
    %51 = arith.addf %46, %50 : vector<8x16xf32>
    %c0_11 = arith.constant 0 : index
    %c0_12 = arith.constant 0 : index
    %c0_13 = arith.constant 0 : index
    %c16 = arith.constant 16 : index
    %52 = vector.load %arg6[%c0_11, %c0_12, %c0_13, %c16] : memref<1x1x8x32xf32, #tpu.memory_space<vmem>>, vector<1x1x8x16xf32>
    %53 = vector.shape_cast %52 : vector<1x1x8x16xf32> to vector<8x16xf32>
    %54 = vector.shape_cast %51 : vector<8x16xf32> to vector<1x1x8x16xf32>
    tpu.vector_store %arg6[%c0_11, %c0_12, %c0_13, %c16], %54 {strides = array<i32>} : memref<1x1x8x32xf32, #tpu.memory_space<vmem>>, vector<1x1x8x16xf32>,
    return
  }
  func.func @transform_0(%arg0: i32, %arg1: i32, %arg2: i32) -> (i32, i32, i32, i32) {
    %c0_i32 = arith.constant 0 : i32
    %c0_i32_0 = arith.constant 0 : i32
    %c0_i32_1 = arith.constant 0 : i32
    return %arg0, %arg1, %c0_i32, %c0_i32_0 : i32, i32, i32, i32
  }
  func.func @transform_1(%arg0: i32, %arg1: i32, %arg2: i32) -> (i32, i32) {
    %c0_i32 = arith.constant 0 : i32
    %c0_i32_0 = arith.constant 0 : i32
    %c0_i32_1 = arith.constant 0 : i32
    return %c0_i32, %c0_i32_0 : i32, i32
  }
  func.func @transform_2(%arg0: i32, %arg1: i32, %arg2: i32) -> (i32, i32, i32) {
    %c0_i32 = arith.constant 0 : i32
    %c0_i32_0 = arith.constant 0 : i32
    %c0_i32_1 = arith.constant 0 : i32
    return %arg1, %c0_i32, %c0_i32_0 : i32, i32, i32
  }
  func.func @transform_3(%arg0: i32, %arg1: i32, %arg2: i32) -> (i32, i32, i32, i32) {
    %c0_i32 = arith.constant 0 : i32
    %c0_i32_0 = arith.constant 0 : i32
    return %arg0, %arg1, %arg2, %c0_i32 : i32, i32, i32, i32
  }
}

module attributes {stable_mosaic.version = 11 : i64} {
  func.func @_conv1x1_multi_kernel(%arg0: i32, %arg1: i32, %arg2: memref<1x16x4xf32, #tpu.memory_space<vmem>>, %arg3: memref<20x16xf32, #tpu.memory_space<vmem>>, %arg4: memref<20x1xf32, #tpu.memory_space<vmem>>, %arg5: memref<1x20x4xf32, #tpu.memory_space<vmem>>) attributes {dimension_semantics = [#tpu.dimension_semantics<parallel>, #tpu.dimension_semantics<parallel>], iteration_bounds = array<i64: 2, 1>, scalar_prefetch = 0 : i64, scratch_operands = 0 : i64, tpu.core_type = #tpu.core_type<tc>, window_params = [{transform_indices = @transform_0, window_bounds = array<i64: 1, 16, 4>}, {pipeline_mode = #tpu.pipeline_mode<synchronous>, transform_indices = @transform_1, window_bounds = array<i64: 20, 16>}, {pipeline_mode = #tpu.pipeline_mode<synchronous>, transform_indices = @transform_2, window_bounds = array<i64: 20, 1>}, {transform_indices = @transform_3, window_bounds = array<i64: 1, 20, 4>}]} {
    %c0 = arith.constant 0 : index
    %c0_0 = arith.constant 0 : index
    %c0_1 = arith.constant 0 : index
    %0 = vector.load %arg2[%c0, %c0_0, %c0_1] : memref<1x16x4xf32, #tpu.memory_space<vmem>>, vector<1x16x4xf32>
    %1 = vector.shape_cast %0 : vector<1x16x4xf32> to vector<16x4xf32>
    %c0_2 = arith.constant 0 : index
    %c0_3 = arith.constant 0 : index
    %2 = vector.load %arg3[%c0_2, %c0_3] : memref<20x16xf32, #tpu.memory_space<vmem>>, vector<20x16xf32>
    %cst = arith.constant dense<0.000000e+00> : vector<20x4xf32>
    %3 = tpu.matmul %2, %1, %cst {dimension_numbers = #tpu.dot_dimension_numbers<[1], [0], [0], [1], [0, 0, 1, 1], [], []>} : vector<20x16xf32>, vector<16x4xf32>, vector<20x4xf32> -> vector<20x4xf32>
    %c0_4 = arith.constant 0 : index
    %c0_5 = arith.constant 0 : index
    %4 = vector.load %arg4[%c0_4, %c0_5] : memref<20x1xf32, #tpu.memory_space<vmem>>, vector<20x1xf32>
    %5 = vector.broadcast %4 : vector<20x1xf32> to vector<20x4xf32>
    %6 = arith.addf %3, %5 : vector<20x4xf32>
    %c0_6 = arith.constant 0 : index
    %c0_7 = arith.constant 0 : index
    %c0_8 = arith.constant 0 : index
    %7 = vector.load %arg5[%c0_6, %c0_7, %c0_8] : memref<1x20x4xf32, #tpu.memory_space<vmem>>, vector<1x20x4xf32>
    %8 = vector.shape_cast %7 : vector<1x20x4xf32> to vector<20x4xf32>
    %9 = vector.shape_cast %6 : vector<20x4xf32> to vector<1x20x4xf32>
    tpu.vector_store %arg5[%c0_6, %c0_7, %c0_8], %9 {strides = array<i32>} : memref<1x20x4xf32, #tpu.memory_space<vmem>>, vector<1x20x4xf32>,
    return
  }
  func.func @transform_0(%arg0: i32, %arg1: i32) -> (i32, i32, i32) {
    %c0_i32 = arith.constant 0 : i32
    %c0_i32_0 = arith.constant 0 : i32
    return %arg0, %c0_i32, %arg1 : i32, i32, i32
  }
  func.func @transform_1(%arg0: i32, %arg1: i32) -> (i32, i32) {
    %c0_i32 = arith.constant 0 : i32
    %c0_i32_0 = arith.constant 0 : i32
    %c0_i32_1 = arith.constant 0 : i32
    return %c0_i32, %c0_i32_0 : i32, i32
  }
  func.func @transform_2(%arg0: i32, %arg1: i32) -> (i32, i32) {
    %c0_i32 = arith.constant 0 : i32
    %c0_i32_0 = arith.constant 0 : i32
    %c0_i32_1 = arith.constant 0 : i32
    return %c0_i32, %c0_i32_0 : i32, i32
  }
  func.func @transform_3(%arg0: i32, %arg1: i32) -> (i32, i32, i32) {
    %c0_i32 = arith.constant 0 : i32
    %c0_i32_0 = arith.constant 0 : i32
    return %arg0, %c0_i32, %arg1 : i32, i32, i32
  }
}

module attributes {stable_mosaic.version = 11 : i64} {
  func.func @_deconv_kernel(%arg0: i32, %arg1: i32, %arg2: i32, %arg3: memref<1x1x4x4xf32, #tpu.memory_space<vmem>>, %arg4: memref<4x24xf32, #tpu.memory_space<vmem>>, %arg5: memref<1x32x16xf32, #tpu.memory_space<vmem>>, %arg6: memref<1x1x2x128xf32, #tpu.memory_space<vmem>>) attributes {dimension_semantics = [#tpu.dimension_semantics<parallel>, #tpu.dimension_semantics<parallel>, #tpu.dimension_semantics<parallel>], iteration_bounds = array<i64: 2, 20, 1>, scalar_prefetch = 0 : i64, scratch_operands = 0 : i64, tpu.core_type = #tpu.core_type<tc>, window_params = [{transform_indices = @transform_0, window_bounds = array<i64: 1, 1, 4, 4>}, {pipeline_mode = #tpu.pipeline_mode<synchronous>, transform_indices = @transform_1, window_bounds = array<i64: 4, 24>}, {transform_indices = @transform_2, window_bounds = array<i64: 1, 32, 16>}, {transform_indices = @transform_3, window_bounds = array<i64: 1, 1, 2, 128>}]} {
    %c2_i32 = arith.constant 2 : i32
    %0 = arith.muli %arg2, %c2_i32 : i32
    %c0 = arith.constant 0 : index
    %c0_0 = arith.constant 0 : index
    %1 = arith.index_cast %0 : i32 to index
    %c0_1 = arith.constant 0 : index
    %2 = vector.load %arg3[%c0, %c0_0, %1, %c0_1] : memref<1x1x4x4xf32, #tpu.memory_space<vmem>>, vector<1x1x4x4xf32>
    %3 = vector.shape_cast %2 : vector<1x1x4x4xf32> to vector<4x4xf32>
    %c0_2 = arith.constant 0 : index
    %c0_3 = arith.constant 0 : index
    %4 = vector.load %arg4[%c0_2, %c0_3] : memref<4x24xf32, #tpu.memory_space<vmem>>, vector<4x24xf32>
    %cst = arith.constant dense<0.000000e+00> : vector<4x24xf32>
    %5 = tpu.matmul %3, %4, %cst {dimension_numbers = #tpu.dot_dimension_numbers<[1], [0], [0], [1], [0, 0, 1, 1], [], []>} : vector<4x4xf32>, vector<4x24xf32>, vector<4x24xf32> -> vector<4x24xf32>
    %6 = vector.extract_strided_slice %5 {offsets = [0, 8], sizes = [4, 16], strides = [1, 1]} : vector<4x24xf32> to vector<4x16xf32>
    %7 = vector.extract_strided_slice %5 {offsets = [0, 0], sizes = [4, 16], strides = [1, 1]} : vector<4x24xf32> to vector<4x16xf32>
    %c0_4 = arith.constant 0 : index
    %c0_5 = arith.constant 0 : index
    %c0_6 = arith.constant 0 : index
    %8 = vector.load %arg5[%c0_4, %c0_5, %c0_6] : memref<1x32x16xf32, #tpu.memory_space<vmem>>, vector<1x32x16xf32>
    %9 = vector.shape_cast %8 : vector<1x32x16xf32> to vector<32x16xf32>
    %10 = vector.extract_strided_slice %6 {offsets = [1, 0], sizes = [2, 16], strides = [1, 1]} : vector<4x16xf32> to vector<2x16xf32>
    %11 = vector.extract_strided_slice %9 {offsets = [8, 0], sizes = [1, 16], strides = [1, 1]} : vector<32x16xf32> to vector<1x16xf32>
    %12 = vector.broadcast %11 : vector<1x16xf32> to vector<2x16xf32>
    %13 = arith.mulf %10, %12 : vector<2x16xf32>
    %14 = vector.extract_strided_slice %7 {offsets = [1, 0], sizes = [2, 16], strides = [1, 1]} : vector<4x16xf32> to vector<2x16xf32>
    %15 = vector.extract_strided_slice %9 {offsets = [9, 0], sizes = [1, 16], strides = [1, 1]} : vector<32x16xf32> to vector<1x16xf32>
    %16 = vector.broadcast %15 : vector<1x16xf32> to vector<2x16xf32>
    %17 = arith.mulf %14, %16 : vector<2x16xf32>
    %18 = arith.addf %13, %17 : vector<2x16xf32>
    %19 = vector.extract_strided_slice %6 {offsets = [0, 0], sizes = [2, 16], strides = [1, 1]} : vector<4x16xf32> to vector<2x16xf32>
    %20 = vector.extract_strided_slice %9 {offsets = [24, 0], sizes = [1, 16], strides = [1, 1]} : vector<32x16xf32> to vector<1x16xf32>
    %21 = vector.broadcast %20 : vector<1x16xf32> to vector<2x16xf32>
    %22 = arith.mulf %19, %21 : vector<2x16xf32>
    %23 = arith.addf %18, %22 : vector<2x16xf32>
    %24 = vector.extract_strided_slice %7 {offsets = [0, 0], sizes = [2, 16], strides = [1, 1]} : vector<4x16xf32> to vector<2x16xf32>
    %25 = vector.extract_strided_slice %9 {offsets = [25, 0], sizes = [1, 16], strides = [1, 1]} : vector<32x16xf32> to vector<1x16xf32>
    %26 = vector.broadcast %25 : vector<1x16xf32> to vector<2x16xf32>
    %27 = arith.mulf %24, %26 : vector<2x16xf32>
    %28 = arith.addf %23, %27 : vector<2x16xf32>
    %c0_7 = arith.constant 0 : index
    %c0_8 = arith.constant 0 : index
    %c0_9 = arith.constant 0 : index
    %c0_10 = arith.constant 0 : index
    %29 = vector.load %arg6[%c0_7, %c0_8, %c0_9, %c0_10] : memref<1x1x2x128xf32, #tpu.memory_space<vmem>>, vector<1x1x2x16xf32>
    %30 = vector.shape_cast %29 : vector<1x1x2x16xf32> to vector<2x16xf32>
    %31 = vector.shape_cast %28 : vector<2x16xf32> to vector<1x1x2x16xf32>
    tpu.vector_store %arg6[%c0_7, %c0_8, %c0_9, %c0_10], %31 {strides = array<i32>} : memref<1x1x2x128xf32, #tpu.memory_space<vmem>>, vector<1x1x2x16xf32>,
    %32 = vector.extract_strided_slice %6 {offsets = [1, 0], sizes = [2, 16], strides = [1, 1]} : vector<4x16xf32> to vector<2x16xf32>
    %33 = vector.extract_strided_slice %9 {offsets = [10, 0], sizes = [1, 16], strides = [1, 1]} : vector<32x16xf32> to vector<1x16xf32>
    %34 = vector.broadcast %33 : vector<1x16xf32> to vector<2x16xf32>
    %35 = arith.mulf %32, %34 : vector<2x16xf32>
    %36 = vector.extract_strided_slice %7 {offsets = [1, 0], sizes = [2, 16], strides = [1, 1]} : vector<4x16xf32> to vector<2x16xf32>
    %37 = vector.extract_strided_slice %9 {offsets = [11, 0], sizes = [1, 16], strides = [1, 1]} : vector<32x16xf32> to vector<1x16xf32>
    %38 = vector.broadcast %37 : vector<1x16xf32> to vector<2x16xf32>
    %39 = arith.mulf %36, %38 : vector<2x16xf32>
    %40 = arith.addf %35, %39 : vector<2x16xf32>
    %41 = vector.extract_strided_slice %6 {offsets = [0, 0], sizes = [2, 16], strides = [1, 1]} : vector<4x16xf32> to vector<2x16xf32>
    %42 = vector.extract_strided_slice %9 {offsets = [26, 0], sizes = [1, 16], strides = [1, 1]} : vector<32x16xf32> to vector<1x16xf32>
    %43 = vector.broadcast %42 : vector<1x16xf32> to vector<2x16xf32>
    %44 = arith.mulf %41, %43 : vector<2x16xf32>
    %45 = arith.addf %40, %44 : vector<2x16xf32>
    %46 = vector.extract_strided_slice %7 {offsets = [0, 0], sizes = [2, 16], strides = [1, 1]} : vector<4x16xf32> to vector<2x16xf32>
    %47 = vector.extract_strided_slice %9 {offsets = [27, 0], sizes = [1, 16], strides = [1, 1]} : vector<32x16xf32> to vector<1x16xf32>
    %48 = vector.broadcast %47 : vector<1x16xf32> to vector<2x16xf32>
    %49 = arith.mulf %46, %48 : vector<2x16xf32>
    %50 = arith.addf %45, %49 : vector<2x16xf32>
    %c0_11 = arith.constant 0 : index
    %c0_12 = arith.constant 0 : index
    %c0_13 = arith.constant 0 : index
    %c16 = arith.constant 16 : index
    %51 = vector.load %arg6[%c0_11, %c0_12, %c0_13, %c16] : memref<1x1x2x128xf32, #tpu.memory_space<vmem>>, vector<1x1x2x16xf32>
    %52 = vector.shape_cast %51 : vector<1x1x2x16xf32> to vector<2x16xf32>
    %53 = vector.shape_cast %50 : vector<2x16xf32> to vector<1x1x2x16xf32>
    tpu.vector_store %arg6[%c0_11, %c0_12, %c0_13, %c16], %53 {strides = array<i32>} : memref<1x1x2x128xf32, #tpu.memory_space<vmem>>, vector<1x1x2x16xf32>,
    %54 = vector.extract_strided_slice %6 {offsets = [1, 0], sizes = [2, 16], strides = [1, 1]} : vector<4x16xf32> to vector<2x16xf32>
    %55 = vector.extract_strided_slice %9 {offsets = [12, 0], sizes = [1, 16], strides = [1, 1]} : vector<32x16xf32> to vector<1x16xf32>
    %56 = vector.broadcast %55 : vector<1x16xf32> to vector<2x16xf32>
    %57 = arith.mulf %54, %56 : vector<2x16xf32>
    %58 = vector.extract_strided_slice %7 {offsets = [1, 0], sizes = [2, 16], strides = [1, 1]} : vector<4x16xf32> to vector<2x16xf32>
    %59 = vector.extract_strided_slice %9 {offsets = [13, 0], sizes = [1, 16], strides = [1, 1]} : vector<32x16xf32> to vector<1x16xf32>
    %60 = vector.broadcast %59 : vector<1x16xf32> to vector<2x16xf32>
    %61 = arith.mulf %58, %60 : vector<2x16xf32>
    %62 = arith.addf %57, %61 : vector<2x16xf32>
    %63 = vector.extract_strided_slice %6 {offsets = [0, 0], sizes = [2, 16], strides = [1, 1]} : vector<4x16xf32> to vector<2x16xf32>
    %64 = vector.extract_strided_slice %9 {offsets = [28, 0], sizes = [1, 16], strides = [1, 1]} : vector<32x16xf32> to vector<1x16xf32>
    %65 = vector.broadcast %64 : vector<1x16xf32> to vector<2x16xf32>
    %66 = arith.mulf %63, %65 : vector<2x16xf32>
    %67 = arith.addf %62, %66 : vector<2x16xf32>
    %68 = vector.extract_strided_slice %7 {offsets = [0, 0], sizes = [2, 16], strides = [1, 1]} : vector<4x16xf32> to vector<2x16xf32>
    %69 = vector.extract_strided_slice %9 {offsets = [29, 0], sizes = [1, 16], strides = [1, 1]} : vector<32x16xf32> to vector<1x16xf32>
    %70 = vector.broadcast %69 : vector<1x16xf32> to vector<2x16xf32>
    %71 = arith.mulf %68, %70 : vector<2x16xf32>
    %72 = arith.addf %67, %71 : vector<2x16xf32>
    %c0_14 = arith.constant 0 : index
    %c0_15 = arith.constant 0 : index
    %c0_16 = arith.constant 0 : index
    %c32 = arith.constant 32 : index
    %73 = vector.load %arg6[%c0_14, %c0_15, %c0_16, %c32] : memref<1x1x2x128xf32, #tpu.memory_space<vmem>>, vector<1x1x2x16xf32>
    %74 = vector.shape_cast %73 : vector<1x1x2x16xf32> to vector<2x16xf32>
    %75 = vector.shape_cast %72 : vector<2x16xf32> to vector<1x1x2x16xf32>
    tpu.vector_store %arg6[%c0_14, %c0_15, %c0_16, %c32], %75 {strides = array<i32>} : memref<1x1x2x128xf32, #tpu.memory_space<vmem>>, vector<1x1x2x16xf32>,
    %76 = vector.extract_strided_slice %6 {offsets = [1, 0], sizes = [2, 16], strides = [1, 1]} : vector<4x16xf32> to vector<2x16xf32>
    %77 = vector.extract_strided_slice %9 {offsets = [14, 0], sizes = [1, 16], strides = [1, 1]} : vector<32x16xf32> to vector<1x16xf32>
    %78 = vector.broadcast %77 : vector<1x16xf32> to vector<2x16xf32>
    %79 = arith.mulf %76, %78 : vector<2x16xf32>
    %80 = vector.extract_strided_slice %7 {offsets = [1, 0], sizes = [2, 16], strides = [1, 1]} : vector<4x16xf32> to vector<2x16xf32>
    %81 = vector.extract_strided_slice %9 {offsets = [15, 0], sizes = [1, 16], strides = [1, 1]} : vector<32x16xf32> to vector<1x16xf32>
    %82 = vector.broadcast %81 : vector<1x16xf32> to vector<2x16xf32>
    %83 = arith.mulf %80, %82 : vector<2x16xf32>
    %84 = arith.addf %79, %83 : vector<2x16xf32>
    %85 = vector.extract_strided_slice %6 {offsets = [0, 0], sizes = [2, 16], strides = [1, 1]} : vector<4x16xf32> to vector<2x16xf32>
    %86 = vector.extract_strided_slice %9 {offsets = [30, 0], sizes = [1, 16], strides = [1, 1]} : vector<32x16xf32> to vector<1x16xf32>
    %87 = vector.broadcast %86 : vector<1x16xf32> to vector<2x16xf32>
    %88 = arith.mulf %85, %87 : vector<2x16xf32>
    %89 = arith.addf %84, %88 : vector<2x16xf32>
    %90 = vector.extract_strided_slice %7 {offsets = [0, 0], sizes = [2, 16], strides = [1, 1]} : vector<4x16xf32> to vector<2x16xf32>
    %91 = vector.extract_strided_slice %9 {offsets = [31, 0], sizes = [1, 16], strides = [1, 1]} : vector<32x16xf32> to vector<1x16xf32>
    %92 = vector.broadcast %91 : vector<1x16xf32> to vector<2x16xf32>
    %93 = arith.mulf %90, %92 : vector<2x16xf32>
    %94 = arith.addf %89, %93 : vector<2x16xf32>
    %c0_17 = arith.constant 0 : index
    %c0_18 = arith.constant 0 : index
    %c0_19 = arith.constant 0 : index
    %c48 = arith.constant 48 : index
    %95 = vector.load %arg6[%c0_17, %c0_18, %c0_19, %c48] : memref<1x1x2x128xf32, #tpu.memory_space<vmem>>, vector<1x1x2x16xf32>
    %96 = vector.shape_cast %95 : vector<1x1x2x16xf32> to vector<2x16xf32>
    %97 = vector.shape_cast %94 : vector<2x16xf32> to vector<1x1x2x16xf32>
    tpu.vector_store %arg6[%c0_17, %c0_18, %c0_19, %c48], %97 {strides = array<i32>} : memref<1x1x2x128xf32, #tpu.memory_space<vmem>>, vector<1x1x2x16xf32>,
    %98 = vector.extract_strided_slice %6 {offsets = [2, 0], sizes = [2, 16], strides = [1, 1]} : vector<4x16xf32> to vector<2x16xf32>
    %99 = vector.extract_strided_slice %9 {offsets = [0, 0], sizes = [1, 16], strides = [1, 1]} : vector<32x16xf32> to vector<1x16xf32>
    %100 = vector.broadcast %99 : vector<1x16xf32> to vector<2x16xf32>
    %101 = arith.mulf %98, %100 : vector<2x16xf32>
    %102 = vector.extract_strided_slice %7 {offsets = [2, 0], sizes = [2, 16], strides = [1, 1]} : vector<4x16xf32> to vector<2x16xf32>
    %103 = vector.extract_strided_slice %9 {offsets = [1, 0], sizes = [1, 16], strides = [1, 1]} : vector<32x16xf32> to vector<1x16xf32>
    %104 = vector.broadcast %103 : vector<1x16xf32> to vector<2x16xf32>
    %105 = arith.mulf %102, %104 : vector<2x16xf32>
    %106 = arith.addf %101, %105 : vector<2x16xf32>
    %107 = vector.extract_strided_slice %6 {offsets = [1, 0], sizes = [2, 16], strides = [1, 1]} : vector<4x16xf32> to vector<2x16xf32>
    %108 = vector.extract_strided_slice %9 {offsets = [16, 0], sizes = [1, 16], strides = [1, 1]} : vector<32x16xf32> to vector<1x16xf32>
    %109 = vector.broadcast %108 : vector<1x16xf32> to vector<2x16xf32>
    %110 = arith.mulf %107, %109 : vector<2x16xf32>
    %111 = arith.addf %106, %110 : vector<2x16xf32>
    %112 = vector.extract_strided_slice %7 {offsets = [1, 0], sizes = [2, 16], strides = [1, 1]} : vector<4x16xf32> to vector<2x16xf32>
    %113 = vector.extract_strided_slice %9 {offsets = [17, 0], sizes = [1, 16], strides = [1, 1]} : vector<32x16xf32> to vector<1x16xf32>
    %114 = vector.broadcast %113 : vector<1x16xf32> to vector<2x16xf32>
    %115 = arith.mulf %112, %114 : vector<2x16xf32>
    %116 = arith.addf %111, %115 : vector<2x16xf32>
    %c0_20 = arith.constant 0 : index
    %c0_21 = arith.constant 0 : index
    %c0_22 = arith.constant 0 : index
    %c64 = arith.constant 64 : index
    %117 = vector.load %arg6[%c0_20, %c0_21, %c0_22, %c64] : memref<1x1x2x128xf32, #tpu.memory_space<vmem>>, vector<1x1x2x16xf32>
    %118 = vector.shape_cast %117 : vector<1x1x2x16xf32> to vector<2x16xf32>
    %119 = vector.shape_cast %116 : vector<2x16xf32> to vector<1x1x2x16xf32>
    tpu.vector_store %arg6[%c0_20, %c0_21, %c0_22, %c64], %119 {strides = array<i32>} : memref<1x1x2x128xf32, #tpu.memory_space<vmem>>, vector<1x1x2x16xf32>,
    %120 = vector.extract_strided_slice %6 {offsets = [2, 0], sizes = [2, 16], strides = [1, 1]} : vector<4x16xf32> to vector<2x16xf32>
    %121 = vector.extract_strided_slice %9 {offsets = [2, 0], sizes = [1, 16], strides = [1, 1]} : vector<32x16xf32> to vector<1x16xf32>
    %122 = vector.broadcast %121 : vector<1x16xf32> to vector<2x16xf32>
    %123 = arith.mulf %120, %122 : vector<2x16xf32>
    %124 = vector.extract_strided_slice %7 {offsets = [2, 0], sizes = [2, 16], strides = [1, 1]} : vector<4x16xf32> to vector<2x16xf32>
    %125 = vector.extract_strided_slice %9 {offsets = [3, 0], sizes = [1, 16], strides = [1, 1]} : vector<32x16xf32> to vector<1x16xf32>
    %126 = vector.broadcast %125 : vector<1x16xf32> to vector<2x16xf32>
    %127 = arith.mulf %124, %126 : vector<2x16xf32>
    %128 = arith.addf %123, %127 : vector<2x16xf32>
    %129 = vector.extract_strided_slice %6 {offsets = [1, 0], sizes = [2, 16], strides = [1, 1]} : vector<4x16xf32> to vector<2x16xf32>
    %130 = vector.extract_strided_slice %9 {offsets = [18, 0], sizes = [1, 16], strides = [1, 1]} : vector<32x16xf32> to vector<1x16xf32>
    %131 = vector.broadcast %130 : vector<1x16xf32> to vector<2x16xf32>
    %132 = arith.mulf %129, %131 : vector<2x16xf32>
    %133 = arith.addf %128, %132 : vector<2x16xf32>
    %134 = vector.extract_strided_slice %7 {offsets = [1, 0], sizes = [2, 16], strides = [1, 1]} : vector<4x16xf32> to vector<2x16xf32>
    %135 = vector.extract_strided_slice %9 {offsets = [19, 0], sizes = [1, 16], strides = [1, 1]} : vector<32x16xf32> to vector<1x16xf32>
    %136 = vector.broadcast %135 : vector<1x16xf32> to vector<2x16xf32>
    %137 = arith.mulf %134, %136 : vector<2x16xf32>
    %138 = arith.addf %133, %137 : vector<2x16xf32>
    %c0_23 = arith.constant 0 : index
    %c0_24 = arith.constant 0 : index
    %c0_25 = arith.constant 0 : index
    %c80 = arith.constant 80 : index
    %139 = vector.load %arg6[%c0_23, %c0_24, %c0_25, %c80] : memref<1x1x2x128xf32, #tpu.memory_space<vmem>>, vector<1x1x2x16xf32>
    %140 = vector.shape_cast %139 : vector<1x1x2x16xf32> to vector<2x16xf32>
    %141 = vector.shape_cast %138 : vector<2x16xf32> to vector<1x1x2x16xf32>
    tpu.vector_store %arg6[%c0_23, %c0_24, %c0_25, %c80], %141 {strides = array<i32>} : memref<1x1x2x128xf32, #tpu.memory_space<vmem>>, vector<1x1x2x16xf32>,
    %142 = vector.extract_strided_slice %6 {offsets = [2, 0], sizes = [2, 16], strides = [1, 1]} : vector<4x16xf32> to vector<2x16xf32>
    %143 = vector.extract_strided_slice %9 {offsets = [4, 0], sizes = [1, 16], strides = [1, 1]} : vector<32x16xf32> to vector<1x16xf32>
    %144 = vector.broadcast %143 : vector<1x16xf32> to vector<2x16xf32>
    %145 = arith.mulf %142, %144 : vector<2x16xf32>
    %146 = vector.extract_strided_slice %7 {offsets = [2, 0], sizes = [2, 16], strides = [1, 1]} : vector<4x16xf32> to vector<2x16xf32>
    %147 = vector.extract_strided_slice %9 {offsets = [5, 0], sizes = [1, 16], strides = [1, 1]} : vector<32x16xf32> to vector<1x16xf32>
    %148 = vector.broadcast %147 : vector<1x16xf32> to vector<2x16xf32>
    %149 = arith.mulf %146, %148 : vector<2x16xf32>
    %150 = arith.addf %145, %149 : vector<2x16xf32>
    %151 = vector.extract_strided_slice %6 {offsets = [1, 0], sizes = [2, 16], strides = [1, 1]} : vector<4x16xf32> to vector<2x16xf32>
    %152 = vector.extract_strided_slice %9 {offsets = [20, 0], sizes = [1, 16], strides = [1, 1]} : vector<32x16xf32> to vector<1x16xf32>
    %153 = vector.broadcast %152 : vector<1x16xf32> to vector<2x16xf32>
    %154 = arith.mulf %151, %153 : vector<2x16xf32>
    %155 = arith.addf %150, %154 : vector<2x16xf32>
    %156 = vector.extract_strided_slice %7 {offsets = [1, 0], sizes = [2, 16], strides = [1, 1]} : vector<4x16xf32> to vector<2x16xf32>
    %157 = vector.extract_strided_slice %9 {offsets = [21, 0], sizes = [1, 16], strides = [1, 1]} : vector<32x16xf32> to vector<1x16xf32>
    %158 = vector.broadcast %157 : vector<1x16xf32> to vector<2x16xf32>
    %159 = arith.mulf %156, %158 : vector<2x16xf32>
    %160 = arith.addf %155, %159 : vector<2x16xf32>
    %c0_26 = arith.constant 0 : index
    %c0_27 = arith.constant 0 : index
    %c0_28 = arith.constant 0 : index
    %c96 = arith.constant 96 : index
    %161 = vector.load %arg6[%c0_26, %c0_27, %c0_28, %c96] : memref<1x1x2x128xf32, #tpu.memory_space<vmem>>, vector<1x1x2x16xf32>
    %162 = vector.shape_cast %161 : vector<1x1x2x16xf32> to vector<2x16xf32>
    %163 = vector.shape_cast %160 : vector<2x16xf32> to vector<1x1x2x16xf32>
    tpu.vector_store %arg6[%c0_26, %c0_27, %c0_28, %c96], %163 {strides = array<i32>} : memref<1x1x2x128xf32, #tpu.memory_space<vmem>>, vector<1x1x2x16xf32>,
    %164 = vector.extract_strided_slice %6 {offsets = [2, 0], sizes = [2, 16], strides = [1, 1]} : vector<4x16xf32> to vector<2x16xf32>
    %165 = vector.extract_strided_slice %9 {offsets = [6, 0], sizes = [1, 16], strides = [1, 1]} : vector<32x16xf32> to vector<1x16xf32>
    %166 = vector.broadcast %165 : vector<1x16xf32> to vector<2x16xf32>
    %167 = arith.mulf %164, %166 : vector<2x16xf32>
    %168 = vector.extract_strided_slice %7 {offsets = [2, 0], sizes = [2, 16], strides = [1, 1]} : vector<4x16xf32> to vector<2x16xf32>
    %169 = vector.extract_strided_slice %9 {offsets = [7, 0], sizes = [1, 16], strides = [1, 1]} : vector<32x16xf32> to vector<1x16xf32>
    %170 = vector.broadcast %169 : vector<1x16xf32> to vector<2x16xf32>
    %171 = arith.mulf %168, %170 : vector<2x16xf32>
    %172 = arith.addf %167, %171 : vector<2x16xf32>
    %173 = vector.extract_strided_slice %6 {offsets = [1, 0], sizes = [2, 16], strides = [1, 1]} : vector<4x16xf32> to vector<2x16xf32>
    %174 = vector.extract_strided_slice %9 {offsets = [22, 0], sizes = [1, 16], strides = [1, 1]} : vector<32x16xf32> to vector<1x16xf32>
    %175 = vector.broadcast %174 : vector<1x16xf32> to vector<2x16xf32>
    %176 = arith.mulf %173, %175 : vector<2x16xf32>
    %177 = arith.addf %172, %176 : vector<2x16xf32>
    %178 = vector.extract_strided_slice %7 {offsets = [1, 0], sizes = [2, 16], strides = [1, 1]} : vector<4x16xf32> to vector<2x16xf32>
    %179 = vector.extract_strided_slice %9 {offsets = [23, 0], sizes = [1, 16], strides = [1, 1]} : vector<32x16xf32> to vector<1x16xf32>
    %180 = vector.broadcast %179 : vector<1x16xf32> to vector<2x16xf32>
    %181 = arith.mulf %178, %180 : vector<2x16xf32>
    %182 = arith.addf %177, %181 : vector<2x16xf32>
    %c0_29 = arith.constant 0 : index
    %c0_30 = arith.constant 0 : index
    %c0_31 = arith.constant 0 : index
    %c112 = arith.constant 112 : index
    %183 = vector.load %arg6[%c0_29, %c0_30, %c0_31, %c112] : memref<1x1x2x128xf32, #tpu.memory_space<vmem>>, vector<1x1x2x16xf32>
    %184 = vector.shape_cast %183 : vector<1x1x2x16xf32> to vector<2x16xf32>
    %185 = vector.shape_cast %182 : vector<2x16xf32> to vector<1x1x2x16xf32>
    tpu.vector_store %arg6[%c0_29, %c0_30, %c0_31, %c112], %185 {strides = array<i32>} : memref<1x1x2x128xf32, #tpu.memory_space<vmem>>, vector<1x1x2x16xf32>,
    return
  }
  func.func @transform_0(%arg0: i32, %arg1: i32, %arg2: i32) -> (i32, i32, i32, i32) {
    %c0_i32 = arith.constant 0 : i32
    %c0_i32_0 = arith.constant 0 : i32
    %c0_i32_1 = arith.constant 0 : i32
    return %arg0, %arg1, %c0_i32, %c0_i32_0 : i32, i32, i32, i32
  }
  func.func @transform_1(%arg0: i32, %arg1: i32, %arg2: i32) -> (i32, i32) {
    %c0_i32 = arith.constant 0 : i32
    %c0_i32_0 = arith.constant 0 : i32
    %c0_i32_1 = arith.constant 0 : i32
    return %c0_i32, %c0_i32_0 : i32, i32
  }
  func.func @transform_2(%arg0: i32, %arg1: i32, %arg2: i32) -> (i32, i32, i32) {
    %c0_i32 = arith.constant 0 : i32
    %c0_i32_0 = arith.constant 0 : i32
    %c0_i32_1 = arith.constant 0 : i32
    return %arg1, %c0_i32, %c0_i32_0 : i32, i32, i32
  }
  func.func @transform_3(%arg0: i32, %arg1: i32, %arg2: i32) -> (i32, i32, i32, i32) {
    %c0_i32 = arith.constant 0 : i32
    %c0_i32_0 = arith.constant 0 : i32
    return %arg0, %arg1, %arg2, %c0_i32 : i32, i32, i32, i32
  }
}

module attributes {stable_mosaic.version = 11 : i64} {
  func.func @_fusion_kernel(%arg0: i32, %arg1: i32, %arg2: memref<1x20x16x16xf32, #tpu.memory_space<vmem>>, %arg3: memref<1x16x16xf32, #tpu.memory_space<vmem>>, %arg4: memref<1x16x16xf32, #tpu.memory_space<vmem>>, %arg5: memref<1x4x16x16xf32, #tpu.memory_space<vmem>>, %arg6: memref<4x1x1xf32, #tpu.memory_space<vmem>>, %arg7: memref<1x1x1xf32, #tpu.memory_space<vmem>>, %arg8: memref<5x20x1x1xf32, #tpu.memory_space<vmem>>, %arg9: memref<1x20x16x16xf32, #tpu.memory_space<vmem>>) attributes {dimension_semantics = [#tpu.dimension_semantics<parallel>, #tpu.dimension_semantics<parallel>], iteration_bounds = array<i64: 2, 1>, scalar_prefetch = 0 : i64, scratch_operands = 0 : i64, tpu.core_type = #tpu.core_type<tc>, window_params = [{transform_indices = @transform_0, window_bounds = array<i64: 1, 20, 16, 16>}, {transform_indices = @transform_1, window_bounds = array<i64: 1, 16, 16>}, {transform_indices = @transform_2, window_bounds = array<i64: 1, 16, 16>}, {transform_indices = @transform_3, window_bounds = array<i64: 1, 4, 16, 16>}, {pipeline_mode = #tpu.pipeline_mode<synchronous>, transform_indices = @transform_4, window_bounds = array<i64: 4, 1, 1>}, {pipeline_mode = #tpu.pipeline_mode<synchronous>, transform_indices = @transform_5, window_bounds = array<i64: 1, 1, 1>}, {pipeline_mode = #tpu.pipeline_mode<synchronous>, transform_indices = @transform_6, window_bounds = array<i64: 5, 20, 1, 1>}, {transform_indices = @transform_7, window_bounds = array<i64: 1, 20, 16, 16>}]} {
    %c0 = arith.constant 0 : index
    %c0_0 = arith.constant 0 : index
    %c0_1 = arith.constant 0 : index
    %c0_2 = arith.constant 0 : index
    %0 = vector.load %arg5[%c0, %c0_0, %c0_1, %c0_2] : memref<1x4x16x16xf32, #tpu.memory_space<vmem>>, vector<1x4x16x16xf32>
    %1 = vector.shape_cast %0 : vector<1x4x16x16xf32> to vector<4x16x16xf32>
    %c0_3 = arith.constant 0 : index
    %c0_4 = arith.constant 0 : index
    %c0_5 = arith.constant 0 : index
    %2 = vector.load %arg6[%c0_3, %c0_4, %c0_5] : memref<4x1x1xf32, #tpu.memory_space<vmem>>, vector<4x1x1xf32>
    %3 = vector.broadcast %2 : vector<4x1x1xf32> to vector<4x16x16xf32>
    %4 = arith.mulf %1, %3 : vector<4x16x16xf32>
    %cst = arith.constant dense<0.000000e+00> : vector<16x16xf32>
    %5 = vector.multi_reduction <add>, %4, %cst [0] : vector<4x16x16xf32> to vector<16x16xf32>
    %c0_6 = arith.constant 0 : index
    %c0_7 = arith.constant 0 : index
    %c0_8 = arith.constant 0 : index
    %6 = vector.load %arg7[%c0_6, %c0_7, %c0_8] : memref<1x1x1xf32, #tpu.memory_space<vmem>>, vector<1x1x1xf32>
    %7 = vector.shape_cast %6 : vector<1x1x1xf32> to vector<1x1xf32>
    %8 = vector.broadcast %7 : vector<1x1xf32> to vector<16x16xf32>
    %9 = arith.addf %5, %8 : vector<16x16xf32>
    %c0_9 = arith.constant 0 : index
    %c0_10 = arith.constant 0 : index
    %c0_11 = arith.constant 0 : index
    %c0_12 = arith.constant 0 : index
    %10 = vector.load %arg2[%c0_9, %c0_10, %c0_11, %c0_12] : memref<1x20x16x16xf32, #tpu.memory_space<vmem>>, vector<1x20x16x16xf32>
    %11 = vector.shape_cast %10 : vector<1x20x16x16xf32> to vector<20x16x16xf32>
    %c0_13 = arith.constant 0 : index
    %c0_14 = arith.constant 0 : index
    %c0_15 = arith.constant 0 : index
    %12 = vector.load %arg3[%c0_13, %c0_14, %c0_15] : memref<1x16x16xf32, #tpu.memory_space<vmem>>, vector<1x16x16xf32>
    %c0_16 = arith.constant 0 : index
    %c0_17 = arith.constant 0 : index
    %c0_18 = arith.constant 0 : index
    %13 = vector.load %arg4[%c0_16, %c0_17, %c0_18] : memref<1x16x16xf32, #tpu.memory_space<vmem>>, vector<1x16x16xf32>
    %c0_19 = arith.constant 0 : index
    %c0_20 = arith.constant 0 : index
    %c0_21 = arith.constant 0 : index
    %c0_22 = arith.constant 0 : index
    %14 = vector.load %arg8[%c0_19, %c0_20, %c0_21, %c0_22] : memref<5x20x1x1xf32, #tpu.memory_space<vmem>>, vector<5x20x1x1xf32>
    %15 = vector.extract_strided_slice %14 {offsets = [0, 0, 0, 0], sizes = [1, 20, 1, 1], strides = [1, 1, 1, 1]} : vector<5x20x1x1xf32> to vector<1x20x1x1xf32>
    %16 = vector.shape_cast %15 : vector<1x20x1x1xf32> to vector<20x1x1xf32>
    %17 = vector.broadcast %16 : vector<20x1x1xf32> to vector<20x16x16xf32>
    %18 = arith.mulf %11, %17 : vector<20x16x16xf32>
    %19 = vector.shape_cast %9 : vector<16x16xf32> to vector<1x16x16xf32>
    %20 = vector.extract_strided_slice %14 {offsets = [1, 0, 0, 0], sizes = [1, 20, 1, 1], strides = [1, 1, 1, 1]} : vector<5x20x1x1xf32> to vector<1x20x1x1xf32>
    %21 = vector.shape_cast %20 : vector<1x20x1x1xf32> to vector<20x1x1xf32>
    %22 = vector.broadcast %19 : vector<1x16x16xf32> to vector<20x16x16xf32>
    %23 = vector.broadcast %21 : vector<20x1x1xf32> to vector<20x16x16xf32>
    %24 = arith.mulf %22, %23 : vector<20x16x16xf32>
    %25 = arith.addf %18, %24 : vector<20x16x16xf32>
    %26 = vector.extract_strided_slice %14 {offsets = [2, 0, 0, 0], sizes = [1, 20, 1, 1], strides = [1, 1, 1, 1]} : vector<5x20x1x1xf32> to vector<1x20x1x1xf32>
    %27 = vector.shape_cast %26 : vector<1x20x1x1xf32> to vector<20x1x1xf32>
    %28 = vector.broadcast %12 : vector<1x16x16xf32> to vector<20x16x16xf32>
    %29 = vector.broadcast %27 : vector<20x1x1xf32> to vector<20x16x16xf32>
    %30 = arith.mulf %28, %29 : vector<20x16x16xf32>
    %31 = arith.addf %25, %30 : vector<20x16x16xf32>
    %32 = vector.extract_strided_slice %14 {offsets = [3, 0, 0, 0], sizes = [1, 20, 1, 1], strides = [1, 1, 1, 1]} : vector<5x20x1x1xf32> to vector<1x20x1x1xf32>
    %33 = vector.shape_cast %32 : vector<1x20x1x1xf32> to vector<20x1x1xf32>
    %34 = vector.broadcast %13 : vector<1x16x16xf32> to vector<20x16x16xf32>
    %35 = vector.broadcast %33 : vector<20x1x1xf32> to vector<20x16x16xf32>
    %36 = arith.mulf %34, %35 : vector<20x16x16xf32>
    %37 = arith.addf %31, %36 : vector<20x16x16xf32>
    %38 = vector.extract_strided_slice %14 {offsets = [4, 0, 0, 0], sizes = [1, 20, 1, 1], strides = [1, 1, 1, 1]} : vector<5x20x1x1xf32> to vector<1x20x1x1xf32>
    %39 = vector.shape_cast %38 : vector<1x20x1x1xf32> to vector<20x1x1xf32>
    %40 = vector.broadcast %39 : vector<20x1x1xf32> to vector<20x16x16xf32>
    %41 = arith.addf %37, %40 : vector<20x16x16xf32>
    %c0_23 = arith.constant 0 : index
    %c0_24 = arith.constant 0 : index
    %c0_25 = arith.constant 0 : index
    %c0_26 = arith.constant 0 : index
    %42 = vector.load %arg9[%c0_23, %c0_24, %c0_25, %c0_26] : memref<1x20x16x16xf32, #tpu.memory_space<vmem>>, vector<1x20x16x16xf32>
    %43 = vector.shape_cast %42 : vector<1x20x16x16xf32> to vector<20x16x16xf32>
    %44 = vector.shape_cast %41 : vector<20x16x16xf32> to vector<1x20x16x16xf32>
    tpu.vector_store %arg9[%c0_23, %c0_24, %c0_25, %c0_26], %44 {strides = array<i32>} : memref<1x20x16x16xf32, #tpu.memory_space<vmem>>, vector<1x20x16x16xf32>,
    return
  }
  func.func @transform_0(%arg0: i32, %arg1: i32) -> (i32, i32, i32, i32) {
    %c0_i32 = arith.constant 0 : i32
    %c0_i32_0 = arith.constant 0 : i32
    %c0_i32_1 = arith.constant 0 : i32
    return %arg0, %c0_i32, %arg1, %c0_i32_0 : i32, i32, i32, i32
  }
  func.func @transform_1(%arg0: i32, %arg1: i32) -> (i32, i32, i32) {
    %c0_i32 = arith.constant 0 : i32
    %c0_i32_0 = arith.constant 0 : i32
    return %arg0, %arg1, %c0_i32 : i32, i32, i32
  }
  func.func @transform_2(%arg0: i32, %arg1: i32) -> (i32, i32, i32) {
    %c0_i32 = arith.constant 0 : i32
    %c0_i32_0 = arith.constant 0 : i32
    return %arg0, %arg1, %c0_i32 : i32, i32, i32
  }
  func.func @transform_3(%arg0: i32, %arg1: i32) -> (i32, i32, i32, i32) {
    %c0_i32 = arith.constant 0 : i32
    %c0_i32_0 = arith.constant 0 : i32
    %c0_i32_1 = arith.constant 0 : i32
    return %arg0, %c0_i32, %arg1, %c0_i32_0 : i32, i32, i32, i32
  }
  func.func @transform_4(%arg0: i32, %arg1: i32) -> (i32, i32, i32) {
    %c0_i32 = arith.constant 0 : i32
    %c0_i32_0 = arith.constant 0 : i32
    %c0_i32_1 = arith.constant 0 : i32
    %c0_i32_2 = arith.constant 0 : i32
    return %c0_i32, %c0_i32_0, %c0_i32_1 : i32, i32, i32
  }
  func.func @transform_5(%arg0: i32, %arg1: i32) -> (i32, i32, i32) {
    %c0_i32 = arith.constant 0 : i32
    %c0_i32_0 = arith.constant 0 : i32
    %c0_i32_1 = arith.constant 0 : i32
    %c0_i32_2 = arith.constant 0 : i32
    return %c0_i32, %c0_i32_0, %c0_i32_1 : i32, i32, i32
  }
  func.func @transform_6(%arg0: i32, %arg1: i32) -> (i32, i32, i32, i32) {
    %c0_i32 = arith.constant 0 : i32
    %c0_i32_0 = arith.constant 0 : i32
    %c0_i32_1 = arith.constant 0 : i32
    %c0_i32_2 = arith.constant 0 : i32
    %c0_i32_3 = arith.constant 0 : i32
    return %c0_i32, %c0_i32_0, %c0_i32_1, %c0_i32_2 : i32, i32, i32, i32
  }
  func.func @transform_7(%arg0: i32, %arg1: i32) -> (i32, i32, i32, i32) {
    %c0_i32 = arith.constant 0 : i32
    %c0_i32_0 = arith.constant 0 : i32
    %c0_i32_1 = arith.constant 0 : i32
    return %arg0, %c0_i32, %arg1, %c0_i32_0 : i32, i32, i32, i32
  }
}

</mosaic_0001>

<llo_original>
// kernel: casenet_forward.9
$region0: #{casenet_forward.9}
  #allocation0 [shape = 'u32[]', space=smem, size = 0x4, offset = 0x4, fixed_abs, tag = 'smem constant byte address 0x4 - core index']
  #allocation1 [shape = 'u32[144,128]{1,0:T(1,128)}', space=vmem, size = 0x12000, scoped, tag = 'internal scratch']
  #allocation2 [shape = 'f32[1,1]{1,0:T(1,128)S(1)}', space=vmem, size = 0x200, scoped, tag = 'scoped memory for casenet_forward.9']
  %s0 = inlined_call_operand.vmem [shape: f32[2,8,16], index: 0, kind: input, shape index: {}]
  %s1 = inlined_call_operand.vmem [shape: f32[8,1], index: 1, kind: input, shape index: {}]
  %s2 = inlined_call_operand.<no memory space> [shape: f32[1,1], index: 2, kind: input, shape index: {}]
  %s3 = inlined_call_operand.vmem [shape: f32[2,1,16], index: 3, kind: output, shape index: {}]
  %s4 = sld [smem:[#allocation0]]
  $region45: #{casenet_forward.9} parent=0
    _
  %s6 = ssub.s32 1, %s4
  %s7 = scalar_select 0, %s6, %s4
  %v8 = vstv %s2
  %9 = vst [vmem:[#allocation2] sm:$0x1] %v8
  loop: start=0, step=1, limit=4
  $region2: #{casenet_forward.9} parent=0 // loop_pre_header
    _
  $region3: #{casenet_forward.9} parent=0 // loop_header
    %s11 = sphi 0, %s15
    %p12 = scmp.ge.s32.totalorder %s11, 4
    %s18 = sphi 0, %s30
    %s19 = sphi 0, %s26
    %s20 = sphi 0, %s18
    %s21 = sphi 0, %s19
    %s22 = sphi 0, %s20
    %s23 = sphi 0, %s21
    %s35 = sphi 0, %s37
    %s38 = sphi 0, %s35
    %s39 = sphi 0, %s38
    %s55 = sphi 0, %s39
    %s59 = sphi 0, %s59
    %s61 = sphi 0, %s59
    %s62 = sphi 0, %s61
    %s76 = sphi 0, %s62
    %s80 = sphi 0, %s80
    %s82 = sphi 0, %s80
    %s83 = sphi 0, %s82
    %s97 = sphi 0, %s83
    %s105 = sphi 0, %s107
    %s108 = sphi 0, %s105
    %s109 = sphi 0, %s108
    %s125 = sphi 0, %s109
  $region4: #{casenet_forward.9} parent=0 // loop_header_branch
    %14 = sbr.rel (%p12) target = $region8
  $region5: #{casenet_forward.9} parent=0 // loop_body
    %s16 = ssub.s32 %s11, 1
    %s17 = ssub.s32 %s11, 2
    %s24 = sadd.s32 1, %s19
    %p25 = scmp.ge.s32.totalorder %s24, 1
    %s26 = scalar_select %p25, 0, %s24
    %s27 = sadd.s32 1, %s18
    %s28 = scalar_select %p25, %s27, %s18
    %p29 = scmp.ge.s32.totalorder %s28, 2
    %s30 = scalar_select %p29, 0, %s28
    %s31 = ssub.s32 %s18, %s30
    %s32 = ssub.s32 %s19, %s26
    %s33 = sor.u32 %s31, %s32
    %p34 = scmp.eq.s32.totalorder %s33, 0
    %s36 = sadd.s32 %s35, 1
    %s37 = scalar_select %p34, %s35, %s36
    %p40 = pneg %p34
    %p41 = scmp.eq.s32.totalorder %s11, 1
    %p42 = por %p40, %p41
    %p43 = scmp.ne.s32.totalorder %s35, %s38
    %p44 = scmp.eq.s32.totalorder %s11, 0
    %p45 = por %p43, %p44
    %p46 = scmp.ne.s32.totalorder %s35, %s38
    %p47 = scmp.eq.s32.totalorder %s16, 1
    %p48 = por %p46, %p47
    %p49 = scmp.ne.s32.totalorder %s38, %s39
    %p50 = scmp.eq.s32.totalorder %s16, 0
    %p51 = por %p49, %p50
    %p52 = scmp.ne.s32.totalorder %s38, %s39
    %p53 = scmp.eq.s32.totalorder %s17, 1
    %p54 = por %p52, %p53
    %p56 = scmp.ne.s32.totalorder %s39, %s55
    %p57 = scmp.eq.s32.totalorder %s17, 0
    %p58 = por %p56, %p57
    %s60 = sadd.s32 %s59, 1
    %p63 = scmp.eq.s32.totalorder %s11, 1
    %p64 = scmp.ne.s32.totalorder %s59, %s61
    %p65 = scmp.eq.s32.totalorder %s11, 0
    %p66 = por %p64, %p65
    %p67 = scmp.ne.s32.totalorder %s59, %s61
    %p68 = scmp.eq.s32.totalorder %s16, 1
    %p69 = por %p67, %p68
    %p70 = scmp.ne.s32.totalorder %s61, %s62
    %p71 = scmp.eq.s32.totalorder %s16, 0
    %p72 = por %p70, %p71
    %p73 = scmp.ne.s32.totalorder %s61, %s62
    %p74 = scmp.eq.s32.totalorder %s17, 1
    %p75 = por %p73, %p74
    %p77 = scmp.ne.s32.totalorder %s62, %s76
    %p78 = scmp.eq.s32.totalorder %s17, 0
    %p79 = por %p77, %p78
    %s81 = sadd.s32 %s80, 1
    %p84 = scmp.eq.s32.totalorder %s11, 1
    %p85 = scmp.ne.s32.totalorder %s80, %s82
    %p86 = scmp.eq.s32.totalorder %s11, 0
    %p87 = por %p85, %p86
    %p88 = scmp.ne.s32.totalorder %s80, %s82
    %p89 = scmp.eq.s32.totalorder %s16, 1
    %p90 = por %p88, %p89
    %p91 = scmp.ne.s32.totalorder %s82, %s83
    %p92 = scmp.eq.s32.totalorder %s16, 0
    %p93 = por %p91, %p92
    %p94 = scmp.ne.s32.totalorder %s82, %s83
    %p95 = scmp.eq.s32.totalorder %s17, 1
    %p96 = por %p94, %p95
    %p98 = scmp.ne.s32.totalorder %s83, %s97
    %p99 = scmp.eq.s32.totalorder %s17, 0
    %p100 = por %p98, %p99
    %s101 = ssub.s32 %s18, %s30
    %s102 = ssub.s32 %s19, %s26
    %s103 = sor.u32 %s101, %s102
    %p104 = scmp.eq.s32.totalorder %s103, 0
    %s106 = sadd.s32 %s105, 1
    %s107 = scalar_select %p104, %s105, %s106
    %p110 = pneg %p104
    %p111 = scmp.eq.s32.totalorder %s11, 1
    %p112 = por %p110, %p111
    %p113 = scmp.ne.s32.totalorder %s105, %s108
    %p114 = scmp.eq.s32.totalorder %s11, 0
    %p115 = por %p113, %p114
    %p116 = scmp.ne.s32.totalorder %s105, %s108
    %p117 = scmp.eq.s32.totalorder %s16, 1
    %p118 = por %p116, %p117
    %p119 = scmp.ne.s32.totalorder %s108, %s109
    %p120 = scmp.eq.s32.totalorder %s16, 0
    %p121 = por %p119, %p120
    %p122 = scmp.ne.s32.totalorder %s108, %s109
    %p123 = scmp.eq.s32.totalorder %s17, 1
    %p124 = por %p122, %p123
    %p126 = scmp.ne.s32.totalorder %s109, %s125
    %p127 = scmp.eq.s32.totalorder %s17, 0
    %p128 = por %p126, %p127
    %p129 = scmp.le.s32.totalorder 1, %s11
    %p130 = scmp.lt.s32.totalorder %s11, 3
    %p131 = pnand %p129, %p130
    %p132 = pneg %p131
    // Predicated region
    $region9: #{casenet_forward.9} parent=5 // pred_check
      _
    $region10: #{casenet_forward.9} parent=5 // pred_check_branch
      %134 = sbr.rel (%p131) target = $region12
    $region11: #{casenet_forward.9} parent=5 // pred_region
      %s135 = ssub.s32 %s11, 1
      // Predicated region
      $region13: #{casenet_forward.9} parent=11 // pred_check
        %p136 = pneg %p72
      $region14: #{casenet_forward.9} parent=11 // pred_check_branch
        %138 = sbr.rel (%p136) target = $region16
      $region15: #{casenet_forward.9} parent=11 // pred_region
        _
      $region16: #{casenet_forward.9} parent=11 // pred_fallthru
        _
      // Predicated region
      $region17: #{casenet_forward.9} parent=11 // pred_check
        %p139 = pneg %p93
      $region18: #{casenet_forward.9} parent=11 // pred_check_branch
        %141 = sbr.rel (%p139) target = $region20
      $region19: #{casenet_forward.9} parent=11 // pred_region
        _
      $region20: #{casenet_forward.9} parent=11 // pred_fallthru
        _
    $region12: #{casenet_forward.9} parent=5 // pred_fallthru
      _
    %p142 = scmp.lt.s32.totalorder %s11, 2
    // Predicated region
    $region21: #{casenet_forward.9} parent=5 // pred_check
      %p143 = pneg %p142
    $region22: #{casenet_forward.9} parent=5 // pred_check_branch
      %145 = sbr.rel (%p143) target = $region24
    $region23: #{casenet_forward.9} parent=5 // pred_region
      // Predicated region
      $region25: #{casenet_forward.9} parent=23 // pred_check
        %p146 = pneg %p45
      $region26: #{casenet_forward.9} parent=23 // pred_check_branch
        %148 = sbr.rel (%p146) target = $region28
      $region27: #{casenet_forward.9} parent=23 // pred_region
        %p149 = scmp.lt.s32.totalorder %s18, 1
        %s150 = scalar_select %p149, %s18, 1
        %p151 = scmp.lt.s32.totalorder %s19, 0
        %s152 = scalar_select %p151, %s19, 0
        %s153 = sadd.s32 %s152, %s150
        %s154 = smul.addr %s153, 8
        %s155 = scalar_lea.vmem %s0, %s154
      $region28: #{casenet_forward.9} parent=23 // pred_fallthru
        _
    $region24: #{casenet_forward.9} parent=5 // pred_fallthru
      _
    %p156 = scmp.le.s32.totalorder 1, %s11
    %p157 = scmp.lt.s32.totalorder %s11, 3
    %p158 = pnand %p156, %p157
    %p159 = pneg %p158
    // Predicated region
    $region29: #{casenet_forward.9} parent=5 // pred_check
      _
    $region30: #{casenet_forward.9} parent=5 // pred_check_branch
      %161 = sbr.rel (%p158) target = $region32
    $region31: #{casenet_forward.9} parent=5 // pred_region
      %s162 = ssub.s32 %s11, 1
      %p163 = scmp.lt.s32.totalorder %s20, 1
      %s164 = scalar_select %p163, %s20, 1
      %p165 = scmp.lt.s32.totalorder %s21, 0
      %s166 = scalar_select %p165, %s21, 0
      %s167 = sadd.s32 %s166, %s164
      %s168 = smul.addr %s167, 8
      %s169 = scalar_lea.vmem %s0, %s168
      %p170 = pneg %p51
      %p171 = pneg %p48
      %p172 = pneg %p72
      %p173 = pneg %p69
      %p174 = pneg %p93
      %p175 = pneg %p90
      %p176 = pneg %p121
      %p177 = pneg %p118
      %p178 = scmp.lt.s32.totalorder %s20, 1
      %s179 = scalar_select %p178, %s20, 1
      %p180 = scmp.lt.s32.totalorder %s21, 0
      %s181 = scalar_select %p180, %s21, 0
      %s182 = sadd.s32 %s181, %s179
      %s183 = scalar_lea.vmem %s3, %s182
      %p184 = scmp.lt.s32.totalorder %s20, 1
      %s185 = scalar_select %p184, %s20, 1
      %p186 = scmp.lt.s32.totalorder %s21, 0
      %s187 = scalar_select %p186, %s21, 0
      %s188 = sadd.s32 %s187, %s185
      %s189 = smul.addr %s188, 8
      %s190 = scalar_lea.vmem %s0, %s189
      %p191 = scmp.lt.s32.totalorder %s20, 1
      %s192 = scalar_select %p191, %s20, 1
      %p193 = scmp.lt.s32.totalorder %s21, 0
      %s194 = scalar_select %p193, %s21, 0
      %s195 = sadd.s32 %s194, %s192
      %s196 = scalar_lea.vmem %s3, %s195
      %v197 = vld [vmem:[%s190] sm:$0xff]
      %v198 = vld [vmem:[%s1] sm:$0xff]
      %200 = vset.pattern.permute.xlu0 0
      %201 = vperm.xlu0 %200, %v198
      %v202 = vpop.permute.xlu0 %201
      %v204 = vmul.f32 %v197, %v202
      %vm205 = vcmask 130048
      %v206 = vsel %vm205, %v204, 0.0
      %v207 = vrot.slane %v206, 4
      %v208 = vadd.f32 %v206, %v207
      %v209 = vrot.slane %v208, 2
      %v210 = vadd.f32 %v208, %v209
      %v211 = vrot.slane %v210, 1
      %v212 = vadd.f32 %v210, %v211
      %v213 = vld [vmem:[#allocation2] sm:$0x1]
      %215 = vset.pattern.permute.xlu0 0
      %216 = vperm.xlu0 %215, %v213
      %v217 = vpop.permute.xlu0 %216
      %v219 = vlaneseq
      %v220 = vshrl.u32 %v219, 7
      %v221 = vsub.s32 0, %v220
      %v222 = vrot.slane %v217, %v221
      %v223 = vadd.f32 %v212, %v222
      %vm224 = vcmask 122880
      %225 = vst.msk [vmem:[%s196] sm:$0x1] %vm224, %v223
      %p226 = scmp.lt.s32.totalorder %s20, 1
      %s227 = scalar_select %p226, %s20, 1
      %p228 = scmp.lt.s32.totalorder %s21, 0
      %s229 = scalar_select %p228, %s21, 0
      %s230 = sadd.s32 %s229, %s227
      %s231 = scalar_lea.vmem %s3, %s230
      // Predicated region
      $region33: #{casenet_forward.9} parent=31 // pred_check
        %p232 = pneg %p118
      $region34: #{casenet_forward.9} parent=31 // pred_check_branch
        %234 = sbr.rel (%p232) target = $region36
      $region35: #{casenet_forward.9} parent=31 // pred_region
        _
      $region36: #{casenet_forward.9} parent=31 // pred_fallthru
        _
    $region32: #{casenet_forward.9} parent=5 // pred_fallthru
      _
    %p235 = scmp.le.s32.totalorder 2, %s11
    // Predicated region
    $region37: #{casenet_forward.9} parent=5 // pred_check
      %p236 = pneg %p235
    $region38: #{casenet_forward.9} parent=5 // pred_check_branch
      %238 = sbr.rel (%p236) target = $region40
    $region39: #{casenet_forward.9} parent=5 // pred_region
      %s239 = ssub.s32 %s11, 2
      // Predicated region
      $region41: #{casenet_forward.9} parent=39 // pred_check
        %p240 = pneg %p124
      $region42: #{casenet_forward.9} parent=39 // pred_check_branch
        %242 = sbr.rel (%p240) target = $region44
      $region43: #{casenet_forward.9} parent=39 // pred_region
        %p243 = scmp.lt.s32.totalorder %s22, 1
        %s244 = scalar_select %p243, %s22, 1
        %p245 = scmp.lt.s32.totalorder %s23, 0
        %s246 = scalar_select %p245, %s23, 0
        %s247 = sadd.s32 %s246, %s244
        %s248 = scalar_lea.vmem %s3, %s247
      $region44: #{casenet_forward.9} parent=39 // pred_fallthru
        _
    $region40: #{casenet_forward.9} parent=5 // pred_fallthru
      _
  $region6: #{casenet_forward.9} parent=0 // loop_footer
    %s15 = sadd.s32 1, %s11
  $region7: #{casenet_forward.9} parent=0 // loop_footer_branch
    %10 = sbr.rel target = $region3
  $region8: #{casenet_forward.9} parent=0 // loop_exit
    _

// kernel: casenet_forward.7
$region0: #{casenet_forward.7}
  #allocation0 [shape = 'u32[]', space=smem, size = 0x4, offset = 0x4, fixed_abs, tag = 'smem constant byte address 0x4 - core index']
  #allocation1 [shape = 'u32[144,128]{1,0:T(1,128)}', space=vmem, size = 0x12000, scoped, tag = 'internal scratch']
  #allocation2 [shape = 'f32[1,1]{1,0:T(1,128)S(1)}', space=vmem, size = 0x200, scoped, tag = 'scoped memory for casenet_forward.7']
  %s0 = inlined_call_operand.vmem [shape: f32[2,4,64], index: 0, kind: input, shape index: {}]
  %s1 = inlined_call_operand.vmem [shape: f32[4,1], index: 1, kind: input, shape index: {}]
  %s2 = inlined_call_operand.<no memory space> [shape: f32[1,1], index: 2, kind: input, shape index: {}]
  %s3 = inlined_call_operand.vmem [shape: f32[2,1,64], index: 3, kind: output, shape index: {}]
  %s4 = sld [smem:[#allocation0]]
  $region45: #{casenet_forward.7} parent=0
    _
  %s6 = ssub.s32 1, %s4
  %s7 = scalar_select 0, %s6, %s4
  %v8 = vstv %s2
  %9 = vst [vmem:[#allocation2] sm:$0x1] %v8
  loop: start=0, step=1, limit=4
  $region2: #{casenet_forward.7} parent=0 // loop_pre_header
    _
  $region3: #{casenet_forward.7} parent=0 // loop_header
    %s11 = sphi 0, %s15
    %p12 = scmp.ge.s32.totalorder %s11, 4
    %s18 = sphi 0, %s30
    %s19 = sphi 0, %s26
    %s20 = sphi 0, %s18
    %s21 = sphi 0, %s19
    %s22 = sphi 0, %s20
    %s23 = sphi 0, %s21
    %s35 = sphi 0, %s37
    %s38 = sphi 0, %s35
    %s39 = sphi 0, %s38
    %s55 = sphi 0, %s39
    %s59 = sphi 0, %s59
    %s61 = sphi 0, %s59
    %s62 = sphi 0, %s61
    %s76 = sphi 0, %s62
    %s80 = sphi 0, %s80
    %s82 = sphi 0, %s80
    %s83 = sphi 0, %s82
    %s97 = sphi 0, %s83
    %s105 = sphi 0, %s107
    %s108 = sphi 0, %s105
    %s109 = sphi 0, %s108
    %s125 = sphi 0, %s109
  $region4: #{casenet_forward.7} parent=0 // loop_header_branch
    %14 = sbr.rel (%p12) target = $region8
  $region5: #{casenet_forward.7} parent=0 // loop_body
    %s16 = ssub.s32 %s11, 1
    %s17 = ssub.s32 %s11, 2
    %s24 = sadd.s32 1, %s19
    %p25 = scmp.ge.s32.totalorder %s24, 1
    %s26 = scalar_select %p25, 0, %s24
    %s27 = sadd.s32 1, %s18
    %s28 = scalar_select %p25, %s27, %s18
    %p29 = scmp.ge.s32.totalorder %s28, 2
    %s30 = scalar_select %p29, 0, %s28
    %s31 = ssub.s32 %s18, %s30
    %s32 = ssub.s32 %s19, %s26
    %s33 = sor.u32 %s31, %s32
    %p34 = scmp.eq.s32.totalorder %s33, 0
    %s36 = sadd.s32 %s35, 1
    %s37 = scalar_select %p34, %s35, %s36
    %p40 = pneg %p34
    %p41 = scmp.eq.s32.totalorder %s11, 1
    %p42 = por %p40, %p41
    %p43 = scmp.ne.s32.totalorder %s35, %s38
    %p44 = scmp.eq.s32.totalorder %s11, 0
    %p45 = por %p43, %p44
    %p46 = scmp.ne.s32.totalorder %s35, %s38
    %p47 = scmp.eq.s32.totalorder %s16, 1
    %p48 = por %p46, %p47
    %p49 = scmp.ne.s32.totalorder %s38, %s39
    %p50 = scmp.eq.s32.totalorder %s16, 0
    %p51 = por %p49, %p50
    %p52 = scmp.ne.s32.totalorder %s38, %s39
    %p53 = scmp.eq.s32.totalorder %s17, 1
    %p54 = por %p52, %p53
    %p56 = scmp.ne.s32.totalorder %s39, %s55
    %p57 = scmp.eq.s32.totalorder %s17, 0
    %p58 = por %p56, %p57
    %s60 = sadd.s32 %s59, 1
    %p63 = scmp.eq.s32.totalorder %s11, 1
    %p64 = scmp.ne.s32.totalorder %s59, %s61
    %p65 = scmp.eq.s32.totalorder %s11, 0
    %p66 = por %p64, %p65
    %p67 = scmp.ne.s32.totalorder %s59, %s61
    %p68 = scmp.eq.s32.totalorder %s16, 1
    %p69 = por %p67, %p68
    %p70 = scmp.ne.s32.totalorder %s61, %s62
    %p71 = scmp.eq.s32.totalorder %s16, 0
    %p72 = por %p70, %p71
    %p73 = scmp.ne.s32.totalorder %s61, %s62
    %p74 = scmp.eq.s32.totalorder %s17, 1
    %p75 = por %p73, %p74
    %p77 = scmp.ne.s32.totalorder %s62, %s76
    %p78 = scmp.eq.s32.totalorder %s17, 0
    %p79 = por %p77, %p78
    %s81 = sadd.s32 %s80, 1
    %p84 = scmp.eq.s32.totalorder %s11, 1
    %p85 = scmp.ne.s32.totalorder %s80, %s82
    %p86 = scmp.eq.s32.totalorder %s11, 0
    %p87 = por %p85, %p86
    %p88 = scmp.ne.s32.totalorder %s80, %s82
    %p89 = scmp.eq.s32.totalorder %s16, 1
    %p90 = por %p88, %p89
    %p91 = scmp.ne.s32.totalorder %s82, %s83
    %p92 = scmp.eq.s32.totalorder %s16, 0
    %p93 = por %p91, %p92
    %p94 = scmp.ne.s32.totalorder %s82, %s83
    %p95 = scmp.eq.s32.totalorder %s17, 1
    %p96 = por %p94, %p95
    %p98 = scmp.ne.s32.totalorder %s83, %s97
    %p99 = scmp.eq.s32.totalorder %s17, 0
    %p100 = por %p98, %p99
    %s101 = ssub.s32 %s18, %s30
    %s102 = ssub.s32 %s19, %s26
    %s103 = sor.u32 %s101, %s102
    %p104 = scmp.eq.s32.totalorder %s103, 0
    %s106 = sadd.s32 %s105, 1
    %s107 = scalar_select %p104, %s105, %s106
    %p110 = pneg %p104
    %p111 = scmp.eq.s32.totalorder %s11, 1
    %p112 = por %p110, %p111
    %p113 = scmp.ne.s32.totalorder %s105, %s108
    %p114 = scmp.eq.s32.totalorder %s11, 0
    %p115 = por %p113, %p114
    %p116 = scmp.ne.s32.totalorder %s105, %s108
    %p117 = scmp.eq.s32.totalorder %s16, 1
    %p118 = por %p116, %p117
    %p119 = scmp.ne.s32.totalorder %s108, %s109
    %p120 = scmp.eq.s32.totalorder %s16, 0
    %p121 = por %p119, %p120
    %p122 = scmp.ne.s32.totalorder %s108, %s109
    %p123 = scmp.eq.s32.totalorder %s17, 1
    %p124 = por %p122, %p123
    %p126 = scmp.ne.s32.totalorder %s109, %s125
    %p127 = scmp.eq.s32.totalorder %s17, 0
    %p128 = por %p126, %p127
    %p129 = scmp.le.s32.totalorder 1, %s11
    %p130 = scmp.lt.s32.totalorder %s11, 3
    %p131 = pnand %p129, %p130
    %p132 = pneg %p131
    // Predicated region
    $region9: #{casenet_forward.7} parent=5 // pred_check
      _
    $region10: #{casenet_forward.7} parent=5 // pred_check_branch
      %134 = sbr.rel (%p131) target = $region12
    $region11: #{casenet_forward.7} parent=5 // pred_region
      %s135 = ssub.s32 %s11, 1
      // Predicated region
      $region13: #{casenet_forward.7} parent=11 // pred_check
        %p136 = pneg %p72
      $region14: #{casenet_forward.7} parent=11 // pred_check_branch
        %138 = sbr.rel (%p136) target = $region16
      $region15: #{casenet_forward.7} parent=11 // pred_region
        _
      $region16: #{casenet_forward.7} parent=11 // pred_fallthru
        _
      // Predicated region
      $region17: #{casenet_forward.7} parent=11 // pred_check
        %p139 = pneg %p93
      $region18: #{casenet_forward.7} parent=11 // pred_check_branch
        %141 = sbr.rel (%p139) target = $region20
      $region19: #{casenet_forward.7} parent=11 // pred_region
        _
      $region20: #{casenet_forward.7} parent=11 // pred_fallthru
        _
    $region12: #{casenet_forward.7} parent=5 // pred_fallthru
      _
    %p142 = scmp.lt.s32.totalorder %s11, 2
    // Predicated region
    $region21: #{casenet_forward.7} parent=5 // pred_check
      %p143 = pneg %p142
    $region22: #{casenet_forward.7} parent=5 // pred_check_branch
      %145 = sbr.rel (%p143) target = $region24
    $region23: #{casenet_forward.7} parent=5 // pred_region
      // Predicated region
      $region25: #{casenet_forward.7} parent=23 // pred_check
        %p146 = pneg %p45
      $region26: #{casenet_forward.7} parent=23 // pred_check_branch
        %148 = sbr.rel (%p146) target = $region28
      $region27: #{casenet_forward.7} parent=23 // pred_region
        %p149 = scmp.lt.s32.totalorder %s18, 1
        %s150 = scalar_select %p149, %s18, 1
        %p151 = scmp.lt.s32.totalorder %s19, 0
        %s152 = scalar_select %p151, %s19, 0
        %s153 = sadd.s32 %s152, %s150
        %s154 = smul.addr %s153, 4
        %s155 = scalar_lea.vmem %s0, %s154
      $region28: #{casenet_forward.7} parent=23 // pred_fallthru
        _
    $region24: #{casenet_forward.7} parent=5 // pred_fallthru
      _
    %p156 = scmp.le.s32.totalorder 1, %s11
    %p157 = scmp.lt.s32.totalorder %s11, 3
    %p158 = pnand %p156, %p157
    %p159 = pneg %p158
    // Predicated region
    $region29: #{casenet_forward.7} parent=5 // pred_check
      _
    $region30: #{casenet_forward.7} parent=5 // pred_check_branch
      %161 = sbr.rel (%p158) target = $region32
    $region31: #{casenet_forward.7} parent=5 // pred_region
      %s162 = ssub.s32 %s11, 1
      %p163 = scmp.lt.s32.totalorder %s20, 1
      %s164 = scalar_select %p163, %s20, 1
      %p165 = scmp.lt.s32.totalorder %s21, 0
      %s166 = scalar_select %p165, %s21, 0
      %s167 = sadd.s32 %s166, %s164
      %s168 = smul.addr %s167, 4
      %s169 = scalar_lea.vmem %s0, %s168
      %p170 = pneg %p51
      %p171 = pneg %p48
      %p172 = pneg %p72
      %p173 = pneg %p69
      %p174 = pneg %p93
      %p175 = pneg %p90
      %p176 = pneg %p121
      %p177 = pneg %p118
      %p178 = scmp.lt.s32.totalorder %s20, 1
      %s179 = scalar_select %p178, %s20, 1
      %p180 = scmp.lt.s32.totalorder %s21, 0
      %s181 = scalar_select %p180, %s21, 0
      %s182 = sadd.s32 %s181, %s179
      %s183 = scalar_lea.vmem %s3, %s182
      %p184 = scmp.lt.s32.totalorder %s20, 1
      %s185 = scalar_select %p184, %s20, 1
      %p186 = scmp.lt.s32.totalorder %s21, 0
      %s187 = scalar_select %p186, %s21, 0
      %s188 = sadd.s32 %s187, %s185
      %s189 = smul.addr %s188, 4
      %s190 = scalar_lea.vmem %s0, %s189
      %p191 = scmp.lt.s32.totalorder %s20, 1
      %s192 = scalar_select %p191, %s20, 1
      %p193 = scmp.lt.s32.totalorder %s21, 0
      %s194 = scalar_select %p193, %s21, 0
      %s195 = sadd.s32 %s194, %s192
      %s196 = scalar_lea.vmem %s3, %s195
      %v197 = vld [vmem:[%s190] sm:$0xf]
      %v198 = vld [vmem:[%s1] sm:$0xf]
      %200 = vset.pattern.permute.xlu0 0
      %201 = vperm.xlu0 %200, %v198
      %v202 = vpop.permute.xlu0 %201
      %v204 = vmul.f32 %v197, %v202
      %vm205 = vcmask 519168
      %v206 = vsel %vm205, %v204, 0.0
      %v207 = vrot.slane %v206, 4
      %v208 = vadd.f32 %v206, %v207
      %v209 = vrot.slane %v208, 2
      %v210 = vadd.f32 %v208, %v209
      %v211 = vrot.slane %v210, 1
      %v212 = vadd.f32 %v210, %v211
      %v213 = vld [vmem:[#allocation2] sm:$0x1]
      %215 = vset.pattern.permute.xlu0 0
      %216 = vperm.xlu0 %215, %v213
      %v217 = vpop.permute.xlu0 %216
      %v219 = vlaneseq
      %v220 = vshrl.u32 %v219, 7
      %v221 = vsub.s32 0, %v220
      %v222 = vrot.slane %v217, %v221
      %v223 = vadd.f32 %v212, %v222
      %vm224 = vcmask 516096
      %225 = vst.msk [vmem:[%s196] sm:$0x1] %vm224, %v223
      %p226 = scmp.lt.s32.totalorder %s20, 1
      %s227 = scalar_select %p226, %s20, 1
      %p228 = scmp.lt.s32.totalorder %s21, 0
      %s229 = scalar_select %p228, %s21, 0
      %s230 = sadd.s32 %s229, %s227
      %s231 = scalar_lea.vmem %s3, %s230
      // Predicated region
      $region33: #{casenet_forward.7} parent=31 // pred_check
        %p232 = pneg %p118
      $region34: #{casenet_forward.7} parent=31 // pred_check_branch
        %234 = sbr.rel (%p232) target = $region36
      $region35: #{casenet_forward.7} parent=31 // pred_region
        _
      $region36: #{casenet_forward.7} parent=31 // pred_fallthru
        _
    $region32: #{casenet_forward.7} parent=5 // pred_fallthru
      _
    %p235 = scmp.le.s32.totalorder 2, %s11
    // Predicated region
    $region37: #{casenet_forward.7} parent=5 // pred_check
      %p236 = pneg %p235
    $region38: #{casenet_forward.7} parent=5 // pred_check_branch
      %238 = sbr.rel (%p236) target = $region40
    $region39: #{casenet_forward.7} parent=5 // pred_region
      %s239 = ssub.s32 %s11, 2
      // Predicated region
      $region41: #{casenet_forward.7} parent=39 // pred_check
        %p240 = pneg %p124
      $region42: #{casenet_forward.7} parent=39 // pred_check_branch
        %242 = sbr.rel (%p240) target = $region44
      $region43: #{casenet_forward.7} parent=39 // pred_region
        %p243 = scmp.lt.s32.totalorder %s22, 1
        %s244 = scalar_select %p243, %s22, 1
        %p245 = scmp.lt.s32.totalorder %s23, 0
        %s246 = scalar_select %p245, %s23, 0
        %s247 = sadd.s32 %s246, %s244
        %s248 = scalar_lea.vmem %s3, %s247
      $region44: #{casenet_forward.7} parent=39 // pred_fallthru
        _
    $region40: #{casenet_forward.7} parent=5 // pred_fallthru
      _
  $region6: #{casenet_forward.7} parent=0 // loop_footer
    %s15 = sadd.s32 1, %s11
  $region7: #{casenet_forward.7} parent=0 // loop_footer_branch
    %10 = sbr.rel target = $region3
  $region8: #{casenet_forward.7} parent=0 // loop_exit
    _

// kernel: casenet_forward.8
$region0: #{casenet_forward.8}
  #allocation0 [shape = 'u32[]', space=smem, size = 0x4, offset = 0x4, fixed_abs, tag = 'smem constant byte address 0x4 - core index']
  #allocation1 [shape = 'u32[144,128]{1,0:T(1,128)}', space=vmem, size = 0x12000, scoped, tag = 'internal scratch']
  %s0 = inlined_call_operand.vmem [shape: f32[2,1,10,10], index: 0, kind: input, shape index: {}]
  %s1 = inlined_call_operand.vmem [shape: f32[10,18], index: 1, kind: input, shape index: {}]
  %s2 = inlined_call_operand.vmem [shape: f32[1,8,16], index: 2, kind: input, shape index: {}]
  %s3 = inlined_call_operand.vmem [shape: f32[2,1,8,32], index: 3, kind: output, shape index: {}]
  %s4 = sld [smem:[#allocation0]]
  $region45: #{casenet_forward.8} parent=0
    _
  %s6 = ssub.s32 1, %s4
  %s7 = scalar_select 0, %s6, %s4
  loop: start=0, step=1, limit=4
  $region2: #{casenet_forward.8} parent=0 // loop_pre_header
    _
  $region3: #{casenet_forward.8} parent=0 // loop_header
    %s9 = sphi 0, %s13
    %p10 = scmp.ge.s32.totalorder %s9, 4
    %s16 = sphi 0, %s35
    %s17 = sphi 0, %s31
    %s18 = sphi 0, %s27
    %s19 = sphi 0, %s16
    %s20 = sphi 0, %s17
    %s21 = sphi 0, %s18
    %s22 = sphi 0, %s19
    %s23 = sphi 0, %s20
    %s24 = sphi 0, %s21
    %s40 = sphi 0, %s42
    %s43 = sphi 0, %s40
    %s44 = sphi 0, %s43
    %s60 = sphi 0, %s44
    %s64 = sphi 0, %s64
    %s66 = sphi 0, %s64
    %s67 = sphi 0, %s66
    %s81 = sphi 0, %s67
    %s87 = sphi 0, %s89
    %s90 = sphi 0, %s87
    %s91 = sphi 0, %s90
    %s107 = sphi 0, %s91
    %s117 = sphi 0, %s119
    %s120 = sphi 0, %s117
    %s121 = sphi 0, %s120
    %s137 = sphi 0, %s121
  $region4: #{casenet_forward.8} parent=0 // loop_header_branch
    %12 = sbr.rel (%p10) target = $region8
  $region5: #{casenet_forward.8} parent=0 // loop_body
    %s14 = ssub.s32 %s9, 1
    %s15 = ssub.s32 %s9, 2
    %s25 = sadd.s32 1, %s18
    %p26 = scmp.ge.s32.totalorder %s25, 1
    %s27 = scalar_select %p26, 0, %s25
    %s28 = sadd.s32 1, %s17
    %s29 = scalar_select %p26, %s28, %s17
    %p30 = scmp.ge.s32.totalorder %s29, 1
    %s31 = scalar_select %p30, 0, %s29
    %s32 = sadd.s32 1, %s16
    %s33 = scalar_select %p30, %s32, %s16
    %p34 = scmp.ge.s32.totalorder %s33, 2
    %s35 = scalar_select %p34, 0, %s33
    %s36 = ssub.s32 %s16, %s35
    %s37 = ssub.s32 %s17, %s31
    %s38 = sor.u32 %s36, %s37
    %p39 = scmp.eq.s32.totalorder %s38, 0
    %s41 = sadd.s32 %s40, 1
    %s42 = scalar_select %p39, %s40, %s41
    %p45 = pneg %p39
    %p46 = scmp.eq.s32.totalorder %s9, 1
    %p47 = por %p45, %p46
    %p48 = scmp.ne.s32.totalorder %s40, %s43
    %p49 = scmp.eq.s32.totalorder %s9, 0
    %p50 = por %p48, %p49
    %p51 = scmp.ne.s32.totalorder %s40, %s43
    %p52 = scmp.eq.s32.totalorder %s14, 1
    %p53 = por %p51, %p52
    %p54 = scmp.ne.s32.totalorder %s43, %s44
    %p55 = scmp.eq.s32.totalorder %s14, 0
    %p56 = por %p54, %p55
    %p57 = scmp.ne.s32.totalorder %s43, %s44
    %p58 = scmp.eq.s32.totalorder %s15, 1
    %p59 = por %p57, %p58
    %p61 = scmp.ne.s32.totalorder %s44, %s60
    %p62 = scmp.eq.s32.totalorder %s15, 0
    %p63 = por %p61, %p62
    %s65 = sadd.s32 %s64, 1
    %p68 = scmp.eq.s32.totalorder %s9, 1
    %p69 = scmp.ne.s32.totalorder %s64, %s66
    %p70 = scmp.eq.s32.totalorder %s9, 0
    %p71 = por %p69, %p70
    %p72 = scmp.ne.s32.totalorder %s64, %s66
    %p73 = scmp.eq.s32.totalorder %s14, 1
    %p74 = por %p72, %p73
    %p75 = scmp.ne.s32.totalorder %s66, %s67
    %p76 = scmp.eq.s32.totalorder %s14, 0
    %p77 = por %p75, %p76
    %p78 = scmp.ne.s32.totalorder %s66, %s67
    %p79 = scmp.eq.s32.totalorder %s15, 1
    %p80 = por %p78, %p79
    %p82 = scmp.ne.s32.totalorder %s67, %s81
    %p83 = scmp.eq.s32.totalorder %s15, 0
    %p84 = por %p82, %p83
    %s85 = ssub.s32 %s17, %s31
    %p86 = scmp.eq.s32.totalorder %s85, 0
    %s88 = sadd.s32 %s87, 1
    %s89 = scalar_select %p86, %s87, %s88
    %p92 = pneg %p86
    %p93 = scmp.eq.s32.totalorder %s9, 1
    %p94 = por %p92, %p93
    %p95 = scmp.ne.s32.totalorder %s87, %s90
    %p96 = scmp.eq.s32.totalorder %s9, 0
    %p97 = por %p95, %p96
    %p98 = scmp.ne.s32.totalorder %s87, %s90
    %p99 = scmp.eq.s32.totalorder %s14, 1
    %p100 = por %p98, %p99
    %p101 = scmp.ne.s32.totalorder %s90, %s91
    %p102 = scmp.eq.s32.totalorder %s14, 0
    %p103 = por %p101, %p102
    %p104 = scmp.ne.s32.totalorder %s90, %s91
    %p105 = scmp.eq.s32.totalorder %s15, 1
    %p106 = por %p104, %p105
    %p108 = scmp.ne.s32.totalorder %s91, %s107
    %p109 = scmp.eq.s32.totalorder %s15, 0
    %p110 = por %p108, %p109
    %s111 = ssub.s32 %s16, %s35
    %s112 = ssub.s32 %s17, %s31
    %s113 = sor.u32 %s111, %s112
    %s114 = ssub.s32 %s18, %s27
    %s115 = sor.u32 %s113, %s114
    %p116 = scmp.eq.s32.totalorder %s115, 0
    %s118 = sadd.s32 %s117, 1
    %s119 = scalar_select %p116, %s117, %s118
    %p122 = pneg %p116
    %p123 = scmp.eq.s32.totalorder %s9, 1
    %p124 = por %p122, %p123
    %p125 = scmp.ne.s32.totalorder %s117, %s120
    %p126 = scmp.eq.s32.totalorder %s9, 0
    %p127 = por %p125, %p126
    %p128 = scmp.ne.s32.totalorder %s117, %s120
    %p129 = scmp.eq.s32.totalorder %s14, 1
    %p130 = por %p128, %p129
    %p131 = scmp.ne.s32.totalorder %s120, %s121
    %p132 = scmp.eq.s32.totalorder %s14, 0
    %p133 = por %p131, %p132
    %p134 = scmp.ne.s32.totalorder %s120, %s121
    %p135 = scmp.eq.s32.totalorder %s15, 1
    %p136 = por %p134, %p135
    %p138 = scmp.ne.s32.totalorder %s121, %s137
    %p139 = scmp.eq.s32.totalorder %s15, 0
    %p140 = por %p138, %p139
    %p141 = scmp.le.s32.totalorder 1, %s9
    %p142 = scmp.lt.s32.totalorder %s9, 3
    %p143 = pnand %p141, %p142
    %p144 = pneg %p143
    // Predicated region
    $region9: #{casenet_forward.8} parent=5 // pred_check
      _
    $region10: #{casenet_forward.8} parent=5 // pred_check_branch
      %146 = sbr.rel (%p143) target = $region12
    $region11: #{casenet_forward.8} parent=5 // pred_region
      %s147 = ssub.s32 %s9, 1
      // Predicated region
      $region13: #{casenet_forward.8} parent=11 // pred_check
        %p148 = pneg %p77
      $region14: #{casenet_forward.8} parent=11 // pred_check_branch
        %150 = sbr.rel (%p148) target = $region16
      $region15: #{casenet_forward.8} parent=11 // pred_region
        _
      $region16: #{casenet_forward.8} parent=11 // pred_fallthru
        _
      // Predicated region
      $region17: #{casenet_forward.8} parent=11 // pred_check
        %p151 = pneg %p103
      $region18: #{casenet_forward.8} parent=11 // pred_check_branch
        %153 = sbr.rel (%p151) target = $region20
      $region19: #{casenet_forward.8} parent=11 // pred_region
        %p154 = scmp.lt.s32.totalorder %s20, 0
        %s155 = scalar_select %p154, %s20, 0
        %s156 = smul.addr %s155, 8
        %s157 = scalar_lea.vmem %s2, %s156
      $region20: #{casenet_forward.8} parent=11 // pred_fallthru
        _
    $region12: #{casenet_forward.8} parent=5 // pred_fallthru
      _
    %p158 = scmp.lt.s32.totalorder %s9, 2
    // Predicated region
    $region21: #{casenet_forward.8} parent=5 // pred_check
      %p159 = pneg %p158
    $region22: #{casenet_forward.8} parent=5 // pred_check_branch
      %161 = sbr.rel (%p159) target = $region24
    $region23: #{casenet_forward.8} parent=5 // pred_region
      // Predicated region
      $region25: #{casenet_forward.8} parent=23 // pred_check
        %p162 = pneg %p50
      $region26: #{casenet_forward.8} parent=23 // pred_check_branch
        %164 = sbr.rel (%p162) target = $region28
      $region27: #{casenet_forward.8} parent=23 // pred_region
        %p165 = scmp.lt.s32.totalorder %s16, 1
        %s166 = scalar_select %p165, %s16, 1
        %p167 = scmp.lt.s32.totalorder %s17, 0
        %s168 = scalar_select %p167, %s17, 0
        %s169 = smul.addr %s168, 2
        %s170 = smul.addr %s166, 2
        %s171 = sadd.s32 %s169, %s170
        %s172 = smul.addr %s171, 8
        %s173 = scalar_lea.vmem %s0, %s172
      $region28: #{casenet_forward.8} parent=23 // pred_fallthru
        _
    $region24: #{casenet_forward.8} parent=5 // pred_fallthru
      _
    %p174 = scmp.le.s32.totalorder 1, %s9
    %p175 = scmp.lt.s32.totalorder %s9, 3
    %p176 = pnand %p174, %p175
    %p177 = pneg %p176
    // Predicated region
    $region29: #{casenet_forward.8} parent=5 // pred_check
      _
    $region30: #{casenet_forward.8} parent=5 // pred_check_branch
      %179 = sbr.rel (%p176) target = $region32
    $region31: #{casenet_forward.8} parent=5 // pred_region
      %s180 = ssub.s32 %s9, 1
      %p181 = scmp.lt.s32.totalorder %s19, 1
      %s182 = scalar_select %p181, %s19, 1
      %p183 = scmp.lt.s32.totalorder %s20, 0
      %s184 = scalar_select %p183, %s20, 0
      %s185 = smul.addr %s184, 2
      %s186 = smul.addr %s182, 2
      %s187 = sadd.s32 %s185, %s186
      %s188 = smul.addr %s187, 8
      %s189 = scalar_lea.vmem %s0, %s188
      %p190 = pneg %p56
      %p191 = pneg %p53
      %p192 = pneg %p77
      %p193 = pneg %p74
      %p194 = scmp.lt.s32.totalorder %s20, 0
      %s195 = scalar_select %p194, %s20, 0
      %s196 = smul.addr %s195, 8
      %s197 = scalar_lea.vmem %s2, %s196
      %p198 = pneg %p103
      %p199 = pneg %p100
      %p200 = pneg %p133
      %p201 = pneg %p130
      %p202 = scmp.lt.s32.totalorder %s19, 1
      %s203 = scalar_select %p202, %s19, 1
      %p204 = scmp.lt.s32.totalorder %s20, 0
      %s205 = scalar_select %p204, %s20, 0
      %p206 = scmp.lt.s32.totalorder %s21, 0
      %s207 = scalar_select %p206, %s21, 0
      %s208 = sadd.s32 %s207, %s205
      %s209 = sadd.s32 %s208, %s203
      %s210 = smul.addr %s209, 8
      %s211 = scalar_lea.vmem %s3, %s210
      %p212 = scmp.lt.s32.totalorder %s19, 1
      %s213 = scalar_select %p212, %s19, 1
      %p214 = scmp.lt.s32.totalorder %s20, 0
      %s215 = scalar_select %p214, %s20, 0
      %s216 = smul.addr %s215, 2
      %s217 = smul.addr %s213, 2
      %s218 = sadd.s32 %s216, %s217
      %s219 = smul.addr %s218, 8
      %s220 = scalar_lea.vmem %s0, %s219
      %p221 = scmp.lt.s32.totalorder %s20, 0
      %s222 = scalar_select %p221, %s20, 0
      %s223 = smul.addr %s222, 8
      %s224 = scalar_lea.vmem %s2, %s223
      %p225 = scmp.lt.s32.totalorder %s19, 1
      %s226 = scalar_select %p225, %s19, 1
      %p227 = scmp.lt.s32.totalorder %s20, 0
      %s228 = scalar_select %p227, %s20, 0
      %p229 = scmp.lt.s32.totalorder %s21, 0
      %s230 = scalar_select %p229, %s21, 0
      %s231 = sadd.s32 %s230, %s228
      %s232 = sadd.s32 %s231, %s226
      %s233 = smul.addr %s232, 8
      %s234 = scalar_lea.vmem %s3, %s233
      %s235 = smul.u32 %s21, 8
      %s236 = scalar_lea.vmem %s220, %s235
      %v237 = vld [vmem:[%s236] sm:$0xff]
      %v238 = vld [vmem:[%s236 + $0x8] sm:$0x3]
      %v239 = vld [vmem:[%s1] sm:$0xff]
      %v240 = vld [vmem:[%s1 + $0x8] sm:$0x3]
      %vm241 = vcmask 80896
      %v243 = vsel %vm241, %v237, 0
      %v246 = vsel %vm241, %v238, 0
      %vm248 = vcmask 1041408
      %v250 = vsel %vm248, %v240, 0
      %252 = vmatprep.subr.mxu0 0.0
      %253 = vmatpush1.msra.mxu0 %v239
      %254 = vmatprep.subr.mxu0 0.0
      %255 = vmatpush1.msra.mxu0 %v250
      %256 = vmatprep.subr.mxu0 0.0
      %257 = vmatpush1.msra.mxu0 0.0
      %258 = vmatprep.subr.mxu0 0.0
      %259 = vmatpush1.msra.mxu0 0.0
      %260 = vmatprep.subr.mxu0 0.0
      %261 = vmatpush1.msra.mxu0 0.0
      %262 = vmatprep.subr.mxu0 0.0
      %263 = vmatpush1.msra.mxu0 0.0
      %264 = vmatprep.subr.mxu0 0.0
      %265 = vmatpush1.msra.mxu0 0.0
      %266 = vmatprep.subr.mxu0 0.0
      %267 = vmatpush1.msra.mxu0 0.0
      %268 = vmatprep.subr.mxu0 0.0
      %269 = vmatpush1.msra.mxu0 0.0
      %270 = vmatprep.subr.mxu0 0.0
      %271 = vmatpush1.msra.mxu0 0.0
      %272 = vmatprep.subr.mxu0 0.0
      %273 = vmatpush1.msra.mxu0 0.0
      %274 = vmatprep.subr.mxu0 0.0
      %275 = vmatpush1.msra.mxu0 0.0
      %276 = vmatprep.subr.mxu0 0.0
      %277 = vmatpush1.msra.mxu0 0.0
      %278 = vmatprep.subr.mxu0 0.0
      %279 = vmatpush1.msra.mxu0 0.0
      %280 = vmatprep.subr.mxu0 0.0
      %281 = vmatpush1.msra.mxu0 0.0
      %282 = vmatprep.subr.mxu0 0.0
      %283 = vmatpush1.msra.mxu0 0.0
      %284 = vmatprep.subr.mxu0 0.0
      %285 = vmatpush1.msra.mxu0 0.0
      %286 = vmatprep.subr.mxu0 0.0
      %287 = vmatpush1.msra.mxu0 0.0
      %288 = vmatprep.subr.mxu0 0.0
      %289 = vmatpush1.msra.mxu0 0.0
      %290 = vmatprep.subr.mxu0 0.0
      %291 = vmatpush1.msra.mxu0 0.0
      %292 = vmatprep.subr.mxu0 0.0
      %293 = vmatpush1.msra.mxu0 0.0
      %294 = vmatprep.subr.mxu0 0.0
      %295 = vmatpush1.msra.mxu0 0.0
      %296 = vmatprep.subr.mxu0 0.0
      %297 = vmatpush1.msra.mxu0 0.0
      %298 = vmatprep.subr.mxu0 0.0
      %299 = vmatpush1.msra.mxu0 0.0
      %300 = vmatprep.subr.mxu0 0.0
      %301 = vmatpush1.msra.mxu0 0.0
      %302 = vmatprep.subr.mxu0 0.0
      %303 = vmatpush1.msra.mxu0 0.0
      %304 = vmatprep.subr.mxu0 0.0
      %305 = vmatpush1.msra.mxu0 0.0
      %306 = vmatprep.subr.mxu0 0.0
      %307 = vmatpush1.msra.mxu0 0.0
      %308 = vmatprep.subr.mxu0 0.0
      %309 = vmatpush1.msra.mxu0 0.0
      %310 = vmatprep.subr.mxu0 0.0
      %311 = vmatpush1.msra.mxu0 0.0
      %312 = vmatprep.subr.mxu0 0.0
      %313 = vmatpush1.msra.mxu0 0.0
      %314 = vmatprep.subr.mxu0 0.0
      %315 = vmatpush1.msra.mxu0 0.0
      %316 = vmatprep.mubr.f32.mxu0 0.0
      %317 = vmatmul.mubr.f32.gmra.mrb[0].mxu0 %v243
      %v318 = vpop.f32.mrb[0].mxu0
      %v319 = vadd.f32 0.0, %v318
      %v320 = vpop.f32.mrb[0].mxu0
      %321 = vmatprep.mubr.f32.mxu0 0.0
      %322 = vmatmul.mubr.f32.gmra.mrb[0].mxu0 %v246
      %v323 = vpop.f32.mrb[0].mxu0
      %v324 = vadd.f32 0.0, %v323
      %v325 = vpop.f32.mrb[0].mxu0
      %326 = vdwg.mxu0
      %v327 = vld [vmem:[%s224] sm:$0xff]
      %v328 = vlaneseq
      %v329 = vshrl.u32 %v328, 7
      %v330 = vsub.s32 2, %v329
      %v331 = vrot.slane %v327, %v330
      %333 = vrot.lane.b32.xlu0 %v331, 2
      %v334 = vpop.permute.xlu0 %333
      %v336 = vmul.f32 %v319, %v334
      %v337 = vmul.f32 %v324, %v334
      %v338 = vlaneseq
      %v339 = vshrl.u32 %v338, 7
      %v340 = vsub.s32 3, %v339
      %v341 = vrot.slane %v327, %v340
      %v342 = vmul.f32 %v319, %v341
      %v343 = vmul.f32 %v324, %v341
      %346 = vrot.lane.b32.xlu0 %v342, 2
      %v347 = vpop.permute.xlu0 %346
      %348 = vrot.lane.b32.xlu0 %v343, 2
      %v349 = vpop.permute.xlu0 %348
      %v352 = vadd.f32 %v336, %v347
      %v353 = vadd.f32 %v337, %v349
      %v354 = vlaneseq
      %v355 = vshrl.u32 %v354, 7
      %v356 = vsub.s32 6, %v355
      %v357 = vrot.slane %v327, %v356
      %359 = vrot.lane.b32.xlu0 %v357, 2
      %v360 = vpop.permute.xlu0 %359
      %v362 = vmul.f32 %v319, %v360
      %v364 = vrot.slane %v362, 7
      %v366 = vadd.f32 %v352, %v364
      %v367 = vadd.f32 %v353, %v364
      %v368 = vlaneseq
      %v369 = vshrl.u32 %v368, 7
      %v370 = vsub.s32 7, %v369
      %v371 = vrot.slane %v327, %v370
      %v372 = vmul.f32 %v319, %v371
      %v374 = vrot.slane %v372, 7
      %375 = vrot.lane.b32.xlu0 %v374, 2
      %v376 = vpop.permute.xlu0 %375
      %v378 = vadd.f32 %v366, %v376
      %v379 = vadd.f32 %v367, %v376
      %382 = vrot.lane.b32.xlu0 %v378, 126
      %v383 = vpop.permute.xlu0 %382
      %384 = vrot.lane.b32.xlu0 %v379, 126
      %v385 = vpop.permute.xlu0 %384
      %vm388 = vcmask 130049
      %389 = vst.msk [vmem:[%s234 - $0x1] sm:$0xfe] %vm388, %v383
      %vm390 = vcmask 122880
      %391 = vst.msk [vmem:[%s234 + $0x7] sm:$0x1] %vm390, %v385
      %v392 = vlaneseq
      %v393 = vshrl.u32 %v392, 7
      %v394 = vsub.s32 0, %v393
      %v395 = vrot.slane %v327, %v394
      %397 = vrot.lane.b32.xlu0 %v395, 2
      %v398 = vpop.permute.xlu0 %397
      %v400 = vmul.f32 %v319, %v398
      %v401 = vmul.f32 %v324, %v398
      %v402 = vlaneseq
      %v403 = vshrl.u32 %v402, 7
      %v404 = vsub.s32 1, %v403
      %v405 = vrot.slane %v327, %v404
      %v406 = vmul.f32 %v319, %v405
      %v407 = vmul.f32 %v324, %v405
      %410 = vrot.lane.b32.xlu0 %v406, 2
      %v411 = vpop.permute.xlu0 %410
      %412 = vrot.lane.b32.xlu0 %v407, 2
      %v413 = vpop.permute.xlu0 %412
      %v416 = vadd.f32 %v400, %v411
      %v417 = vadd.f32 %v401, %v413
      %v418 = vlaneseq
      %v419 = vshrl.u32 %v418, 7
      %v420 = vsub.s32 4, %v419
      %v421 = vrot.slane %v327, %v420
      %423 = vrot.lane.b32.xlu0 %v421, 2
      %v424 = vpop.permute.xlu0 %423
      %v426 = vmul.f32 %v319, %v424
      %v427 = vmul.f32 %v324, %v424
      %vm430 = vcmask 1040384
      %v431 = vrot.slane %v426, 7
      %v432 = vrot.slane %v427, 7
      %v433 = vsel %vm430, %v431, %v432
      %v436 = vadd.f32 %v416, %v431
      %v437 = vadd.f32 %v417, %v433
      %v438 = vlaneseq
      %v439 = vshrl.u32 %v438, 7
      %v440 = vsub.s32 5, %v439
      %v441 = vrot.slane %v327, %v440
      %v442 = vmul.f32 %v319, %v441
      %v443 = vmul.f32 %v324, %v441
      %v446 = vrot.slane %v442, 7
      %v447 = vrot.slane %v443, 7
      %v448 = vsel %vm430, %v446, %v447
      %449 = vrot.lane.b32.xlu0 %v446, 2
      %v450 = vpop.permute.xlu0 %449
      %451 = vrot.lane.b32.xlu0 %v448, 2
      %v452 = vpop.permute.xlu0 %451
      %v455 = vadd.f32 %v436, %v450
      %v456 = vadd.f32 %v437, %v452
      %459 = vrot.lane.b32.xlu0 %v455, 14
      %v460 = vpop.permute.xlu0 %459
      %461 = vrot.lane.b32.xlu0 %v456, 14
      %v462 = vpop.permute.xlu0 %461
      %vm465 = vcmask 261250
      %466 = vst.msk [vmem:[%s234 - $0x2] sm:$0xfc] %vm465, %v460
      %vm467 = vcmask 255104
      %468 = vst.msk [vmem:[%s234 + $0x6] sm:$0x3] %vm467, %v462
      %p469 = scmp.lt.s32.totalorder %s19, 1
      %s470 = scalar_select %p469, %s19, 1
      %p471 = scmp.lt.s32.totalorder %s20, 0
      %s472 = scalar_select %p471, %s20, 0
      %p473 = scmp.lt.s32.totalorder %s21, 0
      %s474 = scalar_select %p473, %s21, 0
      %s475 = sadd.s32 %s474, %s472
      %s476 = sadd.s32 %s475, %s470
      %s477 = smul.addr %s476, 8
      %s478 = scalar_lea.vmem %s3, %s477
      // Predicated region
      $region33: #{casenet_forward.8} parent=31 // pred_check
        %p479 = pneg %p130
      $region34: #{casenet_forward.8} parent=31 // pred_check_branch
        %481 = sbr.rel (%p479) target = $region36
      $region35: #{casenet_forward.8} parent=31 // pred_region
        _
      $region36: #{casenet_forward.8} parent=31 // pred_fallthru
        _
    $region32: #{casenet_forward.8} parent=5 // pred_fallthru
      _
    %p482 = scmp.le.s32.totalorder 2, %s9
    // Predicated region
    $region37: #{casenet_forward.8} parent=5 // pred_check
      %p483 = pneg %p482
    $region38: #{casenet_forward.8} parent=5 // pred_check_branch
      %485 = sbr.rel (%p483) target = $region40
    $region39: #{casenet_forward.8} parent=5 // pred_region
      %s486 = ssub.s32 %s9, 2
      // Predicated region
      $region41: #{casenet_forward.8} parent=39 // pred_check
        %p487 = pneg %p136
      $region42: #{casenet_forward.8} parent=39 // pred_check_branch
        %489 = sbr.rel (%p487) target = $region44
      $region43: #{casenet_forward.8} parent=39 // pred_region
        %p490 = scmp.lt.s32.totalorder %s22, 1
        %s491 = scalar_select %p490, %s22, 1
        %p492 = scmp.lt.s32.totalorder %s23, 0
        %s493 = scalar_select %p492, %s23, 0
        %p494 = scmp.lt.s32.totalorder %s24, 0
        %s495 = scalar_select %p494, %s24, 0
        %s496 = sadd.s32 %s495, %s493
        %s497 = sadd.s32 %s496, %s491
        %s498 = smul.addr %s497, 8
        %s499 = scalar_lea.vmem %s3, %s498
      $region44: #{casenet_forward.8} parent=39 // pred_fallthru
        _
    $region40: #{casenet_forward.8} parent=5 // pred_fallthru
      _
  $region6: #{casenet_forward.8} parent=0 // loop_footer
    %s13 = sadd.s32 1, %s9
  $region7: #{casenet_forward.8} parent=0 // loop_footer_branch
    %8 = sbr.rel target = $region3
  $region8: #{casenet_forward.8} parent=0 // loop_exit
    _

// kernel: casenet_forward.10
$region0: #{casenet_forward.10}
  #allocation0 [shape = 'u32[]', space=smem, size = 0x4, offset = 0x4, fixed_abs, tag = 'smem constant byte address 0x4 - core index']
  #allocation1 [shape = 'u32[144,128]{1,0:T(1,128)}', space=vmem, size = 0x12000, scoped, tag = 'internal scratch']
  %s0 = inlined_call_operand.vmem [shape: f32[2,1,6,6], index: 0, kind: input, shape index: {}]
  %s1 = inlined_call_operand.vmem [shape: f32[6,20], index: 1, kind: input, shape index: {}]
  %s2 = inlined_call_operand.vmem [shape: f32[1,16,16], index: 2, kind: input, shape index: {}]
  %s3 = inlined_call_operand.vmem [shape: f32[2,1,4,64], index: 3, kind: output, shape index: {}]
  %s4 = sld [smem:[#allocation0]]
  $region45: #{casenet_forward.10} parent=0
    _
  %s6 = ssub.s32 1, %s4
  %s7 = scalar_select 0, %s6, %s4
  loop: start=0, step=1, limit=4
  $region2: #{casenet_forward.10} parent=0 // loop_pre_header
    _
  $region3: #{casenet_forward.10} parent=0 // loop_header
    %s9 = sphi 0, %s13
    %p10 = scmp.ge.s32.totalorder %s9, 4
    %s16 = sphi 0, %s35
    %s17 = sphi 0, %s31
    %s18 = sphi 0, %s27
    %s19 = sphi 0, %s16
    %s20 = sphi 0, %s17
    %s21 = sphi 0, %s18
    %s22 = sphi 0, %s19
    %s23 = sphi 0, %s20
    %s24 = sphi 0, %s21
    %s40 = sphi 0, %s42
    %s43 = sphi 0, %s40
    %s44 = sphi 0, %s43
    %s60 = sphi 0, %s44
    %s64 = sphi 0, %s64
    %s66 = sphi 0, %s64
    %s67 = sphi 0, %s66
    %s81 = sphi 0, %s67
    %s87 = sphi 0, %s89
    %s90 = sphi 0, %s87
    %s91 = sphi 0, %s90
    %s107 = sphi 0, %s91
    %s117 = sphi 0, %s119
    %s120 = sphi 0, %s117
    %s121 = sphi 0, %s120
    %s137 = sphi 0, %s121
  $region4: #{casenet_forward.10} parent=0 // loop_header_branch
    %12 = sbr.rel (%p10) target = $region8
  $region5: #{casenet_forward.10} parent=0 // loop_body
    %s14 = ssub.s32 %s9, 1
    %s15 = ssub.s32 %s9, 2
    %s25 = sadd.s32 1, %s18
    %p26 = scmp.ge.s32.totalorder %s25, 1
    %s27 = scalar_select %p26, 0, %s25
    %s28 = sadd.s32 1, %s17
    %s29 = scalar_select %p26, %s28, %s17
    %p30 = scmp.ge.s32.totalorder %s29, 1
    %s31 = scalar_select %p30, 0, %s29
    %s32 = sadd.s32 1, %s16
    %s33 = scalar_select %p30, %s32, %s16
    %p34 = scmp.ge.s32.totalorder %s33, 2
    %s35 = scalar_select %p34, 0, %s33
    %s36 = ssub.s32 %s16, %s35
    %s37 = ssub.s32 %s17, %s31
    %s38 = sor.u32 %s36, %s37
    %p39 = scmp.eq.s32.totalorder %s38, 0
    %s41 = sadd.s32 %s40, 1
    %s42 = scalar_select %p39, %s40, %s41
    %p45 = pneg %p39
    %p46 = scmp.eq.s32.totalorder %s9, 1
    %p47 = por %p45, %p46
    %p48 = scmp.ne.s32.totalorder %s40, %s43
    %p49 = scmp.eq.s32.totalorder %s9, 0
    %p50 = por %p48, %p49
    %p51 = scmp.ne.s32.totalorder %s40, %s43
    %p52 = scmp.eq.s32.totalorder %s14, 1
    %p53 = por %p51, %p52
    %p54 = scmp.ne.s32.totalorder %s43, %s44
    %p55 = scmp.eq.s32.totalorder %s14, 0
    %p56 = por %p54, %p55
    %p57 = scmp.ne.s32.totalorder %s43, %s44
    %p58 = scmp.eq.s32.totalorder %s15, 1
    %p59 = por %p57, %p58
    %p61 = scmp.ne.s32.totalorder %s44, %s60
    %p62 = scmp.eq.s32.totalorder %s15, 0
    %p63 = por %p61, %p62
    %s65 = sadd.s32 %s64, 1
    %p68 = scmp.eq.s32.totalorder %s9, 1
    %p69 = scmp.ne.s32.totalorder %s64, %s66
    %p70 = scmp.eq.s32.totalorder %s9, 0
    %p71 = por %p69, %p70
    %p72 = scmp.ne.s32.totalorder %s64, %s66
    %p73 = scmp.eq.s32.totalorder %s14, 1
    %p74 = por %p72, %p73
    %p75 = scmp.ne.s32.totalorder %s66, %s67
    %p76 = scmp.eq.s32.totalorder %s14, 0
    %p77 = por %p75, %p76
    %p78 = scmp.ne.s32.totalorder %s66, %s67
    %p79 = scmp.eq.s32.totalorder %s15, 1
    %p80 = por %p78, %p79
    %p82 = scmp.ne.s32.totalorder %s67, %s81
    %p83 = scmp.eq.s32.totalorder %s15, 0
    %p84 = por %p82, %p83
    %s85 = ssub.s32 %s17, %s31
    %p86 = scmp.eq.s32.totalorder %s85, 0
    %s88 = sadd.s32 %s87, 1
    %s89 = scalar_select %p86, %s87, %s88
    %p92 = pneg %p86
    %p93 = scmp.eq.s32.totalorder %s9, 1
    %p94 = por %p92, %p93
    %p95 = scmp.ne.s32.totalorder %s87, %s90
    %p96 = scmp.eq.s32.totalorder %s9, 0
    %p97 = por %p95, %p96
    %p98 = scmp.ne.s32.totalorder %s87, %s90
    %p99 = scmp.eq.s32.totalorder %s14, 1
    %p100 = por %p98, %p99
    %p101 = scmp.ne.s32.totalorder %s90, %s91
    %p102 = scmp.eq.s32.totalorder %s14, 0
    %p103 = por %p101, %p102
    %p104 = scmp.ne.s32.totalorder %s90, %s91
    %p105 = scmp.eq.s32.totalorder %s15, 1
    %p106 = por %p104, %p105
    %p108 = scmp.ne.s32.totalorder %s91, %s107
    %p109 = scmp.eq.s32.totalorder %s15, 0
    %p110 = por %p108, %p109
    %s111 = ssub.s32 %s16, %s35
    %s112 = ssub.s32 %s17, %s31
    %s113 = sor.u32 %s111, %s112
    %s114 = ssub.s32 %s18, %s27
    %s115 = sor.u32 %s113, %s114
    %p116 = scmp.eq.s32.totalorder %s115, 0
    %s118 = sadd.s32 %s117, 1
    %s119 = scalar_select %p116, %s117, %s118
    %p122 = pneg %p116
    %p123 = scmp.eq.s32.totalorder %s9, 1
    %p124 = por %p122, %p123
    %p125 = scmp.ne.s32.totalorder %s117, %s120
    %p126 = scmp.eq.s32.totalorder %s9, 0
    %p127 = por %p125, %p126
    %p128 = scmp.ne.s32.totalorder %s117, %s120
    %p129 = scmp.eq.s32.totalorder %s14, 1
    %p130 = por %p128, %p129
    %p131 = scmp.ne.s32.totalorder %s120, %s121
    %p132 = scmp.eq.s32.totalorder %s14, 0
    %p133 = por %p131, %p132
    %p134 = scmp.ne.s32.totalorder %s120, %s121
    %p135 = scmp.eq.s32.totalorder %s15, 1
    %p136 = por %p134, %p135
    %p138 = scmp.ne.s32.totalorder %s121, %s137
    %p139 = scmp.eq.s32.totalorder %s15, 0
    %p140 = por %p138, %p139
    %p141 = scmp.le.s32.totalorder 1, %s9
    %p142 = scmp.lt.s32.totalorder %s9, 3
    %p143 = pnand %p141, %p142
    %p144 = pneg %p143
    // Predicated region
    $region9: #{casenet_forward.10} parent=5 // pred_check
      _
    $region10: #{casenet_forward.10} parent=5 // pred_check_branch
      %146 = sbr.rel (%p143) target = $region12
    $region11: #{casenet_forward.10} parent=5 // pred_region
      %s147 = ssub.s32 %s9, 1
      // Predicated region
      $region13: #{casenet_forward.10} parent=11 // pred_check
        %p148 = pneg %p77
      $region14: #{casenet_forward.10} parent=11 // pred_check_branch
        %150 = sbr.rel (%p148) target = $region16
      $region15: #{casenet_forward.10} parent=11 // pred_region
        _
      $region16: #{casenet_forward.10} parent=11 // pred_fallthru
        _
      // Predicated region
      $region17: #{casenet_forward.10} parent=11 // pred_check
        %p151 = pneg %p103
      $region18: #{casenet_forward.10} parent=11 // pred_check_branch
        %153 = sbr.rel (%p151) target = $region20
      $region19: #{casenet_forward.10} parent=11 // pred_region
        %p154 = scmp.lt.s32.totalorder %s20, 0
        %s155 = scalar_select %p154, %s20, 0
        %s156 = smul.addr %s155, 2
        %s157 = smul.addr %s156, 8
        %s158 = scalar_lea.vmem %s2, %s157
      $region20: #{casenet_forward.10} parent=11 // pred_fallthru
        _
    $region12: #{casenet_forward.10} parent=5 // pred_fallthru
      _
    %p159 = scmp.lt.s32.totalorder %s9, 2
    // Predicated region
    $region21: #{casenet_forward.10} parent=5 // pred_check
      %p160 = pneg %p159
    $region22: #{casenet_forward.10} parent=5 // pred_check_branch
      %162 = sbr.rel (%p160) target = $region24
    $region23: #{casenet_forward.10} parent=5 // pred_region
      // Predicated region
      $region25: #{casenet_forward.10} parent=23 // pred_check
        %p163 = pneg %p50
      $region26: #{casenet_forward.10} parent=23 // pred_check_branch
        %165 = sbr.rel (%p163) target = $region28
      $region27: #{casenet_forward.10} parent=23 // pred_region
        %p166 = scmp.lt.s32.totalorder %s16, 1
        %s167 = scalar_select %p166, %s16, 1
        %p168 = scmp.lt.s32.totalorder %s17, 0
        %s169 = scalar_select %p168, %s17, 0
        %s170 = sadd.s32 %s169, %s167
        %s171 = smul.addr %s170, 8
        %s172 = scalar_lea.vmem %s0, %s171
      $region28: #{casenet_forward.10} parent=23 // pred_fallthru
        _
    $region24: #{casenet_forward.10} parent=5 // pred_fallthru
      _
    %p173 = scmp.le.s32.totalorder 1, %s9
    %p174 = scmp.lt.s32.totalorder %s9, 3
    %p175 = pnand %p173, %p174
    %p176 = pneg %p175
    // Predicated region
    $region29: #{casenet_forward.10} parent=5 // pred_check
      _
    $region30: #{casenet_forward.10} parent=5 // pred_check_branch
      %178 = sbr.rel (%p175) target = $region32
    $region31: #{casenet_forward.10} parent=5 // pred_region
      %s179 = ssub.s32 %s9, 1
      %p180 = scmp.lt.s32.totalorder %s19, 1
      %s181 = scalar_select %p180, %s19, 1
      %p182 = scmp.lt.s32.totalorder %s20, 0
      %s183 = scalar_select %p182, %s20, 0
      %s184 = sadd.s32 %s183, %s181
      %s185 = smul.addr %s184, 8
      %s186 = scalar_lea.vmem %s0, %s185
      %p187 = pneg %p56
      %p188 = pneg %p53
      %p189 = pneg %p77
      %p190 = pneg %p74
      %p191 = scmp.lt.s32.totalorder %s20, 0
      %s192 = scalar_select %p191, %s20, 0
      %s193 = smul.addr %s192, 2
      %s194 = smul.addr %s193, 8
      %s195 = scalar_lea.vmem %s2, %s194
      %p196 = pneg %p103
      %p197 = pneg %p100
      %p198 = pneg %p133
      %p199 = pneg %p130
      %p200 = scmp.lt.s32.totalorder %s19, 1
      %s201 = scalar_select %p200, %s19, 1
      %p202 = scmp.lt.s32.totalorder %s20, 0
      %s203 = scalar_select %p202, %s20, 0
      %p204 = scmp.lt.s32.totalorder %s21, 0
      %s205 = scalar_select %p204, %s21, 0
      %s206 = sadd.s32 %s205, %s203
      %s207 = sadd.s32 %s206, %s201
      %s208 = smul.addr %s207, 4
      %s209 = scalar_lea.vmem %s3, %s208
      %p210 = scmp.lt.s32.totalorder %s19, 1
      %s211 = scalar_select %p210, %s19, 1
      %p212 = scmp.lt.s32.totalorder %s20, 0
      %s213 = scalar_select %p212, %s20, 0
      %s214 = sadd.s32 %s213, %s211
      %s215 = smul.addr %s214, 8
      %s216 = scalar_lea.vmem %s0, %s215
      %p217 = scmp.lt.s32.totalorder %s20, 0
      %s218 = scalar_select %p217, %s20, 0
      %s219 = smul.addr %s218, 2
      %s220 = smul.addr %s219, 8
      %s221 = scalar_lea.vmem %s2, %s220
      %p222 = scmp.lt.s32.totalorder %s19, 1
      %s223 = scalar_select %p222, %s19, 1
      %p224 = scmp.lt.s32.totalorder %s20, 0
      %s225 = scalar_select %p224, %s20, 0
      %p226 = scmp.lt.s32.totalorder %s21, 0
      %s227 = scalar_select %p226, %s21, 0
      %s228 = sadd.s32 %s227, %s225
      %s229 = sadd.s32 %s228, %s223
      %s230 = smul.addr %s229, 4
      %s231 = scalar_lea.vmem %s3, %s230
      %s232 = smul.u32 %s21, 4
      %s233 = scalar_lea.vmem %s216, %s232
      %v234 = vld [vmem:[%s233] sm:$0x3f]
      %v235 = vld [vmem:[%s1] sm:$0x3f]
      %vm236 = vcmask 48128
      %v238 = vsel %vm236, %v234, 0
      %vm240 = vcmask 1045504
      %v242 = vsel %vm240, %v235, 0
      %244 = vmatprep.subr.mxu0 0.0
      %245 = vmatpush1.msra.mxu0 %v242
      %246 = vmatprep.subr.mxu0 0.0
      %247 = vmatpush1.msra.mxu0 0.0
      %248 = vmatprep.subr.mxu0 0.0
      %249 = vmatpush1.msra.mxu0 0.0
      %250 = vmatprep.subr.mxu0 0.0
      %251 = vmatpush1.msra.mxu0 0.0
      %252 = vmatprep.subr.mxu0 0.0
      %253 = vmatpush1.msra.mxu0 0.0
      %254 = vmatprep.subr.mxu0 0.0
      %255 = vmatpush1.msra.mxu0 0.0
      %256 = vmatprep.subr.mxu0 0.0
      %257 = vmatpush1.msra.mxu0 0.0
      %258 = vmatprep.subr.mxu0 0.0
      %259 = vmatpush1.msra.mxu0 0.0
      %260 = vmatprep.subr.mxu0 0.0
      %261 = vmatpush1.msra.mxu0 0.0
      %262 = vmatprep.subr.mxu0 0.0
      %263 = vmatpush1.msra.mxu0 0.0
      %264 = vmatprep.subr.mxu0 0.0
      %265 = vmatpush1.msra.mxu0 0.0
      %266 = vmatprep.subr.mxu0 0.0
      %267 = vmatpush1.msra.mxu0 0.0
      %268 = vmatprep.subr.mxu0 0.0
      %269 = vmatpush1.msra.mxu0 0.0
      %270 = vmatprep.subr.mxu0 0.0
      %271 = vmatpush1.msra.mxu0 0.0
      %272 = vmatprep.subr.mxu0 0.0
      %273 = vmatpush1.msra.mxu0 0.0
      %274 = vmatprep.subr.mxu0 0.0
      %275 = vmatpush1.msra.mxu0 0.0
      %276 = vmatprep.subr.mxu0 0.0
      %277 = vmatpush1.msra.mxu0 0.0
      %278 = vmatprep.subr.mxu0 0.0
      %279 = vmatpush1.msra.mxu0 0.0
      %280 = vmatprep.subr.mxu0 0.0
      %281 = vmatpush1.msra.mxu0 0.0
      %282 = vmatprep.subr.mxu0 0.0
      %283 = vmatpush1.msra.mxu0 0.0
      %284 = vmatprep.subr.mxu0 0.0
      %285 = vmatpush1.msra.mxu0 0.0
      %286 = vmatprep.subr.mxu0 0.0
      %287 = vmatpush1.msra.mxu0 0.0
      %288 = vmatprep.subr.mxu0 0.0
      %289 = vmatpush1.msra.mxu0 0.0
      %290 = vmatprep.subr.mxu0 0.0
      %291 = vmatpush1.msra.mxu0 0.0
      %292 = vmatprep.subr.mxu0 0.0
      %293 = vmatpush1.msra.mxu0 0.0
      %294 = vmatprep.subr.mxu0 0.0
      %295 = vmatpush1.msra.mxu0 0.0
      %296 = vmatprep.subr.mxu0 0.0
      %297 = vmatpush1.msra.mxu0 0.0
      %298 = vmatprep.subr.mxu0 0.0
      %299 = vmatpush1.msra.mxu0 0.0
      %300 = vmatprep.subr.mxu0 0.0
      %301 = vmatpush1.msra.mxu0 0.0
      %302 = vmatprep.subr.mxu0 0.0
      %303 = vmatpush1.msra.mxu0 0.0
      %304 = vmatprep.subr.mxu0 0.0
      %305 = vmatpush1.msra.mxu0 0.0
      %306 = vmatprep.subr.mxu0 0.0
      %307 = vmatpush1.msra.mxu0 0.0
      %308 = vmatprep.mubr.f32.mxu0 0.0
      %309 = vmatmul.mubr.f32.gmra.mrb[0].mxu0 %v238
      %v310 = vpop.f32.mrb[0].mxu0
      %v311 = vadd.f32 0.0, %v310
      %v312 = vpop.f32.mrb[0].mxu0
      %313 = vdwg.mxu0
      %v314 = vld [vmem:[%s221] sm:$0xff]
      %v315 = vld [vmem:[%s221 + $0x8] sm:$0xff]
      %v316 = vlaneseq
      %v317 = vshrl.u32 %v316, 7
      %v318 = vsub.s32 4, %v317
      %v319 = vrot.slane %v314, %v318
      %321 = vrot.lane.b32.xlu0 %v319, 4
      %v322 = vpop.permute.xlu0 %321
      %v324 = vmul.f32 %v311, %v322
      %v325 = vlaneseq
      %v326 = vshrl.u32 %v325, 7
      %v327 = vsub.s32 5, %v326
      %v328 = vrot.slane %v314, %v327
      %v329 = vmul.f32 %v311, %v328
      %331 = vrot.lane.b32.xlu0 %v329, 4
      %v332 = vpop.permute.xlu0 %331
      %v334 = vadd.f32 %v324, %v332
      %v335 = vlaneseq
      %v336 = vshrl.u32 %v335, 7
      %v337 = vsub.s32 4, %v336
      %v338 = vrot.slane %v315, %v337
      %340 = vrot.lane.b32.xlu0 %v338, 4
      %v341 = vpop.permute.xlu0 %340
      %v343 = vmul.f32 %v311, %v341
      %v345 = vrot.slane %v343, 7
      %v347 = vadd.f32 %v334, %v345
      %v348 = vlaneseq
      %v349 = vshrl.u32 %v348, 7
      %v350 = vsub.s32 5, %v349
      %v351 = vrot.slane %v315, %v350
      %v352 = vmul.f32 %v311, %v351
      %v354 = vrot.slane %v352, 7
      %355 = vrot.lane.b32.xlu0 %v354, 4
      %v356 = vpop.permute.xlu0 %355
      %v358 = vadd.f32 %v347, %v356
      %360 = vrot.lane.b32.xlu0 %v358, 124
      %v361 = vpop.permute.xlu0 %360
      %vm363 = vcmask 126977
      %364 = vst.msk [vmem:[%s231 - $0x1] sm:$0x1e] %vm363, %v361
      %v365 = vlaneseq
      %v366 = vshrl.u32 %v365, 7
      %v367 = vsub.s32 6, %v366
      %v368 = vrot.slane %v314, %v367
      %370 = vrot.lane.b32.xlu0 %v368, 4
      %v371 = vpop.permute.xlu0 %370
      %v373 = vmul.f32 %v311, %v371
      %v374 = vlaneseq
      %v375 = vshrl.u32 %v374, 7
      %v376 = vsub.s32 7, %v375
      %v377 = vrot.slane %v314, %v376
      %v378 = vmul.f32 %v311, %v377
      %380 = vrot.lane.b32.xlu0 %v378, 4
      %v381 = vpop.permute.xlu0 %380
      %v383 = vadd.f32 %v373, %v381
      %v384 = vlaneseq
      %v385 = vshrl.u32 %v384, 7
      %v386 = vsub.s32 6, %v385
      %v387 = vrot.slane %v315, %v386
      %389 = vrot.lane.b32.xlu0 %v387, 4
      %v390 = vpop.permute.xlu0 %389
      %v392 = vmul.f32 %v311, %v390
      %v394 = vrot.slane %v392, 7
      %v396 = vadd.f32 %v383, %v394
      %v397 = vlaneseq
      %v398 = vshrl.u32 %v397, 7
      %v399 = vsub.s32 7, %v398
      %v400 = vrot.slane %v315, %v399
      %v401 = vmul.f32 %v311, %v400
      %v403 = vrot.slane %v401, 7
      %404 = vrot.lane.b32.xlu0 %v403, 4
      %v405 = vpop.permute.xlu0 %404
      %v407 = vadd.f32 %v396, %v405
      %409 = vrot.lane.b32.xlu0 %v407, 12
      %v410 = vpop.permute.xlu0 %409
      %vm412 = vcmask 258177
      %413 = vst.msk [vmem:[%s231 - $0x1] sm:$0x1e] %vm412, %v410
      %v414 = vlaneseq
      %v415 = vshrl.u32 %v414, 7
      %v416 = vsub.s32 0, %v415
      %v417 = vrot.slane %v314, %v416
      %419 = vrot.lane.b32.xlu0 %v417, 4
      %v420 = vpop.permute.xlu0 %419
      %v422 = vmul.f32 %v311, %v420
      %v423 = vlaneseq
      %v424 = vshrl.u32 %v423, 7
      %v425 = vsub.s32 1, %v424
      %v426 = vrot.slane %v314, %v425
      %v427 = vmul.f32 %v311, %v426
      %429 = vrot.lane.b32.xlu0 %v427, 4
      %v430 = vpop.permute.xlu0 %429
      %v432 = vadd.f32 %v422, %v430
      %v433 = vlaneseq
      %v434 = vshrl.u32 %v433, 7
      %v435 = vsub.s32 0, %v434
      %v436 = vrot.slane %v315, %v435
      %438 = vrot.lane.b32.xlu0 %v436, 4
      %v439 = vpop.permute.xlu0 %438
      %v441 = vmul.f32 %v311, %v439
      %v443 = vrot.slane %v441, 7
      %v445 = vadd.f32 %v432, %v443
      %v446 = vlaneseq
      %v447 = vshrl.u32 %v446, 7
      %v448 = vsub.s32 1, %v447
      %v449 = vrot.slane %v315, %v448
      %v450 = vmul.f32 %v311, %v449
      %v452 = vrot.slane %v450, 7
      %453 = vrot.lane.b32.xlu0 %v452, 4
      %v454 = vpop.permute.xlu0 %453
      %v456 = vadd.f32 %v445, %v454
      %458 = vrot.lane.b32.xlu0 %v456, 28
      %v459 = vpop.permute.xlu0 %458
      %vm461 = vcmask 390402
      %462 = vst.msk [vmem:[%s231 - $0x2] sm:$0x3c] %vm461, %v459
      %v463 = vlaneseq
      %v464 = vshrl.u32 %v463, 7
      %v465 = vsub.s32 2, %v464
      %v466 = vrot.slane %v314, %v465
      %468 = vrot.lane.b32.xlu0 %v466, 4
      %v469 = vpop.permute.xlu0 %468
      %v471 = vmul.f32 %v311, %v469
      %v472 = vlaneseq
      %v473 = vshrl.u32 %v472, 7
      %v474 = vsub.s32 3, %v473
      %v475 = vrot.slane %v314, %v474
      %v476 = vmul.f32 %v311, %v475
      %478 = vrot.lane.b32.xlu0 %v476, 4
      %v479 = vpop.permute.xlu0 %478
      %v481 = vadd.f32 %v471, %v479
      %v482 = vlaneseq
      %v483 = vshrl.u32 %v482, 7
      %v484 = vsub.s32 2, %v483
      %v485 = vrot.slane %v315, %v484
      %487 = vrot.lane.b32.xlu0 %v485, 4
      %v488 = vpop.permute.xlu0 %487
      %v490 = vmul.f32 %v311, %v488
      %v492 = vrot.slane %v490, 7
      %v494 = vadd.f32 %v481, %v492
      %v495 = vlaneseq
      %v496 = vshrl.u32 %v495, 7
      %v497 = vsub.s32 3, %v496
      %v498 = vrot.slane %v315, %v497
      %v499 = vmul.f32 %v311, %v498
      %v501 = vrot.slane %v499, 7
      %502 = vrot.lane.b32.xlu0 %v501, 4
      %v503 = vpop.permute.xlu0 %502
      %v505 = vadd.f32 %v494, %v503
      %507 = vrot.lane.b32.xlu0 %v505, 44
      %v508 = vpop.permute.xlu0 %507
      %vm510 = vcmask 521602
      %511 = vst.msk [vmem:[%s231 - $0x2] sm:$0x3c] %vm510, %v508
      %p512 = scmp.lt.s32.totalorder %s19, 1
      %s513 = scalar_select %p512, %s19, 1
      %p514 = scmp.lt.s32.totalorder %s20, 0
      %s515 = scalar_select %p514, %s20, 0
      %p516 = scmp.lt.s32.totalorder %s21, 0
      %s517 = scalar_select %p516, %s21, 0
      %s518 = sadd.s32 %s517, %s515
      %s519 = sadd.s32 %s518, %s513
      %s520 = smul.addr %s519, 4
      %s521 = scalar_lea.vmem %s3, %s520
      // Predicated region
      $region33: #{casenet_forward.10} parent=31 // pred_check
        %p522 = pneg %p130
      $region34: #{casenet_forward.10} parent=31 // pred_check_branch
        %524 = sbr.rel (%p522) target = $region36
      $region35: #{casenet_forward.10} parent=31 // pred_region
        _
      $region36: #{casenet_forward.10} parent=31 // pred_fallthru
        _
    $region32: #{casenet_forward.10} parent=5 // pred_fallthru
      _
    %p525 = scmp.le.s32.totalorder 2, %s9
    // Predicated region
    $region37: #{casenet_forward.10} parent=5 // pred_check
      %p526 = pneg %p525
    $region38: #{casenet_forward.10} parent=5 // pred_check_branch
      %528 = sbr.rel (%p526) target = $region40
    $region39: #{casenet_forward.10} parent=5 // pred_region
      %s529 = ssub.s32 %s9, 2
      // Predicated region
      $region41: #{casenet_forward.10} parent=39 // pred_check
        %p530 = pneg %p136
      $region42: #{casenet_forward.10} parent=39 // pred_check_branch
        %532 = sbr.rel (%p530) target = $region44
      $region43: #{casenet_forward.10} parent=39 // pred_region
        %p533 = scmp.lt.s32.totalorder %s22, 1
        %s534 = scalar_select %p533, %s22, 1
        %p535 = scmp.lt.s32.totalorder %s23, 0
        %s536 = scalar_select %p535, %s23, 0
        %p537 = scmp.lt.s32.totalorder %s24, 0
        %s538 = scalar_select %p537, %s24, 0
        %s539 = sadd.s32 %s538, %s536
        %s540 = sadd.s32 %s539, %s534
        %s541 = smul.addr %s540, 4
        %s542 = scalar_lea.vmem %s3, %s541
      $region44: #{casenet_forward.10} parent=39 // pred_fallthru
        _
    $region40: #{casenet_forward.10} parent=5 // pred_fallthru
      _
  $region6: #{casenet_forward.10} parent=0 // loop_footer
    %s13 = sadd.s32 1, %s9
  $region7: #{casenet_forward.10} parent=0 // loop_footer_branch
    %8 = sbr.rel target = $region3
  $region8: #{casenet_forward.10} parent=0 // loop_exit
    _

// kernel: casenet_forward.11
$region0: #{casenet_forward.11}
  #allocation0 [shape = 'u32[]', space=smem, size = 0x4, offset = 0x4, fixed_abs, tag = 'smem constant byte address 0x4 - core index']
  #allocation1 [shape = 'u32[144,128]{1,0:T(1,128)}', space=vmem, size = 0x12000, scoped, tag = 'internal scratch']
  %s0 = inlined_call_operand.vmem [shape: f32[2,16,4], index: 0, kind: input, shape index: {}]
  %s1 = inlined_call_operand.vmem [shape: f32[20,16], index: 1, kind: input, shape index: {}]
  %s2 = inlined_call_operand.vmem [shape: f32[20,1], index: 2, kind: input, shape index: {}]
  %s3 = inlined_call_operand.vmem [shape: f32[2,20,4], index: 3, kind: output, shape index: {}]
  %s4 = sld [smem:[#allocation0]]
  $region45: #{casenet_forward.11} parent=0
    _
  %s6 = ssub.s32 1, %s4
  %s7 = scalar_select 0, %s6, %s4
  loop: start=0, step=1, limit=4
  $region2: #{casenet_forward.11} parent=0 // loop_pre_header
    _
  $region3: #{casenet_forward.11} parent=0 // loop_header
    %s9 = sphi 0, %s13
    %p10 = scmp.ge.s32.totalorder %s9, 4
    %s16 = sphi 0, %s28
    %s17 = sphi 0, %s24
    %s18 = sphi 0, %s16
    %s19 = sphi 0, %s17
    %s20 = sphi 0, %s18
    %s21 = sphi 0, %s19
    %s33 = sphi 0, %s35
    %s36 = sphi 0, %s33
    %s37 = sphi 0, %s36
    %s53 = sphi 0, %s37
    %s57 = sphi 0, %s57
    %s59 = sphi 0, %s57
    %s60 = sphi 0, %s59
    %s74 = sphi 0, %s60
    %s78 = sphi 0, %s78
    %s80 = sphi 0, %s78
    %s81 = sphi 0, %s80
    %s95 = sphi 0, %s81
    %s103 = sphi 0, %s105
    %s106 = sphi 0, %s103
    %s107 = sphi 0, %s106
    %s123 = sphi 0, %s107
  $region4: #{casenet_forward.11} parent=0 // loop_header_branch
    %12 = sbr.rel (%p10) target = $region8
  $region5: #{casenet_forward.11} parent=0 // loop_body
    %s14 = ssub.s32 %s9, 1
    %s15 = ssub.s32 %s9, 2
    %s22 = sadd.s32 1, %s17
    %p23 = scmp.ge.s32.totalorder %s22, 1
    %s24 = scalar_select %p23, 0, %s22
    %s25 = sadd.s32 1, %s16
    %s26 = scalar_select %p23, %s25, %s16
    %p27 = scmp.ge.s32.totalorder %s26, 2
    %s28 = scalar_select %p27, 0, %s26
    %s29 = ssub.s32 %s16, %s28
    %s30 = ssub.s32 %s17, %s24
    %s31 = sor.u32 %s29, %s30
    %p32 = scmp.eq.s32.totalorder %s31, 0
    %s34 = sadd.s32 %s33, 1
    %s35 = scalar_select %p32, %s33, %s34
    %p38 = pneg %p32
    %p39 = scmp.eq.s32.totalorder %s9, 1
    %p40 = por %p38, %p39
    %p41 = scmp.ne.s32.totalorder %s33, %s36
    %p42 = scmp.eq.s32.totalorder %s9, 0
    %p43 = por %p41, %p42
    %p44 = scmp.ne.s32.totalorder %s33, %s36
    %p45 = scmp.eq.s32.totalorder %s14, 1
    %p46 = por %p44, %p45
    %p47 = scmp.ne.s32.totalorder %s36, %s37
    %p48 = scmp.eq.s32.totalorder %s14, 0
    %p49 = por %p47, %p48
    %p50 = scmp.ne.s32.totalorder %s36, %s37
    %p51 = scmp.eq.s32.totalorder %s15, 1
    %p52 = por %p50, %p51
    %p54 = scmp.ne.s32.totalorder %s37, %s53
    %p55 = scmp.eq.s32.totalorder %s15, 0
    %p56 = por %p54, %p55
    %s58 = sadd.s32 %s57, 1
    %p61 = scmp.eq.s32.totalorder %s9, 1
    %p62 = scmp.ne.s32.totalorder %s57, %s59
    %p63 = scmp.eq.s32.totalorder %s9, 0
    %p64 = por %p62, %p63
    %p65 = scmp.ne.s32.totalorder %s57, %s59
    %p66 = scmp.eq.s32.totalorder %s14, 1
    %p67 = por %p65, %p66
    %p68 = scmp.ne.s32.totalorder %s59, %s60
    %p69 = scmp.eq.s32.totalorder %s14, 0
    %p70 = por %p68, %p69
    %p71 = scmp.ne.s32.totalorder %s59, %s60
    %p72 = scmp.eq.s32.totalorder %s15, 1
    %p73 = por %p71, %p72
    %p75 = scmp.ne.s32.totalorder %s60, %s74
    %p76 = scmp.eq.s32.totalorder %s15, 0
    %p77 = por %p75, %p76
    %s79 = sadd.s32 %s78, 1
    %p82 = scmp.eq.s32.totalorder %s9, 1
    %p83 = scmp.ne.s32.totalorder %s78, %s80
    %p84 = scmp.eq.s32.totalorder %s9, 0
    %p85 = por %p83, %p84
    %p86 = scmp.ne.s32.totalorder %s78, %s80
    %p87 = scmp.eq.s32.totalorder %s14, 1
    %p88 = por %p86, %p87
    %p89 = scmp.ne.s32.totalorder %s80, %s81
    %p90 = scmp.eq.s32.totalorder %s14, 0
    %p91 = por %p89, %p90
    %p92 = scmp.ne.s32.totalorder %s80, %s81
    %p93 = scmp.eq.s32.totalorder %s15, 1
    %p94 = por %p92, %p93
    %p96 = scmp.ne.s32.totalorder %s81, %s95
    %p97 = scmp.eq.s32.totalorder %s15, 0
    %p98 = por %p96, %p97
    %s99 = ssub.s32 %s16, %s28
    %s100 = ssub.s32 %s17, %s24
    %s101 = sor.u32 %s99, %s100
    %p102 = scmp.eq.s32.totalorder %s101, 0
    %s104 = sadd.s32 %s103, 1
    %s105 = scalar_select %p102, %s103, %s104
    %p108 = pneg %p102
    %p109 = scmp.eq.s32.totalorder %s9, 1
    %p110 = por %p108, %p109
    %p111 = scmp.ne.s32.totalorder %s103, %s106
    %p112 = scmp.eq.s32.totalorder %s9, 0
    %p113 = por %p111, %p112
    %p114 = scmp.ne.s32.totalorder %s103, %s106
    %p115 = scmp.eq.s32.totalorder %s14, 1
    %p116 = por %p114, %p115
    %p117 = scmp.ne.s32.totalorder %s106, %s107
    %p118 = scmp.eq.s32.totalorder %s14, 0
    %p119 = por %p117, %p118
    %p120 = scmp.ne.s32.totalorder %s106, %s107
    %p121 = scmp.eq.s32.totalorder %s15, 1
    %p122 = por %p120, %p121
    %p124 = scmp.ne.s32.totalorder %s107, %s123
    %p125 = scmp.eq.s32.totalorder %s15, 0
    %p126 = por %p124, %p125
    %p127 = scmp.le.s32.totalorder 1, %s9
    %p128 = scmp.lt.s32.totalorder %s9, 3
    %p129 = pnand %p127, %p128
    %p130 = pneg %p129
    // Predicated region
    $region9: #{casenet_forward.11} parent=5 // pred_check
      _
    $region10: #{casenet_forward.11} parent=5 // pred_check_branch
      %132 = sbr.rel (%p129) target = $region12
    $region11: #{casenet_forward.11} parent=5 // pred_region
      %s133 = ssub.s32 %s9, 1
      // Predicated region
      $region13: #{casenet_forward.11} parent=11 // pred_check
        %p134 = pneg %p70
      $region14: #{casenet_forward.11} parent=11 // pred_check_branch
        %136 = sbr.rel (%p134) target = $region16
      $region15: #{casenet_forward.11} parent=11 // pred_region
        _
      $region16: #{casenet_forward.11} parent=11 // pred_fallthru
        _
      // Predicated region
      $region17: #{casenet_forward.11} parent=11 // pred_check
        %p137 = pneg %p91
      $region18: #{casenet_forward.11} parent=11 // pred_check_branch
        %139 = sbr.rel (%p137) target = $region20
      $region19: #{casenet_forward.11} parent=11 // pred_region
        _
      $region20: #{casenet_forward.11} parent=11 // pred_fallthru
        _
    $region12: #{casenet_forward.11} parent=5 // pred_fallthru
      _
    %p140 = scmp.lt.s32.totalorder %s9, 2
    // Predicated region
    $region21: #{casenet_forward.11} parent=5 // pred_check
      %p141 = pneg %p140
    $region22: #{casenet_forward.11} parent=5 // pred_check_branch
      %143 = sbr.rel (%p141) target = $region24
    $region23: #{casenet_forward.11} parent=5 // pred_region
      // Predicated region
      $region25: #{casenet_forward.11} parent=23 // pred_check
        %p144 = pneg %p43
      $region26: #{casenet_forward.11} parent=23 // pred_check_branch
        %146 = sbr.rel (%p144) target = $region28
      $region27: #{casenet_forward.11} parent=23 // pred_region
        %p147 = scmp.lt.s32.totalorder %s16, 1
        %s148 = scalar_select %p147, %s16, 1
        %p149 = scmp.lt.s32.totalorder %s17, 0
        %s150 = scalar_select %p149, %s17, 0
        %s151 = smul.addr %s148, 2
        %s152 = sadd.s32 %s150, %s151
        %s153 = smul.addr %s152, 8
        %s154 = scalar_lea.vmem %s0, %s153
      $region28: #{casenet_forward.11} parent=23 // pred_fallthru
        _
    $region24: #{casenet_forward.11} parent=5 // pred_fallthru
      _
    %p155 = scmp.le.s32.totalorder 1, %s9
    %p156 = scmp.lt.s32.totalorder %s9, 3
    %p157 = pnand %p155, %p156
    %p158 = pneg %p157
    // Predicated region
    $region29: #{casenet_forward.11} parent=5 // pred_check
      _
    $region30: #{casenet_forward.11} parent=5 // pred_check_branch
      %160 = sbr.rel (%p157) target = $region32
    $region31: #{casenet_forward.11} parent=5 // pred_region
      %s161 = ssub.s32 %s9, 1
      %p162 = scmp.lt.s32.totalorder %s18, 1
      %s163 = scalar_select %p162, %s18, 1
      %p164 = scmp.lt.s32.totalorder %s19, 0
      %s165 = scalar_select %p164, %s19, 0
      %s166 = smul.addr %s163, 2
      %s167 = sadd.s32 %s165, %s166
      %s168 = smul.addr %s167, 8
      %s169 = scalar_lea.vmem %s0, %s168
      %p170 = pneg %p49
      %p171 = pneg %p46
      %p172 = pneg %p70
      %p173 = pneg %p67
      %p174 = pneg %p91
      %p175 = pneg %p88
      %p176 = pneg %p119
      %p177 = pneg %p116
      %p178 = scmp.lt.s32.totalorder %s18, 1
      %s179 = scalar_select %p178, %s18, 1
      %p180 = scmp.lt.s32.totalorder %s19, 0
      %s181 = scalar_select %p180, %s19, 0
      %s182 = smul.addr %s179, 3
      %s183 = sadd.s32 %s181, %s182
      %s184 = smul.addr %s183, 8
      %s185 = scalar_lea.vmem %s3, %s184
      %p186 = scmp.lt.s32.totalorder %s18, 1
      %s187 = scalar_select %p186, %s18, 1
      %p188 = scmp.lt.s32.totalorder %s19, 0
      %s189 = scalar_select %p188, %s19, 0
      %s190 = smul.addr %s187, 2
      %s191 = sadd.s32 %s189, %s190
      %s192 = smul.addr %s191, 8
      %s193 = scalar_lea.vmem %s0, %s192
      %p194 = scmp.lt.s32.totalorder %s18, 1
      %s195 = scalar_select %p194, %s18, 1
      %p196 = scmp.lt.s32.totalorder %s19, 0
      %s197 = scalar_select %p196, %s19, 0
      %s198 = smul.addr %s195, 3
      %s199 = sadd.s32 %s197, %s198
      %s200 = smul.addr %s199, 8
      %s201 = scalar_lea.vmem %s3, %s200
      %v202 = vld [vmem:[%s193] sm:$0xff]
      %v203 = vld [vmem:[%s193 + $0x8] sm:$0xff]
      %v204 = vld [vmem:[%s1] sm:$0xff]
      %v205 = vld [vmem:[%s1 + $0x8] sm:$0xff]
      %v206 = vld [vmem:[%s1 + $0x10] sm:$0xf]
      %v207 = vld [vmem:[%s2] sm:$0xff]
      %v208 = vld [vmem:[%s2 + $0x8] sm:$0xff]
      %v209 = vld [vmem:[%s2 + $0x10] sm:$0xf]
      %211 = vset.pattern.permute.xlu0 0
      %212 = vperm.xlu0 %211, %v207
      %v213 = vpop.permute.xlu0 %212
      %216 = vset.pattern.permute.xlu0 0
      %217 = vperm.xlu0 %216, %v208
      %v218 = vpop.permute.xlu0 %217
      %221 = vset.pattern.permute.xlu0 0
      %222 = vperm.xlu0 %221, %v209
      %v223 = vpop.permute.xlu0 %222
      %vm225 = vcmask 130048
      %v227 = vsel %vm225, %v204, 0
      %v230 = vsel %vm225, %v205, 0
      %v233 = vsel %vm225, %v206, 0
      %235 = vmatprep.subr.mxu0 0.0
      %236 = vmatpush1.msra.mxu0 %v202
      %237 = vmatprep.subr.mxu0 0.0
      %238 = vmatpush1.msra.mxu0 %v203
      %239 = vmatprep.subr.mxu0 0.0
      %240 = vmatpush1.msra.mxu0 0.0
      %241 = vmatprep.subr.mxu0 0.0
      %242 = vmatpush1.msra.mxu0 0.0
      %243 = vmatprep.subr.mxu0 0.0
      %244 = vmatpush1.msra.mxu0 0.0
      %245 = vmatprep.subr.mxu0 0.0
      %246 = vmatpush1.msra.mxu0 0.0
      %247 = vmatprep.subr.mxu0 0.0
      %248 = vmatpush1.msra.mxu0 0.0
      %249 = vmatprep.subr.mxu0 0.0
      %250 = vmatpush1.msra.mxu0 0.0
      %251 = vmatprep.subr.mxu0 0.0
      %252 = vmatpush1.msra.mxu0 0.0
      %253 = vmatprep.subr.mxu0 0.0
      %254 = vmatpush1.msra.mxu0 0.0
      %255 = vmatprep.subr.mxu0 0.0
      %256 = vmatpush1.msra.mxu0 0.0
      %257 = vmatprep.subr.mxu0 0.0
      %258 = vmatpush1.msra.mxu0 0.0
      %259 = vmatprep.subr.mxu0 0.0
      %260 = vmatpush1.msra.mxu0 0.0
      %261 = vmatprep.subr.mxu0 0.0
      %262 = vmatpush1.msra.mxu0 0.0
      %263 = vmatprep.subr.mxu0 0.0
      %264 = vmatpush1.msra.mxu0 0.0
      %265 = vmatprep.subr.mxu0 0.0
      %266 = vmatpush1.msra.mxu0 0.0
      %267 = vmatprep.subr.mxu0 0.0
      %268 = vmatpush1.msra.mxu0 0.0
      %269 = vmatprep.subr.mxu0 0.0
      %270 = vmatpush1.msra.mxu0 0.0
      %271 = vmatprep.subr.mxu0 0.0
      %272 = vmatpush1.msra.mxu0 0.0
      %273 = vmatprep.subr.mxu0 0.0
      %274 = vmatpush1.msra.mxu0 0.0
      %275 = vmatprep.subr.mxu0 0.0
      %276 = vmatpush1.msra.mxu0 0.0
      %277 = vmatprep.subr.mxu0 0.0
      %278 = vmatpush1.msra.mxu0 0.0
      %279 = vmatprep.subr.mxu0 0.0
      %280 = vmatpush1.msra.mxu0 0.0
      %281 = vmatprep.subr.mxu0 0.0
      %282 = vmatpush1.msra.mxu0 0.0
      %283 = vmatprep.subr.mxu0 0.0
      %284 = vmatpush1.msra.mxu0 0.0
      %285 = vmatprep.subr.mxu0 0.0
      %286 = vmatpush1.msra.mxu0 0.0
      %287 = vmatprep.subr.mxu0 0.0
      %288 = vmatpush1.msra.mxu0 0.0
      %289 = vmatprep.subr.mxu0 0.0
      %290 = vmatpush1.msra.mxu0 0.0
      %291 = vmatprep.subr.mxu0 0.0
      %292 = vmatpush1.msra.mxu0 0.0
      %293 = vmatprep.subr.mxu0 0.0
      %294 = vmatpush1.msra.mxu0 0.0
      %295 = vmatprep.subr.mxu0 0.0
      %296 = vmatpush1.msra.mxu0 0.0
      %297 = vmatprep.subr.mxu0 0.0
      %298 = vmatpush1.msra.mxu0 0.0
      %299 = vmatprep.mubr.f32.mxu0 0.0
      %300 = vmatmul.mubr.f32.gmra.mrb[0].mxu0 %v227
      %v301 = vpop.f32.mrb[0].mxu0
      %v302 = vadd.f32 %v213, %v301
      %v303 = vpop.f32.mrb[0].mxu0
      %304 = vmatprep.mubr.f32.mxu0 0.0
      %305 = vmatmul.mubr.f32.gmra.mrb[0].mxu0 %v230
      %v306 = vpop.f32.mrb[0].mxu0
      %v307 = vadd.f32 %v218, %v306
      %v308 = vpop.f32.mrb[0].mxu0
      %309 = vmatprep.mubr.f32.mxu0 0.0
      %310 = vmatmul.mubr.f32.gmra.mrb[0].mxu0 %v233
      %v311 = vpop.f32.mrb[0].mxu0
      %v312 = vadd.f32 %v223, %v311
      %v313 = vpop.f32.mrb[0].mxu0
      %314 = vdwg.mxu0
      %vm315 = vcmask 31744
      %316 = vst.msk [vmem:[%s201] sm:$0xff] %vm315, %v302
      %317 = vst.msk [vmem:[%s201 + $0x8] sm:$0xff] %vm315, %v307
      %vm318 = vcmask 27648
      %319 = vst.msk [vmem:[%s201 + $0x10] sm:$0xf] %vm318, %v312
      %p320 = scmp.lt.s32.totalorder %s18, 1
      %s321 = scalar_select %p320, %s18, 1
      %p322 = scmp.lt.s32.totalorder %s19, 0
      %s323 = scalar_select %p322, %s19, 0
      %s324 = smul.addr %s321, 3
      %s325 = sadd.s32 %s323, %s324
      %s326 = smul.addr %s325, 8
      %s327 = scalar_lea.vmem %s3, %s326
      // Predicated region
      $region33: #{casenet_forward.11} parent=31 // pred_check
        %p328 = pneg %p116
      $region34: #{casenet_forward.11} parent=31 // pred_check_branch
        %330 = sbr.rel (%p328) target = $region36
      $region35: #{casenet_forward.11} parent=31 // pred_region
        _
      $region36: #{casenet_forward.11} parent=31 // pred_fallthru
        _
    $region32: #{casenet_forward.11} parent=5 // pred_fallthru
      _
    %p331 = scmp.le.s32.totalorder 2, %s9
    // Predicated region
    $region37: #{casenet_forward.11} parent=5 // pred_check
      %p332 = pneg %p331
    $region38: #{casenet_forward.11} parent=5 // pred_check_branch
      %334 = sbr.rel (%p332) target = $region40
    $region39: #{casenet_forward.11} parent=5 // pred_region
      %s335 = ssub.s32 %s9, 2
      // Predicated region
      $region41: #{casenet_forward.11} parent=39 // pred_check
        %p336 = pneg %p122
      $region42: #{casenet_forward.11} parent=39 // pred_check_branch
        %338 = sbr.rel (%p336) target = $region44
      $region43: #{casenet_forward.11} parent=39 // pred_region
        %p339 = scmp.lt.s32.totalorder %s20, 1
        %s340 = scalar_select %p339, %s20, 1
        %p341 = scmp.lt.s32.totalorder %s21, 0
        %s342 = scalar_select %p341, %s21, 0
        %s343 = smul.addr %s340, 3
        %s344 = sadd.s32 %s342, %s343
        %s345 = smul.addr %s344, 8
        %s346 = scalar_lea.vmem %s3, %s345
      $region44: #{casenet_forward.11} parent=39 // pred_fallthru
        _
    $region40: #{casenet_forward.11} parent=5 // pred_fallthru
      _
  $region6: #{casenet_forward.11} parent=0 // loop_footer
    %s13 = sadd.s32 1, %s9
  $region7: #{casenet_forward.11} parent=0 // loop_footer_branch
    %8 = sbr.rel target = $region3
  $region8: #{casenet_forward.11} parent=0 // loop_exit
    _

// kernel: casenet_forward.12
$region0: #{casenet_forward.12}
  #allocation0 [shape = 'u32[]', space=smem, size = 0x4, offset = 0x4, fixed_abs, tag = 'smem constant byte address 0x4 - core index']
  #allocation1 [shape = 'u32[144,128]{1,0:T(1,128)}', space=vmem, size = 0x12000, scoped, tag = 'internal scratch']
  %s0 = inlined_call_operand.vmem [shape: f32[2,20,4,4], index: 0, kind: input, shape index: {}]
  %s1 = inlined_call_operand.vmem [shape: f32[4,24], index: 1, kind: input, shape index: {}]
  %s2 = inlined_call_operand.vmem [shape: f32[20,32,16], index: 2, kind: input, shape index: {}]
  %s3 = inlined_call_operand.vmem [shape: f32[2,20,2,128], index: 3, kind: output, shape index: {}]
  %s4 = sld [smem:[#allocation0]]
  $region45: #{casenet_forward.12} parent=0
    _
  %s6 = ssub.s32 1, %s4
  %s7 = scalar_select 0, %s6, %s4
  loop: start=0, step=1, limit=42
  $region2: #{casenet_forward.12} parent=0 // loop_pre_header
    _
  $region3: #{casenet_forward.12} parent=0 // loop_header
    %s9 = sphi 0, %s13
    %p10 = scmp.ge.s32.totalorder %s9, 42
    %s16 = sphi 0, %s35
    %s17 = sphi 0, %s31
    %s18 = sphi 0, %s27
    %s19 = sphi 0, %s16
    %s20 = sphi 0, %s17
    %s21 = sphi 0, %s18
    %s22 = sphi 0, %s19
    %s23 = sphi 0, %s20
    %s24 = sphi 0, %s21
    %s40 = sphi 0, %s42
    %s43 = sphi 0, %s40
    %s44 = sphi 0, %s43
    %s60 = sphi 0, %s44
    %s64 = sphi 0, %s64
    %s66 = sphi 0, %s64
    %s67 = sphi 0, %s66
    %s81 = sphi 0, %s67
    %s87 = sphi 0, %s89
    %s90 = sphi 0, %s87
    %s91 = sphi 0, %s90
    %s107 = sphi 0, %s91
    %s117 = sphi 0, %s119
    %s120 = sphi 0, %s117
    %s121 = sphi 0, %s120
    %s137 = sphi 0, %s121
  $region4: #{casenet_forward.12} parent=0 // loop_header_branch
    %12 = sbr.rel (%p10) target = $region8
  $region5: #{casenet_forward.12} parent=0 // loop_body
    %s14 = ssub.s32 %s9, 1
    %s15 = ssub.s32 %s9, 2
    %s25 = sadd.s32 1, %s18
    %p26 = scmp.ge.s32.totalorder %s25, 1
    %s27 = scalar_select %p26, 0, %s25
    %s28 = sadd.s32 1, %s17
    %s29 = scalar_select %p26, %s28, %s17
    %p30 = scmp.ge.s32.totalorder %s29, 20
    %s31 = scalar_select %p30, 0, %s29
    %s32 = sadd.s32 1, %s16
    %s33 = scalar_select %p30, %s32, %s16
    %p34 = scmp.ge.s32.totalorder %s33, 2
    %s35 = scalar_select %p34, 0, %s33
    %s36 = ssub.s32 %s16, %s35
    %s37 = ssub.s32 %s17, %s31
    %s38 = sor.u32 %s36, %s37
    %p39 = scmp.eq.s32.totalorder %s38, 0
    %s41 = sadd.s32 %s40, 1
    %s42 = scalar_select %p39, %s40, %s41
    %p45 = pneg %p39
    %p46 = scmp.eq.s32.totalorder %s9, 39
    %p47 = por %p45, %p46
    %p48 = scmp.ne.s32.totalorder %s40, %s43
    %p49 = scmp.eq.s32.totalorder %s9, 0
    %p50 = por %p48, %p49
    %p51 = scmp.ne.s32.totalorder %s40, %s43
    %p52 = scmp.eq.s32.totalorder %s14, 39
    %p53 = por %p51, %p52
    %p54 = scmp.ne.s32.totalorder %s43, %s44
    %p55 = scmp.eq.s32.totalorder %s14, 0
    %p56 = por %p54, %p55
    %p57 = scmp.ne.s32.totalorder %s43, %s44
    %p58 = scmp.eq.s32.totalorder %s15, 39
    %p59 = por %p57, %p58
    %p61 = scmp.ne.s32.totalorder %s44, %s60
    %p62 = scmp.eq.s32.totalorder %s15, 0
    %p63 = por %p61, %p62
    %s65 = sadd.s32 %s64, 1
    %p68 = scmp.eq.s32.totalorder %s9, 39
    %p69 = scmp.ne.s32.totalorder %s64, %s66
    %p70 = scmp.eq.s32.totalorder %s9, 0
    %p71 = por %p69, %p70
    %p72 = scmp.ne.s32.totalorder %s64, %s66
    %p73 = scmp.eq.s32.totalorder %s14, 39
    %p74 = por %p72, %p73
    %p75 = scmp.ne.s32.totalorder %s66, %s67
    %p76 = scmp.eq.s32.totalorder %s14, 0
    %p77 = por %p75, %p76
    %p78 = scmp.ne.s32.totalorder %s66, %s67
    %p79 = scmp.eq.s32.totalorder %s15, 39
    %p80 = por %p78, %p79
    %p82 = scmp.ne.s32.totalorder %s67, %s81
    %p83 = scmp.eq.s32.totalorder %s15, 0
    %p84 = por %p82, %p83
    %s85 = ssub.s32 %s17, %s31
    %p86 = scmp.eq.s32.totalorder %s85, 0
    %s88 = sadd.s32 %s87, 1
    %s89 = scalar_select %p86, %s87, %s88
    %p92 = pneg %p86
    %p93 = scmp.eq.s32.totalorder %s9, 39
    %p94 = por %p92, %p93
    %p95 = scmp.ne.s32.totalorder %s87, %s90
    %p96 = scmp.eq.s32.totalorder %s9, 0
    %p97 = por %p95, %p96
    %p98 = scmp.ne.s32.totalorder %s87, %s90
    %p99 = scmp.eq.s32.totalorder %s14, 39
    %p100 = por %p98, %p99
    %p101 = scmp.ne.s32.totalorder %s90, %s91
    %p102 = scmp.eq.s32.totalorder %s14, 0
    %p103 = por %p101, %p102
    %p104 = scmp.ne.s32.totalorder %s90, %s91
    %p105 = scmp.eq.s32.totalorder %s15, 39
    %p106 = por %p104, %p105
    %p108 = scmp.ne.s32.totalorder %s91, %s107
    %p109 = scmp.eq.s32.totalorder %s15, 0
    %p110 = por %p108, %p109
    %s111 = ssub.s32 %s16, %s35
    %s112 = ssub.s32 %s17, %s31
    %s113 = sor.u32 %s111, %s112
    %s114 = ssub.s32 %s18, %s27
    %s115 = sor.u32 %s113, %s114
    %p116 = scmp.eq.s32.totalorder %s115, 0
    %s118 = sadd.s32 %s117, 1
    %s119 = scalar_select %p116, %s117, %s118
    %p122 = pneg %p116
    %p123 = scmp.eq.s32.totalorder %s9, 39
    %p124 = por %p122, %p123
    %p125 = scmp.ne.s32.totalorder %s117, %s120
    %p126 = scmp.eq.s32.totalorder %s9, 0
    %p127 = por %p125, %p126
    %p128 = scmp.ne.s32.totalorder %s117, %s120
    %p129 = scmp.eq.s32.totalorder %s14, 39
    %p130 = por %p128, %p129
    %p131 = scmp.ne.s32.totalorder %s120, %s121
    %p132 = scmp.eq.s32.totalorder %s14, 0
    %p133 = por %p131, %p132
    %p134 = scmp.ne.s32.totalorder %s120, %s121
    %p135 = scmp.eq.s32.totalorder %s15, 39
    %p136 = por %p134, %p135
    %p138 = scmp.ne.s32.totalorder %s121, %s137
    %p139 = scmp.eq.s32.totalorder %s15, 0
    %p140 = por %p138, %p139
    %p141 = scmp.le.s32.totalorder 1, %s9
    %p142 = scmp.lt.s32.totalorder %s9, 41
    %p143 = pnand %p141, %p142
    %p144 = pneg %p143
    // Predicated region
    $region9: #{casenet_forward.12} parent=5 // pred_check
      _
    $region10: #{casenet_forward.12} parent=5 // pred_check_branch
      %146 = sbr.rel (%p143) target = $region12
    $region11: #{casenet_forward.12} parent=5 // pred_region
      %s147 = ssub.s32 %s9, 1
      // Predicated region
      $region13: #{casenet_forward.12} parent=11 // pred_check
        %p148 = pneg %p77
      $region14: #{casenet_forward.12} parent=11 // pred_check_branch
        %150 = sbr.rel (%p148) target = $region16
      $region15: #{casenet_forward.12} parent=11 // pred_region
        _
      $region16: #{casenet_forward.12} parent=11 // pred_fallthru
        _
    $region12: #{casenet_forward.12} parent=5 // pred_fallthru
      _
    %p151 = scmp.lt.s32.totalorder %s9, 40
    // Predicated region
    $region17: #{casenet_forward.12} parent=5 // pred_check
      %p152 = pneg %p151
    $region18: #{casenet_forward.12} parent=5 // pred_check_branch
      %154 = sbr.rel (%p152) target = $region20
    $region19: #{casenet_forward.12} parent=5 // pred_region
      // Predicated region
      $region21: #{casenet_forward.12} parent=19 // pred_check
        %p155 = pneg %p50
      $region22: #{casenet_forward.12} parent=19 // pred_check_branch
        %157 = sbr.rel (%p155) target = $region24
      $region23: #{casenet_forward.12} parent=19 // pred_region
        %p158 = scmp.lt.s32.totalorder %s16, 1
        %s159 = scalar_select %p158, %s16, 1
        %p160 = scmp.lt.s32.totalorder %s17, 19
        %s161 = scalar_select %p160, %s17, 19
        %s162 = smul.addr %s159, 20
        %s163 = sadd.s32 %s161, %s162
        %s164 = smul.addr %s163, 4
        %s165 = scalar_lea.vmem %s0, %s164
      $region24: #{casenet_forward.12} parent=19 // pred_fallthru
        _
      // Predicated region
      $region25: #{casenet_forward.12} parent=19 // pred_check
        %p166 = pneg %p97
      $region26: #{casenet_forward.12} parent=19 // pred_check_branch
        %168 = sbr.rel (%p166) target = $region28
      $region27: #{casenet_forward.12} parent=19 // pred_region
        %p169 = scmp.lt.s32.totalorder %s17, 19
        %s170 = scalar_select %p169, %s17, 19
        %s171 = smul.addr %s170, 4
        %s172 = smul.addr %s171, 8
        %s173 = scalar_lea.vmem %s2, %s172
      $region28: #{casenet_forward.12} parent=19 // pred_fallthru
        _
    $region20: #{casenet_forward.12} parent=5 // pred_fallthru
      _
    %p174 = scmp.le.s32.totalorder 1, %s9
    %p175 = scmp.lt.s32.totalorder %s9, 41
    %p176 = pnand %p174, %p175
    %p177 = pneg %p176
    // Predicated region
    $region29: #{casenet_forward.12} parent=5 // pred_check
      _
    $region30: #{casenet_forward.12} parent=5 // pred_check_branch
      %179 = sbr.rel (%p176) target = $region32
    $region31: #{casenet_forward.12} parent=5 // pred_region
      %s180 = ssub.s32 %s9, 1
      %p181 = scmp.lt.s32.totalorder %s19, 1
      %s182 = scalar_select %p181, %s19, 1
      %p183 = scmp.lt.s32.totalorder %s20, 19
      %s184 = scalar_select %p183, %s20, 19
      %s185 = smul.addr %s182, 20
      %s186 = sadd.s32 %s184, %s185
      %s187 = smul.addr %s186, 4
      %s188 = scalar_lea.vmem %s0, %s187
      %p189 = pneg %p56
      %p190 = pneg %p53
      %p191 = pneg %p77
      %p192 = pneg %p74
      %p193 = scmp.lt.s32.totalorder %s20, 19
      %s194 = scalar_select %p193, %s20, 19
      %s195 = smul.addr %s194, 4
      %s196 = smul.addr %s195, 8
      %s197 = scalar_lea.vmem %s2, %s196
      %p198 = pneg %p103
      %p199 = pneg %p100
      %p200 = pneg %p133
      %p201 = pneg %p130
      %p202 = scmp.lt.s32.totalorder %s19, 1
      %s203 = scalar_select %p202, %s19, 1
      %p204 = scmp.lt.s32.totalorder %s20, 19
      %s205 = scalar_select %p204, %s20, 19
      %p206 = scmp.lt.s32.totalorder %s21, 0
      %s207 = scalar_select %p206, %s21, 0
      %s208 = sadd.s32 %s207, %s205
      %s209 = smul.addr %s203, 20
      %s210 = sadd.s32 %s208, %s209
      %s211 = smul.addr %s210, 2
      %s212 = scalar_lea.vmem %s3, %s211
      %p213 = scmp.lt.s32.totalorder %s19, 1
      %s214 = scalar_select %p213, %s19, 1
      %p215 = scmp.lt.s32.totalorder %s20, 19
      %s216 = scalar_select %p215, %s20, 19
      %s217 = smul.addr %s214, 20
      %s218 = sadd.s32 %s216, %s217
      %s219 = smul.addr %s218, 4
      %s220 = scalar_lea.vmem %s0, %s219
      %p221 = scmp.lt.s32.totalorder %s20, 19
      %s222 = scalar_select %p221, %s20, 19
      %s223 = smul.addr %s222, 4
      %s224 = smul.addr %s223, 8
      %s225 = scalar_lea.vmem %s2, %s224
      %p226 = scmp.lt.s32.totalorder %s19, 1
      %s227 = scalar_select %p226, %s19, 1
      %p228 = scmp.lt.s32.totalorder %s20, 19
      %s229 = scalar_select %p228, %s20, 19
      %p230 = scmp.lt.s32.totalorder %s21, 0
      %s231 = scalar_select %p230, %s21, 0
      %s232 = sadd.s32 %s231, %s229
      %s233 = smul.addr %s227, 20
      %s234 = sadd.s32 %s232, %s233
      %s235 = smul.addr %s234, 2
      %s236 = scalar_lea.vmem %s3, %s235
      %s237 = smul.u32 %s21, 2
      %s238 = scalar_lea.vmem %s220, %s237
      %v239 = vld [vmem:[%s238] sm:$0xf]
      %v240 = vld [vmem:[%s1] sm:$0xf]
      %vm241 = vcmask 31744
      %v243 = vsel %vm241, %v239, 0
      %vm245 = vcmask 1043456
      %v247 = vsel %vm245, %v240, 0
      %249 = vmatprep.subr.mxu0 0.0
      %250 = vmatpush1.msra.mxu0 %v247
      %251 = vmatprep.subr.mxu0 0.0
      %252 = vmatpush1.msra.mxu0 0.0
      %253 = vmatprep.subr.mxu0 0.0
      %254 = vmatpush1.msra.mxu0 0.0
      %255 = vmatprep.subr.mxu0 0.0
      %256 = vmatpush1.msra.mxu0 0.0
      %257 = vmatprep.subr.mxu0 0.0
      %258 = vmatpush1.msra.mxu0 0.0
      %259 = vmatprep.subr.mxu0 0.0
      %260 = vmatpush1.msra.mxu0 0.0
      %261 = vmatprep.subr.mxu0 0.0
      %262 = vmatpush1.msra.mxu0 0.0
      %263 = vmatprep.subr.mxu0 0.0
      %264 = vmatpush1.msra.mxu0 0.0
      %265 = vmatprep.subr.mxu0 0.0
      %266 = vmatpush1.msra.mxu0 0.0
      %267 = vmatprep.subr.mxu0 0.0
      %268 = vmatpush1.msra.mxu0 0.0
      %269 = vmatprep.subr.mxu0 0.0
      %270 = vmatpush1.msra.mxu0 0.0
      %271 = vmatprep.subr.mxu0 0.0
      %272 = vmatpush1.msra.mxu0 0.0
      %273 = vmatprep.subr.mxu0 0.0
      %274 = vmatpush1.msra.mxu0 0.0
      %275 = vmatprep.subr.mxu0 0.0
      %276 = vmatpush1.msra.mxu0 0.0
      %277 = vmatprep.subr.mxu0 0.0
      %278 = vmatpush1.msra.mxu0 0.0
      %279 = vmatprep.subr.mxu0 0.0
      %280 = vmatpush1.msra.mxu0 0.0
      %281 = vmatprep.subr.mxu0 0.0
      %282 = vmatpush1.msra.mxu0 0.0
      %283 = vmatprep.subr.mxu0 0.0
      %284 = vmatpush1.msra.mxu0 0.0
      %285 = vmatprep.subr.mxu0 0.0
      %286 = vmatpush1.msra.mxu0 0.0
      %287 = vmatprep.subr.mxu0 0.0
      %288 = vmatpush1.msra.mxu0 0.0
      %289 = vmatprep.subr.mxu0 0.0
      %290 = vmatpush1.msra.mxu0 0.0
      %291 = vmatprep.subr.mxu0 0.0
      %292 = vmatpush1.msra.mxu0 0.0
      %293 = vmatprep.subr.mxu0 0.0
      %294 = vmatpush1.msra.mxu0 0.0
      %295 = vmatprep.subr.mxu0 0.0
      %296 = vmatpush1.msra.mxu0 0.0
      %297 = vmatprep.subr.mxu0 0.0
      %298 = vmatpush1.msra.mxu0 0.0
      %299 = vmatprep.subr.mxu0 0.0
      %300 = vmatpush1.msra.mxu0 0.0
      %301 = vmatprep.subr.mxu0 0.0
      %302 = vmatpush1.msra.mxu0 0.0
      %303 = vmatprep.subr.mxu0 0.0
      %304 = vmatpush1.msra.mxu0 0.0
      %305 = vmatprep.subr.mxu0 0.0
      %306 = vmatpush1.msra.mxu0 0.0
      %307 = vmatprep.subr.mxu0 0.0
      %308 = vmatpush1.msra.mxu0 0.0
      %309 = vmatprep.subr.mxu0 0.0
      %310 = vmatpush1.msra.mxu0 0.0
      %311 = vmatprep.subr.mxu0 0.0
      %312 = vmatpush1.msra.mxu0 0.0
      %313 = vmatprep.mubr.f32.mxu0 0.0
      %314 = vmatmul.mubr.f32.gmra.mrb[0].mxu0 %v243
      %v315 = vpop.f32.mrb[0].mxu0
      %v316 = vadd.f32 0.0, %v315
      %v317 = vpop.f32.mrb[0].mxu0
      %318 = vdwg.mxu0
      %v319 = vld [vmem:[%s225] sm:$0xff]
      %v320 = vld [vmem:[%s225 + $0x8] sm:$0xff]
      %v321 = vld [vmem:[%s225 + $0x10] sm:$0xff]
      %v322 = vld [vmem:[%s225 + $0x18] sm:$0xff]
      %v323 = vlaneseq
      %v324 = vshrl.u32 %v323, 7
      %v325 = vsub.s32 0, %v324
      %v326 = vrot.slane %v320, %v325
      %328 = vrot.lane.b32.xlu0 %v326, 8
      %v329 = vpop.permute.xlu0 %328
      %v331 = vmul.f32 %v316, %v329
      %v332 = vlaneseq
      %v333 = vshrl.u32 %v332, 7
      %v334 = vsub.s32 1, %v333
      %v335 = vrot.slane %v320, %v334
      %v336 = vmul.f32 %v316, %v335
      %338 = vrot.lane.b32.xlu0 %v336, 8
      %v339 = vpop.permute.xlu0 %338
      %v341 = vadd.f32 %v331, %v339
      %v342 = vlaneseq
      %v343 = vshrl.u32 %v342, 7
      %v344 = vsub.s32 0, %v343
      %v345 = vrot.slane %v322, %v344
      %347 = vrot.lane.b32.xlu0 %v345, 8
      %v348 = vpop.permute.xlu0 %347
      %v350 = vmul.f32 %v316, %v348
      %v352 = vrot.slane %v350, 7
      %v354 = vadd.f32 %v341, %v352
      %v355 = vlaneseq
      %v356 = vshrl.u32 %v355, 7
      %v357 = vsub.s32 1, %v356
      %v358 = vrot.slane %v322, %v357
      %v359 = vmul.f32 %v316, %v358
      %v361 = vrot.slane %v359, 7
      %362 = vrot.lane.b32.xlu0 %v361, 8
      %v363 = vpop.permute.xlu0 %362
      %v365 = vadd.f32 %v354, %v363
      %367 = vrot.lane.b32.xlu0 %v365, 120
      %v368 = vpop.permute.xlu0 %367
      %vm370 = vcmask 124929
      %371 = vst.msk [vmem:[%s236 - $0x1] sm:$0x6] %vm370, %v368
      %v372 = vlaneseq
      %v373 = vshrl.u32 %v372, 7
      %v374 = vsub.s32 2, %v373
      %v375 = vrot.slane %v320, %v374
      %377 = vrot.lane.b32.xlu0 %v375, 8
      %v378 = vpop.permute.xlu0 %377
      %v380 = vmul.f32 %v316, %v378
      %v381 = vlaneseq
      %v382 = vshrl.u32 %v381, 7
      %v383 = vsub.s32 3, %v382
      %v384 = vrot.slane %v320, %v383
      %v385 = vmul.f32 %v316, %v384
      %387 = vrot.lane.b32.xlu0 %v385, 8
      %v388 = vpop.permute.xlu0 %387
      %v390 = vadd.f32 %v380, %v388
      %v391 = vlaneseq
      %v392 = vshrl.u32 %v391, 7
      %v393 = vsub.s32 2, %v392
      %v394 = vrot.slane %v322, %v393
      %396 = vrot.lane.b32.xlu0 %v394, 8
      %v397 = vpop.permute.xlu0 %396
      %v399 = vmul.f32 %v316, %v397
      %v401 = vrot.slane %v399, 7
      %v403 = vadd.f32 %v390, %v401
      %v404 = vlaneseq
      %v405 = vshrl.u32 %v404, 7
      %v406 = vsub.s32 3, %v405
      %v407 = vrot.slane %v322, %v406
      %v408 = vmul.f32 %v316, %v407
      %v410 = vrot.slane %v408, 7
      %411 = vrot.lane.b32.xlu0 %v410, 8
      %v412 = vpop.permute.xlu0 %411
      %v414 = vadd.f32 %v403, %v412
      %416 = vrot.lane.b32.xlu0 %v414, 8
      %v417 = vpop.permute.xlu0 %416
      %vm419 = vcmask 256129
      %420 = vst.msk [vmem:[%s236 - $0x1] sm:$0x6] %vm419, %v417
      %v421 = vlaneseq
      %v422 = vshrl.u32 %v421, 7
      %v423 = vsub.s32 4, %v422
      %v424 = vrot.slane %v320, %v423
      %426 = vrot.lane.b32.xlu0 %v424, 8
      %v427 = vpop.permute.xlu0 %426
      %v429 = vmul.f32 %v316, %v427
      %v430 = vlaneseq
      %v431 = vshrl.u32 %v430, 7
      %v432 = vsub.s32 5, %v431
      %v433 = vrot.slane %v320, %v432
      %v434 = vmul.f32 %v316, %v433
      %436 = vrot.lane.b32.xlu0 %v434, 8
      %v437 = vpop.permute.xlu0 %436
      %v439 = vadd.f32 %v429, %v437
      %v440 = vlaneseq
      %v441 = vshrl.u32 %v440, 7
      %v442 = vsub.s32 4, %v441
      %v443 = vrot.slane %v322, %v442
      %445 = vrot.lane.b32.xlu0 %v443, 8
      %v446 = vpop.permute.xlu0 %445
      %v448 = vmul.f32 %v316, %v446
      %v450 = vrot.slane %v448, 7
      %v452 = vadd.f32 %v439, %v450
      %v453 = vlaneseq
      %v454 = vshrl.u32 %v453, 7
      %v455 = vsub.s32 5, %v454
      %v456 = vrot.slane %v322, %v455
      %v457 = vmul.f32 %v316, %v456
      %v459 = vrot.slane %v457, 7
      %460 = vrot.lane.b32.xlu0 %v459, 8
      %v461 = vpop.permute.xlu0 %460
      %v463 = vadd.f32 %v452, %v461
      %465 = vrot.lane.b32.xlu0 %v463, 24
      %v466 = vpop.permute.xlu0 %465
      %vm468 = vcmask 387329
      %469 = vst.msk [vmem:[%s236 - $0x1] sm:$0x6] %vm468, %v466
      %v470 = vlaneseq
      %v471 = vshrl.u32 %v470, 7
      %v472 = vsub.s32 6, %v471
      %v473 = vrot.slane %v320, %v472
      %475 = vrot.lane.b32.xlu0 %v473, 8
      %v476 = vpop.permute.xlu0 %475
      %v478 = vmul.f32 %v316, %v476
      %v479 = vlaneseq
      %v480 = vshrl.u32 %v479, 7
      %v481 = vsub.s32 7, %v480
      %v482 = vrot.slane %v320, %v481
      %v483 = vmul.f32 %v316, %v482
      %485 = vrot.lane.b32.xlu0 %v483, 8
      %v486 = vpop.permute.xlu0 %485
      %v488 = vadd.f32 %v478, %v486
      %v489 = vlaneseq
      %v490 = vshrl.u32 %v489, 7
      %v491 = vsub.s32 6, %v490
      %v492 = vrot.slane %v322, %v491
      %494 = vrot.lane.b32.xlu0 %v492, 8
      %v495 = vpop.permute.xlu0 %494
      %v497 = vmul.f32 %v316, %v495
      %v499 = vrot.slane %v497, 7
      %v501 = vadd.f32 %v488, %v499
      %v502 = vlaneseq
      %v503 = vshrl.u32 %v502, 7
      %v504 = vsub.s32 7, %v503
      %v505 = vrot.slane %v322, %v504
      %v506 = vmul.f32 %v316, %v505
      %v508 = vrot.slane %v506, 7
      %509 = vrot.lane.b32.xlu0 %v508, 8
      %v510 = vpop.permute.xlu0 %509
      %v512 = vadd.f32 %v501, %v510
      %514 = vrot.lane.b32.xlu0 %v512, 40
      %v515 = vpop.permute.xlu0 %514
      %vm517 = vcmask 518529
      %518 = vst.msk [vmem:[%s236 - $0x1] sm:$0x6] %vm517, %v515
      %v519 = vlaneseq
      %v520 = vshrl.u32 %v519, 7
      %v521 = vsub.s32 0, %v520
      %v522 = vrot.slane %v319, %v521
      %524 = vrot.lane.b32.xlu0 %v522, 8
      %v525 = vpop.permute.xlu0 %524
      %v527 = vmul.f32 %v316, %v525
      %v528 = vlaneseq
      %v529 = vshrl.u32 %v528, 7
      %v530 = vsub.s32 1, %v529
      %v531 = vrot.slane %v319, %v530
      %v532 = vmul.f32 %v316, %v531
      %534 = vrot.lane.b32.xlu0 %v532, 8
      %v535 = vpop.permute.xlu0 %534
      %v537 = vadd.f32 %v527, %v535
      %v538 = vlaneseq
      %v539 = vshrl.u32 %v538, 7
      %v540 = vsub.s32 0, %v539
      %v541 = vrot.slane %v321, %v540
      %543 = vrot.lane.b32.xlu0 %v541, 8
      %v544 = vpop.permute.xlu0 %543
      %v546 = vmul.f32 %v316, %v544
      %v548 = vrot.slane %v546, 7
      %v550 = vadd.f32 %v537, %v548
      %v551 = vlaneseq
      %v552 = vshrl.u32 %v551, 7
      %v553 = vsub.s32 1, %v552
      %v554 = vrot.slane %v321, %v553
      %v555 = vmul.f32 %v316, %v554
      %v557 = vrot.slane %v555, 7
      %558 = vrot.lane.b32.xlu0 %v557, 8
      %v559 = vpop.permute.xlu0 %558
      %v561 = vadd.f32 %v550, %v559
      %563 = vrot.lane.b32.xlu0 %v561, 56
      %v564 = vpop.permute.xlu0 %563
      %vm566 = vcmask 650754
      %567 = vst.msk [vmem:[%s236 - $0x2] sm:$0xc] %vm566, %v564
      %v568 = vlaneseq
      %v569 = vshrl.u32 %v568, 7
      %v570 = vsub.s32 2, %v569
      %v571 = vrot.slane %v319, %v570
      %573 = vrot.lane.b32.xlu0 %v571, 8
      %v574 = vpop.permute.xlu0 %573
      %v576 = vmul.f32 %v316, %v574
      %v577 = vlaneseq
      %v578 = vshrl.u32 %v577, 7
      %v579 = vsub.s32 3, %v578
      %v580 = vrot.slane %v319, %v579
      %v581 = vmul.f32 %v316, %v580
      %583 = vrot.lane.b32.xlu0 %v581, 8
      %v584 = vpop.permute.xlu0 %583
      %v586 = vadd.f32 %v576, %v584
      %v587 = vlaneseq
      %v588 = vshrl.u32 %v587, 7
      %v589 = vsub.s32 2, %v588
      %v590 = vrot.slane %v321, %v589
      %592 = vrot.lane.b32.xlu0 %v590, 8
      %v593 = vpop.permute.xlu0 %592
      %v595 = vmul.f32 %v316, %v593
      %v597 = vrot.slane %v595, 7
      %v599 = vadd.f32 %v586, %v597
      %v600 = vlaneseq
      %v601 = vshrl.u32 %v600, 7
      %v602 = vsub.s32 3, %v601
      %v603 = vrot.slane %v321, %v602
      %v604 = vmul.f32 %v316, %v603
      %v606 = vrot.slane %v604, 7
      %607 = vrot.lane.b32.xlu0 %v606, 8
      %v608 = vpop.permute.xlu0 %607
      %v610 = vadd.f32 %v599, %v608
      %612 = vrot.lane.b32.xlu0 %v610, 72
      %v613 = vpop.permute.xlu0 %612
      %vm615 = vcmask 781954
      %616 = vst.msk [vmem:[%s236 - $0x2] sm:$0xc] %vm615, %v613
      %v617 = vlaneseq
      %v618 = vshrl.u32 %v617, 7
      %v619 = vsub.s32 4, %v618
      %v620 = vrot.slane %v319, %v619
      %622 = vrot.lane.b32.xlu0 %v620, 8
      %v623 = vpop.permute.xlu0 %622
      %v625 = vmul.f32 %v316, %v623
      %v626 = vlaneseq
      %v627 = vshrl.u32 %v626, 7
      %v628 = vsub.s32 5, %v627
      %v629 = vrot.slane %v319, %v628
      %v630 = vmul.f32 %v316, %v629
      %632 = vrot.lane.b32.xlu0 %v630, 8
      %v633 = vpop.permute.xlu0 %632
      %v635 = vadd.f32 %v625, %v633
      %v636 = vlaneseq
      %v637 = vshrl.u32 %v636, 7
      %v638 = vsub.s32 4, %v637
      %v639 = vrot.slane %v321, %v638
      %641 = vrot.lane.b32.xlu0 %v639, 8
      %v642 = vpop.permute.xlu0 %641
      %v644 = vmul.f32 %v316, %v642
      %v646 = vrot.slane %v644, 7
      %v648 = vadd.f32 %v635, %v646
      %v649 = vlaneseq
      %v650 = vshrl.u32 %v649, 7
      %v651 = vsub.s32 5, %v650
      %v652 = vrot.slane %v321, %v651
      %v653 = vmul.f32 %v316, %v652
      %v655 = vrot.slane %v653, 7
      %656 = vrot.lane.b32.xlu0 %v655, 8
      %v657 = vpop.permute.xlu0 %656
      %v659 = vadd.f32 %v648, %v657
      %661 = vrot.lane.b32.xlu0 %v659, 88
      %v662 = vpop.permute.xlu0 %661
      %vm664 = vcmask 913154
      %665 = vst.msk [vmem:[%s236 - $0x2] sm:$0xc] %vm664, %v662
      %v666 = vlaneseq
      %v667 = vshrl.u32 %v666, 7
      %v668 = vsub.s32 6, %v667
      %v669 = vrot.slane %v319, %v668
      %671 = vrot.lane.b32.xlu0 %v669, 8
      %v672 = vpop.permute.xlu0 %671
      %v674 = vmul.f32 %v316, %v672
      %v675 = vlaneseq
      %v676 = vshrl.u32 %v675, 7
      %v677 = vsub.s32 7, %v676
      %v678 = vrot.slane %v319, %v677
      %v679 = vmul.f32 %v316, %v678
      %681 = vrot.lane.b32.xlu0 %v679, 8
      %v682 = vpop.permute.xlu0 %681
      %v684 = vadd.f32 %v674, %v682
      %v685 = vlaneseq
      %v686 = vshrl.u32 %v685, 7
      %v687 = vsub.s32 6, %v686
      %v688 = vrot.slane %v321, %v687
      %690 = vrot.lane.b32.xlu0 %v688, 8
      %v691 = vpop.permute.xlu0 %690
      %v693 = vmul.f32 %v316, %v691
      %v695 = vrot.slane %v693, 7
      %v697 = vadd.f32 %v684, %v695
      %v698 = vlaneseq
      %v699 = vshrl.u32 %v698, 7
      %v700 = vsub.s32 7, %v699
      %v701 = vrot.slane %v321, %v700
      %v702 = vmul.f32 %v316, %v701
      %v704 = vrot.slane %v702, 7
      %705 = vrot.lane.b32.xlu0 %v704, 8
      %v706 = vpop.permute.xlu0 %705
      %v708 = vadd.f32 %v697, %v706
      %710 = vrot.lane.b32.xlu0 %v708, 104
      %v711 = vpop.permute.xlu0 %710
      %vm713 = vcmask 1044354
      %714 = vst.msk [vmem:[%s236 - $0x2] sm:$0xc] %vm713, %v711
      %p715 = scmp.lt.s32.totalorder %s19, 1
      %s716 = scalar_select %p715, %s19, 1
      %p717 = scmp.lt.s32.totalorder %s20, 19
      %s718 = scalar_select %p717, %s20, 19
      %p719 = scmp.lt.s32.totalorder %s21, 0
      %s720 = scalar_select %p719, %s21, 0
      %s721 = sadd.s32 %s720, %s718
      %s722 = smul.addr %s716, 20
      %s723 = sadd.s32 %s721, %s722
      %s724 = smul.addr %s723, 2
      %s725 = scalar_lea.vmem %s3, %s724
      // Predicated region
      $region33: #{casenet_forward.12} parent=31 // pred_check
        %p726 = pneg %p130
      $region34: #{casenet_forward.12} parent=31 // pred_check_branch
        %728 = sbr.rel (%p726) target = $region36
      $region35: #{casenet_forward.12} parent=31 // pred_region
        _
      $region36: #{casenet_forward.12} parent=31 // pred_fallthru
        _
    $region32: #{casenet_forward.12} parent=5 // pred_fallthru
      _
    %p729 = scmp.le.s32.totalorder 2, %s9
    // Predicated region
    $region37: #{casenet_forward.12} parent=5 // pred_check
      %p730 = pneg %p729
    $region38: #{casenet_forward.12} parent=5 // pred_check_branch
      %732 = sbr.rel (%p730) target = $region40
    $region39: #{casenet_forward.12} parent=5 // pred_region
      %s733 = ssub.s32 %s9, 2
      // Predicated region
      $region41: #{casenet_forward.12} parent=39 // pred_check
        %p734 = pneg %p136
      $region42: #{casenet_forward.12} parent=39 // pred_check_branch
        %736 = sbr.rel (%p734) target = $region44
      $region43: #{casenet_forward.12} parent=39 // pred_region
        %p737 = scmp.lt.s32.totalorder %s22, 1
        %s738 = scalar_select %p737, %s22, 1
        %p739 = scmp.lt.s32.totalorder %s23, 19
        %s740 = scalar_select %p739, %s23, 19
        %p741 = scmp.lt.s32.totalorder %s24, 0
        %s742 = scalar_select %p741, %s24, 0
        %s743 = sadd.s32 %s742, %s740
        %s744 = smul.addr %s738, 20
        %s745 = sadd.s32 %s743, %s744
        %s746 = smul.addr %s745, 2
        %s747 = scalar_lea.vmem %s3, %s746
      $region44: #{casenet_forward.12} parent=39 // pred_fallthru
        _
    $region40: #{casenet_forward.12} parent=5 // pred_fallthru
      _
  $region6: #{casenet_forward.12} parent=0 // loop_footer
    %s13 = sadd.s32 1, %s9
  $region7: #{casenet_forward.12} parent=0 // loop_footer_branch
    %8 = sbr.rel target = $region3
  $region8: #{casenet_forward.12} parent=0 // loop_exit
    _

// kernel: casenet_forward.13
$region0: #{casenet_forward.13}
  #allocation0 [shape = 'u32[]', space=smem, size = 0x4, offset = 0x4, fixed_abs, tag = 'smem constant byte address 0x4 - core index']
  #allocation1 [shape = 'u32[144,128]{1,0:T(1,128)}', space=vmem, size = 0x12000, scoped, tag = 'internal scratch']
  #allocation2 [shape = 'f32[1,1,1]{2,1,0:T(1,128)S(1)}', space=vmem, size = 0x200, scoped, tag = 'scoped memory for casenet_forward.13']
  %s0 = inlined_call_operand.vmem [shape: f32[2,20,16,16], index: 0, kind: input, shape index: {}]
  %s1 = inlined_call_operand.vmem [shape: f32[2,16,16], index: 1, kind: input, shape index: {}]
  %s2 = inlined_call_operand.vmem [shape: f32[2,16,16], index: 2, kind: input, shape index: {}]
  %s3 = inlined_call_operand.vmem [shape: f32[2,4,16,16], index: 3, kind: input, shape index: {}]
  %s4 = inlined_call_operand.vmem [shape: f32[4,1,1], index: 4, kind: input, shape index: {}]
  %s5 = inlined_call_operand.<no memory space> [shape: f32[1,1,1], index: 5, kind: input, shape index: {}]
  %s6 = inlined_call_operand.vmem [shape: f32[5,20,1,1], index: 6, kind: input, shape index: {}]
  %s7 = inlined_call_operand.vmem [shape: f32[2,20,16,16], index: 7, kind: output, shape index: {}]
  %s8 = sld [smem:[#allocation0]]
  $region61: #{casenet_forward.13} parent=0
    _
  %s10 = ssub.s32 1, %s8
  %s11 = scalar_select 0, %s10, %s8
  %v12 = vstv %s5
  %13 = vst [vmem:[#allocation2] sm:$0x1] %v12
  loop: start=0, step=1, limit=4
  $region2: #{casenet_forward.13} parent=0 // loop_pre_header
    _
  $region3: #{casenet_forward.13} parent=0 // loop_header
    %s15 = sphi 0, %s19
    %p16 = scmp.ge.s32.totalorder %s15, 4
    %s22 = sphi 0, %s34
    %s23 = sphi 0, %s30
    %s24 = sphi 0, %s22
    %s25 = sphi 0, %s23
    %s26 = sphi 0, %s24
    %s27 = sphi 0, %s25
    %s39 = sphi 0, %s41
    %s42 = sphi 0, %s39
    %s43 = sphi 0, %s42
    %s59 = sphi 0, %s43
    %s67 = sphi 0, %s69
    %s70 = sphi 0, %s67
    %s71 = sphi 0, %s70
    %s87 = sphi 0, %s71
    %s95 = sphi 0, %s97
    %s98 = sphi 0, %s95
    %s99 = sphi 0, %s98
    %s115 = sphi 0, %s99
    %s123 = sphi 0, %s125
    %s126 = sphi 0, %s123
    %s127 = sphi 0, %s126
    %s143 = sphi 0, %s127
    %s147 = sphi 0, %s147
    %s149 = sphi 0, %s147
    %s150 = sphi 0, %s149
    %s164 = sphi 0, %s150
    %s168 = sphi 0, %s168
    %s170 = sphi 0, %s168
    %s171 = sphi 0, %s170
    %s185 = sphi 0, %s171
    %s189 = sphi 0, %s189
    %s191 = sphi 0, %s189
    %s192 = sphi 0, %s191
    %s206 = sphi 0, %s192
    %s214 = sphi 0, %s216
    %s217 = sphi 0, %s214
    %s218 = sphi 0, %s217
    %s234 = sphi 0, %s218
  $region4: #{casenet_forward.13} parent=0 // loop_header_branch
    %18 = sbr.rel (%p16) target = $region8
  $region5: #{casenet_forward.13} parent=0 // loop_body
    %s20 = ssub.s32 %s15, 1
    %s21 = ssub.s32 %s15, 2
    %s28 = sadd.s32 1, %s23
    %p29 = scmp.ge.s32.totalorder %s28, 1
    %s30 = scalar_select %p29, 0, %s28
    %s31 = sadd.s32 1, %s22
    %s32 = scalar_select %p29, %s31, %s22
    %p33 = scmp.ge.s32.totalorder %s32, 2
    %s34 = scalar_select %p33, 0, %s32
    %s35 = ssub.s32 %s22, %s34
    %s36 = ssub.s32 %s23, %s30
    %s37 = sor.u32 %s35, %s36
    %p38 = scmp.eq.s32.totalorder %s37, 0
    %s40 = sadd.s32 %s39, 1
    %s41 = scalar_select %p38, %s39, %s40
    %p44 = pneg %p38
    %p45 = scmp.eq.s32.totalorder %s15, 1
    %p46 = por %p44, %p45
    %p47 = scmp.ne.s32.totalorder %s39, %s42
    %p48 = scmp.eq.s32.totalorder %s15, 0
    %p49 = por %p47, %p48
    %p50 = scmp.ne.s32.totalorder %s39, %s42
    %p51 = scmp.eq.s32.totalorder %s20, 1
    %p52 = por %p50, %p51
    %p53 = scmp.ne.s32.totalorder %s42, %s43
    %p54 = scmp.eq.s32.totalorder %s20, 0
    %p55 = por %p53, %p54
    %p56 = scmp.ne.s32.totalorder %s42, %s43
    %p57 = scmp.eq.s32.totalorder %s21, 1
    %p58 = por %p56, %p57
    %p60 = scmp.ne.s32.totalorder %s43, %s59
    %p61 = scmp.eq.s32.totalorder %s21, 0
    %p62 = por %p60, %p61
    %s63 = ssub.s32 %s22, %s34
    %s64 = ssub.s32 %s23, %s30
    %s65 = sor.u32 %s63, %s64
    %p66 = scmp.eq.s32.totalorder %s65, 0
    %s68 = sadd.s32 %s67, 1
    %s69 = scalar_select %p66, %s67, %s68
    %p72 = pneg %p66
    %p73 = scmp.eq.s32.totalorder %s15, 1
    %p74 = por %p72, %p73
    %p75 = scmp.ne.s32.totalorder %s67, %s70
    %p76 = scmp.eq.s32.totalorder %s15, 0
    %p77 = por %p75, %p76
    %p78 = scmp.ne.s32.totalorder %s67, %s70
    %p79 = scmp.eq.s32.totalorder %s20, 1
    %p80 = por %p78, %p79
    %p81 = scmp.ne.s32.totalorder %s70, %s71
    %p82 = scmp.eq.s32.totalorder %s20, 0
    %p83 = por %p81, %p82
    %p84 = scmp.ne.s32.totalorder %s70, %s71
    %p85 = scmp.eq.s32.totalorder %s21, 1
    %p86 = por %p84, %p85
    %p88 = scmp.ne.s32.totalorder %s71, %s87
    %p89 = scmp.eq.s32.totalorder %s21, 0
    %p90 = por %p88, %p89
    %s91 = ssub.s32 %s22, %s34
    %s92 = ssub.s32 %s23, %s30
    %s93 = sor.u32 %s91, %s92
    %p94 = scmp.eq.s32.totalorder %s93, 0
    %s96 = sadd.s32 %s95, 1
    %s97 = scalar_select %p94, %s95, %s96
    %p100 = pneg %p94
    %p101 = scmp.eq.s32.totalorder %s15, 1
    %p102 = por %p100, %p101
    %p103 = scmp.ne.s32.totalorder %s95, %s98
    %p104 = scmp.eq.s32.totalorder %s15, 0
    %p105 = por %p103, %p104
    %p106 = scmp.ne.s32.totalorder %s95, %s98
    %p107 = scmp.eq.s32.totalorder %s20, 1
    %p108 = por %p106, %p107
    %p109 = scmp.ne.s32.totalorder %s98, %s99
    %p110 = scmp.eq.s32.totalorder %s20, 0
    %p111 = por %p109, %p110
    %p112 = scmp.ne.s32.totalorder %s98, %s99
    %p113 = scmp.eq.s32.totalorder %s21, 1
    %p114 = por %p112, %p113
    %p116 = scmp.ne.s32.totalorder %s99, %s115
    %p117 = scmp.eq.s32.totalorder %s21, 0
    %p118 = por %p116, %p117
    %s119 = ssub.s32 %s22, %s34
    %s120 = ssub.s32 %s23, %s30
    %s121 = sor.u32 %s119, %s120
    %p122 = scmp.eq.s32.totalorder %s121, 0
    %s124 = sadd.s32 %s123, 1
    %s125 = scalar_select %p122, %s123, %s124
    %p128 = pneg %p122
    %p129 = scmp.eq.s32.totalorder %s15, 1
    %p130 = por %p128, %p129
    %p131 = scmp.ne.s32.totalorder %s123, %s126
    %p132 = scmp.eq.s32.totalorder %s15, 0
    %p133 = por %p131, %p132
    %p134 = scmp.ne.s32.totalorder %s123, %s126
    %p135 = scmp.eq.s32.totalorder %s20, 1
    %p136 = por %p134, %p135
    %p137 = scmp.ne.s32.totalorder %s126, %s127
    %p138 = scmp.eq.s32.totalorder %s20, 0
    %p139 = por %p137, %p138
    %p140 = scmp.ne.s32.totalorder %s126, %s127
    %p141 = scmp.eq.s32.totalorder %s21, 1
    %p142 = por %p140, %p141
    %p144 = scmp.ne.s32.totalorder %s127, %s143
    %p145 = scmp.eq.s32.totalorder %s21, 0
    %p146 = por %p144, %p145
    %s148 = sadd.s32 %s147, 1
    %p151 = scmp.eq.s32.totalorder %s15, 1
    %p152 = scmp.ne.s32.totalorder %s147, %s149
    %p153 = scmp.eq.s32.totalorder %s15, 0
    %p154 = por %p152, %p153
    %p155 = scmp.ne.s32.totalorder %s147, %s149
    %p156 = scmp.eq.s32.totalorder %s20, 1
    %p157 = por %p155, %p156
    %p158 = scmp.ne.s32.totalorder %s149, %s150
    %p159 = scmp.eq.s32.totalorder %s20, 0
    %p160 = por %p158, %p159
    %p161 = scmp.ne.s32.totalorder %s149, %s150
    %p162 = scmp.eq.s32.totalorder %s21, 1
    %p163 = por %p161, %p162
    %p165 = scmp.ne.s32.totalorder %s150, %s164
    %p166 = scmp.eq.s32.totalorder %s21, 0
    %p167 = por %p165, %p166
    %s169 = sadd.s32 %s168, 1
    %p172 = scmp.eq.s32.totalorder %s15, 1
    %p173 = scmp.ne.s32.totalorder %s168, %s170
    %p174 = scmp.eq.s32.totalorder %s15, 0
    %p175 = por %p173, %p174
    %p176 = scmp.ne.s32.totalorder %s168, %s170
    %p177 = scmp.eq.s32.totalorder %s20, 1
    %p178 = por %p176, %p177
    %p179 = scmp.ne.s32.totalorder %s170, %s171
    %p180 = scmp.eq.s32.totalorder %s20, 0
    %p181 = por %p179, %p180
    %p182 = scmp.ne.s32.totalorder %s170, %s171
    %p183 = scmp.eq.s32.totalorder %s21, 1
    %p184 = por %p182, %p183
    %p186 = scmp.ne.s32.totalorder %s171, %s185
    %p187 = scmp.eq.s32.totalorder %s21, 0
    %p188 = por %p186, %p187
    %s190 = sadd.s32 %s189, 1
    %p193 = scmp.eq.s32.totalorder %s15, 1
    %p194 = scmp.ne.s32.totalorder %s189, %s191
    %p195 = scmp.eq.s32.totalorder %s15, 0
    %p196 = por %p194, %p195
    %p197 = scmp.ne.s32.totalorder %s189, %s191
    %p198 = scmp.eq.s32.totalorder %s20, 1
    %p199 = por %p197, %p198
    %p200 = scmp.ne.s32.totalorder %s191, %s192
    %p201 = scmp.eq.s32.totalorder %s20, 0
    %p202 = por %p200, %p201
    %p203 = scmp.ne.s32.totalorder %s191, %s192
    %p204 = scmp.eq.s32.totalorder %s21, 1
    %p205 = por %p203, %p204
    %p207 = scmp.ne.s32.totalorder %s192, %s206
    %p208 = scmp.eq.s32.totalorder %s21, 0
    %p209 = por %p207, %p208
    %s210 = ssub.s32 %s22, %s34
    %s211 = ssub.s32 %s23, %s30
    %s212 = sor.u32 %s210, %s211
    %p213 = scmp.eq.s32.totalorder %s212, 0
    %s215 = sadd.s32 %s214, 1
    %s216 = scalar_select %p213, %s214, %s215
    %p219 = pneg %p213
    %p220 = scmp.eq.s32.totalorder %s15, 1
    %p221 = por %p219, %p220
    %p222 = scmp.ne.s32.totalorder %s214, %s217
    %p223 = scmp.eq.s32.totalorder %s15, 0
    %p224 = por %p222, %p223
    %p225 = scmp.ne.s32.totalorder %s214, %s217
    %p226 = scmp.eq.s32.totalorder %s20, 1
    %p227 = por %p225, %p226
    %p228 = scmp.ne.s32.totalorder %s217, %s218
    %p229 = scmp.eq.s32.totalorder %s20, 0
    %p230 = por %p228, %p229
    %p231 = scmp.ne.s32.totalorder %s217, %s218
    %p232 = scmp.eq.s32.totalorder %s21, 1
    %p233 = por %p231, %p232
    %p235 = scmp.ne.s32.totalorder %s218, %s234
    %p236 = scmp.eq.s32.totalorder %s21, 0
    %p237 = por %p235, %p236
    %p238 = scmp.le.s32.totalorder 1, %s15
    %p239 = scmp.lt.s32.totalorder %s15, 3
    %p240 = pnand %p238, %p239
    %p241 = pneg %p240
    // Predicated region
    $region9: #{casenet_forward.13} parent=5 // pred_check
      _
    $region10: #{casenet_forward.13} parent=5 // pred_check_branch
      %243 = sbr.rel (%p240) target = $region12
    $region11: #{casenet_forward.13} parent=5 // pred_region
      %s244 = ssub.s32 %s15, 1
      // Predicated region
      $region13: #{casenet_forward.13} parent=11 // pred_check
        %p245 = pneg %p160
      $region14: #{casenet_forward.13} parent=11 // pred_check_branch
        %247 = sbr.rel (%p245) target = $region16
      $region15: #{casenet_forward.13} parent=11 // pred_region
        _
      $region16: #{casenet_forward.13} parent=11 // pred_fallthru
        _
      // Predicated region
      $region17: #{casenet_forward.13} parent=11 // pred_check
        %p248 = pneg %p181
      $region18: #{casenet_forward.13} parent=11 // pred_check_branch
        %250 = sbr.rel (%p248) target = $region20
      $region19: #{casenet_forward.13} parent=11 // pred_region
        _
      $region20: #{casenet_forward.13} parent=11 // pred_fallthru
        _
      // Predicated region
      $region21: #{casenet_forward.13} parent=11 // pred_check
        %p251 = pneg %p202
      $region22: #{casenet_forward.13} parent=11 // pred_check_branch
        %253 = sbr.rel (%p251) target = $region24
      $region23: #{casenet_forward.13} parent=11 // pred_region
        _
      $region24: #{casenet_forward.13} parent=11 // pred_fallthru
        _
    $region12: #{casenet_forward.13} parent=5 // pred_fallthru
      _
    %p254 = scmp.lt.s32.totalorder %s15, 2
    // Predicated region
    $region25: #{casenet_forward.13} parent=5 // pred_check
      %p255 = pneg %p254
    $region26: #{casenet_forward.13} parent=5 // pred_check_branch
      %257 = sbr.rel (%p255) target = $region28
    $region27: #{casenet_forward.13} parent=5 // pred_region
      // Predicated region
      $region29: #{casenet_forward.13} parent=27 // pred_check
        %p258 = pneg %p49
      $region30: #{casenet_forward.13} parent=27 // pred_check_branch
        %260 = sbr.rel (%p258) target = $region32
      $region31: #{casenet_forward.13} parent=27 // pred_region
        %s261 = smul.u32 2, %s23
        %p262 = scmp.lt.s32.totalorder %s22, 1
        %s263 = scalar_select %p262, %s22, 1
        %p264 = scmp.lt.s32.totalorder %s261, 1
        %s265 = scalar_select %p264, %s261, 1
        %s266 = smul.addr %s263, 40
        %s267 = sadd.s32 %s265, %s266
        %s268 = smul.addr %s267, 8
        %s269 = scalar_lea.vmem %s0, %s268
        %s270 = smul.u32 2, %s23
      $region32: #{casenet_forward.13} parent=27 // pred_fallthru
        _
      // Predicated region
      $region33: #{casenet_forward.13} parent=27 // pred_check
        %p271 = pneg %p77
      $region34: #{casenet_forward.13} parent=27 // pred_check_branch
        %273 = sbr.rel (%p271) target = $region36
      $region35: #{casenet_forward.13} parent=27 // pred_region
        %s274 = smul.u32 2, %s23
        %p275 = scmp.lt.s32.totalorder %s22, 1
        %s276 = scalar_select %p275, %s22, 1
        %p277 = scmp.lt.s32.totalorder %s274, 1
        %s278 = scalar_select %p277, %s274, 1
        %s279 = smul.addr %s276, 2
        %s280 = sadd.s32 %s278, %s279
        %s281 = smul.addr %s280, 8
        %s282 = scalar_lea.vmem %s1, %s281
        %s283 = smul.u32 2, %s23
      $region36: #{casenet_forward.13} parent=27 // pred_fallthru
        _
      // Predicated region
      $region37: #{casenet_forward.13} parent=27 // pred_check
        %p284 = pneg %p105
      $region38: #{casenet_forward.13} parent=27 // pred_check_branch
        %286 = sbr.rel (%p284) target = $region40
      $region39: #{casenet_forward.13} parent=27 // pred_region
        %s287 = smul.u32 2, %s23
        %p288 = scmp.lt.s32.totalorder %s22, 1
        %s289 = scalar_select %p288, %s22, 1
        %p290 = scmp.lt.s32.totalorder %s287, 1
        %s291 = scalar_select %p290, %s287, 1
        %s292 = smul.addr %s289, 2
        %s293 = sadd.s32 %s291, %s292
        %s294 = smul.addr %s293, 8
        %s295 = scalar_lea.vmem %s2, %s294
        %s296 = smul.u32 2, %s23
      $region40: #{casenet_forward.13} parent=27 // pred_fallthru
        _
      // Predicated region
      $region41: #{casenet_forward.13} parent=27 // pred_check
        %p297 = pneg %p133
      $region42: #{casenet_forward.13} parent=27 // pred_check_branch
        %299 = sbr.rel (%p297) target = $region44
      $region43: #{casenet_forward.13} parent=27 // pred_region
        %s300 = smul.u32 2, %s23
        %p301 = scmp.lt.s32.totalorder %s22, 1
        %s302 = scalar_select %p301, %s22, 1
        %p303 = scmp.lt.s32.totalorder %s300, 1
        %s304 = scalar_select %p303, %s300, 1
        %s305 = smul.addr %s302, 8
        %s306 = sadd.s32 %s304, %s305
        %s307 = smul.addr %s306, 8
        %s308 = scalar_lea.vmem %s3, %s307
        %s309 = smul.u32 2, %s23
      $region44: #{casenet_forward.13} parent=27 // pred_fallthru
        _
    $region28: #{casenet_forward.13} parent=5 // pred_fallthru
      _
    %p310 = scmp.le.s32.totalorder 1, %s15
    %p311 = scmp.lt.s32.totalorder %s15, 3
    %p312 = pnand %p310, %p311
    %p313 = pneg %p312
    // Predicated region
    $region45: #{casenet_forward.13} parent=5 // pred_check
      _
    $region46: #{casenet_forward.13} parent=5 // pred_check_branch
      %315 = sbr.rel (%p312) target = $region48
    $region47: #{casenet_forward.13} parent=5 // pred_region
      %s316 = ssub.s32 %s15, 1
      %s317 = smul.u32 2, %s25
      %p318 = scmp.lt.s32.totalorder %s24, 1
      %s319 = scalar_select %p318, %s24, 1
      %p320 = scmp.lt.s32.totalorder %s317, 1
      %s321 = scalar_select %p320, %s317, 1
      %s322 = smul.addr %s319, 40
      %s323 = sadd.s32 %s321, %s322
      %s324 = smul.addr %s323, 8
      %s325 = scalar_lea.vmem %s0, %s324
      %p326 = pneg %p55
      %p327 = pneg %p52
      %s328 = smul.u32 2, %s25
      %p329 = scmp.lt.s32.totalorder %s24, 1
      %s330 = scalar_select %p329, %s24, 1
      %p331 = scmp.lt.s32.totalorder %s328, 1
      %s332 = scalar_select %p331, %s328, 1
      %s333 = smul.addr %s330, 2
      %s334 = sadd.s32 %s332, %s333
      %s335 = smul.addr %s334, 8
      %s336 = scalar_lea.vmem %s1, %s335
      %p337 = pneg %p83
      %p338 = pneg %p80
      %s339 = smul.u32 2, %s25
      %p340 = scmp.lt.s32.totalorder %s24, 1
      %s341 = scalar_select %p340, %s24, 1
      %p342 = scmp.lt.s32.totalorder %s339, 1
      %s343 = scalar_select %p342, %s339, 1
      %s344 = smul.addr %s341, 2
      %s345 = sadd.s32 %s343, %s344
      %s346 = smul.addr %s345, 8
      %s347 = scalar_lea.vmem %s2, %s346
      %p348 = pneg %p111
      %p349 = pneg %p108
      %s350 = smul.u32 2, %s25
      %p351 = scmp.lt.s32.totalorder %s24, 1
      %s352 = scalar_select %p351, %s24, 1
      %p353 = scmp.lt.s32.totalorder %s350, 1
      %s354 = scalar_select %p353, %s350, 1
      %s355 = smul.addr %s352, 8
      %s356 = sadd.s32 %s354, %s355
      %s357 = smul.addr %s356, 8
      %s358 = scalar_lea.vmem %s3, %s357
      %p359 = pneg %p139
      %p360 = pneg %p136
      %p361 = pneg %p160
      %p362 = pneg %p157
      %p363 = pneg %p181
      %p364 = pneg %p178
      %p365 = pneg %p202
      %p366 = pneg %p199
      %p367 = pneg %p230
      %p368 = pneg %p227
      %s369 = smul.u32 2, %s25
      %p370 = scmp.lt.s32.totalorder %s24, 1
      %s371 = scalar_select %p370, %s24, 1
      %p372 = scmp.lt.s32.totalorder %s369, 1
      %s373 = scalar_select %p372, %s369, 1
      %s374 = smul.addr %s371, 40
      %s375 = sadd.s32 %s373, %s374
      %s376 = smul.addr %s375, 8
      %s377 = scalar_lea.vmem %s7, %s376
      %s378 = smul.u32 2, %s25
      %p379 = scmp.lt.s32.totalorder %s24, 1
      %s380 = scalar_select %p379, %s24, 1
      %p381 = scmp.lt.s32.totalorder %s378, 1
      %s382 = scalar_select %p381, %s378, 1
      %s383 = smul.addr %s380, 40
      %s384 = sadd.s32 %s382, %s383
      %s385 = smul.addr %s384, 8
      %s386 = scalar_lea.vmem %s0, %s385
      %s387 = smul.u32 2, %s25
      %s388 = smul.u32 2, %s25
      %p389 = scmp.lt.s32.totalorder %s24, 1
      %s390 = scalar_select %p389, %s24, 1
      %p391 = scmp.lt.s32.totalorder %s388, 1
      %s392 = scalar_select %p391, %s388, 1
      %s393 = smul.addr %s390, 2
      %s394 = sadd.s32 %s392, %s393
      %s395 = smul.addr %s394, 8
      %s396 = scalar_lea.vmem %s1, %s395
      %s397 = smul.u32 2, %s25
      %s398 = smul.u32 2, %s25
      %p399 = scmp.lt.s32.totalorder %s24, 1
      %s400 = scalar_select %p399, %s24, 1
      %p401 = scmp.lt.s32.totalorder %s398, 1
      %s402 = scalar_select %p401, %s398, 1
      %s403 = smul.addr %s400, 2
      %s404 = sadd.s32 %s402, %s403
      %s405 = smul.addr %s404, 8
      %s406 = scalar_lea.vmem %s2, %s405
      %s407 = smul.u32 2, %s25
      %s408 = smul.u32 2, %s25
      %p409 = scmp.lt.s32.totalorder %s24, 1
      %s410 = scalar_select %p409, %s24, 1
      %p411 = scmp.lt.s32.totalorder %s408, 1
      %s412 = scalar_select %p411, %s408, 1
      %s413 = smul.addr %s410, 8
      %s414 = sadd.s32 %s412, %s413
      %s415 = smul.addr %s414, 8
      %s416 = scalar_lea.vmem %s3, %s415
      %s417 = smul.u32 2, %s25
      %s418 = smul.u32 2, %s25
      %p419 = scmp.lt.s32.totalorder %s24, 1
      %s420 = scalar_select %p419, %s24, 1
      %p421 = scmp.lt.s32.totalorder %s418, 1
      %s422 = scalar_select %p421, %s418, 1
      %s423 = smul.addr %s420, 40
      %s424 = sadd.s32 %s422, %s423
      %s425 = smul.addr %s424, 8
      %s426 = scalar_lea.vmem %s7, %s425
      %s427 = smul.u32 2, %s25
      %v428 = vld [vmem:[%s416] sm:$0xff]
      %v429 = vld [vmem:[%s416 + $0x8] sm:$0xff]
      %v430 = vld [vmem:[%s416 + $0x10] sm:$0xff]
      %v431 = vld [vmem:[%s416 + $0x18] sm:$0xff]
      %v432 = vld [vmem:[%s416 + $0x20] sm:$0xff]
      %v433 = vld [vmem:[%s416 + $0x28] sm:$0xff]
      %v434 = vld [vmem:[%s416 + $0x30] sm:$0xff]
      %v435 = vld [vmem:[%s416 + $0x38] sm:$0xff]
      %v436 = vld [vmem:[%s4] sm:$0x1]
      %v437 = vld [vmem:[%s4 + $0x1] sm:$0x1]
      %v438 = vld [vmem:[%s4 + $0x2] sm:$0x1]
      %v439 = vld [vmem:[%s4 + $0x3] sm:$0x1]
      %v444 = vlaneseq
      %v445 = vshrl.u32 %v444, 7
      %v446 = vsub.s32 0, %v445
      %v447 = vrot.slane %v436, %v446
      %v448 = vlaneseq
      %v449 = vshrl.u32 %v448, 7
      %v450 = vsub.s32 0, %v449
      %v451 = vrot.slane %v437, %v450
      %v452 = vlaneseq
      %v453 = vshrl.u32 %v452, 7
      %v454 = vsub.s32 0, %v453
      %v455 = vrot.slane %v438, %v454
      %v456 = vlaneseq
      %v457 = vshrl.u32 %v456, 7
      %v458 = vsub.s32 0, %v457
      %v459 = vrot.slane %v439, %v458
      %460 = vset.pattern.permute.xlu0 0
      %461 = vperm.xlu0 %460, %v447
      %v462 = vpop.permute.xlu0 %461
      %464 = vset.pattern.permute.xlu0 0
      %465 = vperm.xlu0 %464, %v451
      %v466 = vpop.permute.xlu0 %465
      %468 = vset.pattern.permute.xlu0 0
      %469 = vperm.xlu0 %468, %v455
      %v470 = vpop.permute.xlu0 %469
      %472 = vset.pattern.permute.xlu0 0
      %473 = vperm.xlu0 %472, %v459
      %v474 = vpop.permute.xlu0 %473
      %v476 = vmul.f32 %v428, %v462
      %v477 = vmul.f32 %v429, %v462
      %v478 = vmul.f32 %v430, %v466
      %v479 = vmul.f32 %v431, %v466
      %v480 = vmul.f32 %v432, %v470
      %v481 = vmul.f32 %v433, %v470
      %v482 = vmul.f32 %v434, %v474
      %v483 = vmul.f32 %v435, %v474
      %vm484 = vcmask 130048
      %v485 = vsel %vm484, %v476, 0.0
      %v486 = vsel %vm484, %v478, 0.0
      %v487 = vadd.f32 %v485, %v486
      %v488 = vsel %vm484, %v480, 0.0
      %v489 = vadd.f32 %v487, %v488
      %v490 = vsel %vm484, %v482, 0.0
      %v491 = vadd.f32 %v489, %v490
      %v492 = vsel %vm484, %v477, 0.0
      %v493 = vsel %vm484, %v479, 0.0
      %v494 = vadd.f32 %v492, %v493
      %v495 = vsel %vm484, %v481, 0.0
      %v496 = vadd.f32 %v494, %v495
      %v497 = vsel %vm484, %v483, 0.0
      %v498 = vadd.f32 %v496, %v497
      %v499 = vld [vmem:[#allocation2] sm:$0x1]
      %v501 = vlaneseq
      %v502 = vshrl.u32 %v501, 7
      %v503 = vsub.s32 0, %v502
      %v504 = vrot.slane %v499, %v503
      %505 = vset.pattern.permute.xlu0 0
      %506 = vperm.xlu0 %505, %v504
      %v507 = vpop.permute.xlu0 %506
      %v509 = vadd.f32 %v491, %v507
      %v510 = vadd.f32 %v498, %v507
      %v511 = vld [vmem:[%s386] sm:$0xff]
      %v512 = vld [vmem:[%s386 + $0x8] sm:$0xff]
      %v513 = vld [vmem:[%s386 + $0x10] sm:$0xff]
      %v514 = vld [vmem:[%s386 + $0x18] sm:$0xff]
      %v515 = vld [vmem:[%s386 + $0x20] sm:$0xff]
      %v516 = vld [vmem:[%s386 + $0x28] sm:$0xff]
      %v517 = vld [vmem:[%s386 + $0x30] sm:$0xff]
      %v518 = vld [vmem:[%s386 + $0x38] sm:$0xff]
      %v519 = vld [vmem:[%s386 + $0x40] sm:$0xff]
      %v520 = vld [vmem:[%s386 + $0x48] sm:$0xff]
      %v521 = vld [vmem:[%s386 + $0x50] sm:$0xff]
      %v522 = vld [vmem:[%s386 + $0x58] sm:$0xff]
      %v523 = vld [vmem:[%s386 + $0x60] sm:$0xff]
      %v524 = vld [vmem:[%s386 + $0x68] sm:$0xff]
      %v525 = vld [vmem:[%s386 + $0x70] sm:$0xff]
      %v526 = vld [vmem:[%s386 + $0x78] sm:$0xff]
      %v527 = vld [vmem:[%s386 + $0x80] sm:$0xff]
      %v528 = vld [vmem:[%s386 + $0x88] sm:$0xff]
      %v529 = vld [vmem:[%s386 + $0x90] sm:$0xff]
      %v530 = vld [vmem:[%s386 + $0x98] sm:$0xff]
      %v531 = vld [vmem:[%s386 + $0xa0] sm:$0xff]
      %v532 = vld [vmem:[%s386 + $0xa8] sm:$0xff]
      %v533 = vld [vmem:[%s386 + $0xb0] sm:$0xff]
      %v534 = vld [vmem:[%s386 + $0xb8] sm:$0xff]
      %v535 = vld [vmem:[%s386 + $0xc0] sm:$0xff]
      %v536 = vld [vmem:[%s386 + $0xc8] sm:$0xff]
      %v537 = vld [vmem:[%s386 + $0xd0] sm:$0xff]
      %v538 = vld [vmem:[%s386 + $0xd8] sm:$0xff]
      %v539 = vld [vmem:[%s386 + $0xe0] sm:$0xff]
      %v540 = vld [vmem:[%s386 + $0xe8] sm:$0xff]
      %v541 = vld [vmem:[%s386 + $0xf0] sm:$0xff]
      %v542 = vld [vmem:[%s386 + $0xf8] sm:$0xff]
      %v543 = vld [vmem:[%s386 + $0x100] sm:$0xff]
      %v544 = vld [vmem:[%s386 + $0x108] sm:$0xff]
      %v545 = vld [vmem:[%s386 + $0x110] sm:$0xff]
      %v546 = vld [vmem:[%s386 + $0x118] sm:$0xff]
      %v547 = vld [vmem:[%s386 + $0x120] sm:$0xff]
      %v548 = vld [vmem:[%s386 + $0x128] sm:$0xff]
      %v549 = vld [vmem:[%s386 + $0x130] sm:$0xff]
      %v550 = vld [vmem:[%s386 + $0x138] sm:$0xff]
      %v551 = vld [vmem:[%s396] sm:$0xff]
      %v552 = vld [vmem:[%s396 + $0x8] sm:$0xff]
      %v553 = vld [vmem:[%s406] sm:$0xff]
      %v554 = vld [vmem:[%s406 + $0x8] sm:$0xff]
      %v555 = vld [vmem:[%s6] sm:$0x1]
      %v556 = vld [vmem:[%s6 + $0x1] sm:$0x1]
      %v557 = vld [vmem:[%s6 + $0x2] sm:$0x1]
      %v558 = vld [vmem:[%s6 + $0x3] sm:$0x1]
      %v559 = vld [vmem:[%s6 + $0x4] sm:$0x1]
      %v560 = vld [vmem:[%s6 + $0x5] sm:$0x1]
      %v561 = vld [vmem:[%s6 + $0x6] sm:$0x1]
      %v562 = vld [vmem:[%s6 + $0x7] sm:$0x1]
      %v563 = vld [vmem:[%s6 + $0x8] sm:$0x1]
      %v564 = vld [vmem:[%s6 + $0x9] sm:$0x1]
      %v565 = vld [vmem:[%s6 + $0xa] sm:$0x1]
      %v566 = vld [vmem:[%s6 + $0xb] sm:$0x1]
      %v567 = vld [vmem:[%s6 + $0xc] sm:$0x1]
      %v568 = vld [vmem:[%s6 + $0xd] sm:$0x1]
      %v569 = vld [vmem:[%s6 + $0xe] sm:$0x1]
      %v570 = vld [vmem:[%s6 + $0xf] sm:$0x1]
      %v571 = vld [vmem:[%s6 + $0x10] sm:$0x1]
      %v572 = vld [vmem:[%s6 + $0x11] sm:$0x1]
      %v573 = vld [vmem:[%s6 + $0x12] sm:$0x1]
      %v574 = vld [vmem:[%s6 + $0x13] sm:$0x1]
      %v575 = vld [vmem:[%s6 + $0x14] sm:$0x1]
      %v576 = vld [vmem:[%s6 + $0x15] sm:$0x1]
      %v577 = vld [vmem:[%s6 + $0x16] sm:$0x1]
      %v578 = vld [vmem:[%s6 + $0x17] sm:$0x1]
      %v579 = vld [vmem:[%s6 + $0x18] sm:$0x1]
      %v580 = vld [vmem:[%s6 + $0x19] sm:$0x1]
      %v581 = vld [vmem:[%s6 + $0x1a] sm:$0x1]
      %v582 = vld [vmem:[%s6 + $0x1b] sm:$0x1]
      %v583 = vld [vmem:[%s6 + $0x1c] sm:$0x1]
      %v584 = vld [vmem:[%s6 + $0x1d] sm:$0x1]
      %v585 = vld [vmem:[%s6 + $0x1e] sm:$0x1]
      %v586 = vld [vmem:[%s6 + $0x1f] sm:$0x1]
      %v587 = vld [vmem:[%s6 + $0x20] sm:$0x1]
      %v588 = vld [vmem:[%s6 + $0x21] sm:$0x1]
      %v589 = vld [vmem:[%s6 + $0x22] sm:$0x1]
      %v590 = vld [vmem:[%s6 + $0x23] sm:$0x1]
      %v591 = vld [vmem:[%s6 + $0x24] sm:$0x1]
      %v592 = vld [vmem:[%s6 + $0x25] sm:$0x1]
      %v593 = vld [vmem:[%s6 + $0x26] sm:$0x1]
      %v594 = vld [vmem:[%s6 + $0x27] sm:$0x1]
      %v595 = vld [vmem:[%s6 + $0x28] sm:$0x1]
      %v596 = vld [vmem:[%s6 + $0x29] sm:$0x1]
      %v597 = vld [vmem:[%s6 + $0x2a] sm:$0x1]
      %v598 = vld [vmem:[%s6 + $0x2b] sm:$0x1]
      %v599 = vld [vmem:[%s6 + $0x2c] sm:$0x1]
      %v600 = vld [vmem:[%s6 + $0x2d] sm:$0x1]
      %v601 = vld [vmem:[%s6 + $0x2e] sm:$0x1]
      %v602 = vld [vmem:[%s6 + $0x2f] sm:$0x1]
      %v603 = vld [vmem:[%s6 + $0x30] sm:$0x1]
      %v604 = vld [vmem:[%s6 + $0x31] sm:$0x1]
      %v605 = vld [vmem:[%s6 + $0x32] sm:$0x1]
      %v606 = vld [vmem:[%s6 + $0x33] sm:$0x1]
      %v607 = vld [vmem:[%s6 + $0x34] sm:$0x1]
      %v608 = vld [vmem:[%s6 + $0x35] sm:$0x1]
      %v609 = vld [vmem:[%s6 + $0x36] sm:$0x1]
      %v610 = vld [vmem:[%s6 + $0x37] sm:$0x1]
      %v611 = vld [vmem:[%s6 + $0x38] sm:$0x1]
      %v612 = vld [vmem:[%s6 + $0x39] sm:$0x1]
      %v613 = vld [vmem:[%s6 + $0x3a] sm:$0x1]
      %v614 = vld [vmem:[%s6 + $0x3b] sm:$0x1]
      %v615 = vld [vmem:[%s6 + $0x3c] sm:$0x1]
      %v616 = vld [vmem:[%s6 + $0x3d] sm:$0x1]
      %v617 = vld [vmem:[%s6 + $0x3e] sm:$0x1]
      %v618 = vld [vmem:[%s6 + $0x3f] sm:$0x1]
      %v619 = vld [vmem:[%s6 + $0x40] sm:$0x1]
      %v620 = vld [vmem:[%s6 + $0x41] sm:$0x1]
      %v621 = vld [vmem:[%s6 + $0x42] sm:$0x1]
      %v622 = vld [vmem:[%s6 + $0x43] sm:$0x1]
      %v623 = vld [vmem:[%s6 + $0x44] sm:$0x1]
      %v624 = vld [vmem:[%s6 + $0x45] sm:$0x1]
      %v625 = vld [vmem:[%s6 + $0x46] sm:$0x1]
      %v626 = vld [vmem:[%s6 + $0x47] sm:$0x1]
      %v627 = vld [vmem:[%s6 + $0x48] sm:$0x1]
      %v628 = vld [vmem:[%s6 + $0x49] sm:$0x1]
      %v629 = vld [vmem:[%s6 + $0x4a] sm:$0x1]
      %v630 = vld [vmem:[%s6 + $0x4b] sm:$0x1]
      %v631 = vld [vmem:[%s6 + $0x4c] sm:$0x1]
      %v632 = vld [vmem:[%s6 + $0x4d] sm:$0x1]
      %v633 = vld [vmem:[%s6 + $0x4e] sm:$0x1]
      %v634 = vld [vmem:[%s6 + $0x4f] sm:$0x1]
      %v635 = vld [vmem:[%s6 + $0x50] sm:$0x1]
      %v636 = vld [vmem:[%s6 + $0x51] sm:$0x1]
      %v637 = vld [vmem:[%s6 + $0x52] sm:$0x1]
      %v638 = vld [vmem:[%s6 + $0x53] sm:$0x1]
      %v639 = vld [vmem:[%s6 + $0x54] sm:$0x1]
      %v640 = vld [vmem:[%s6 + $0x55] sm:$0x1]
      %v641 = vld [vmem:[%s6 + $0x56] sm:$0x1]
      %v642 = vld [vmem:[%s6 + $0x57] sm:$0x1]
      %v643 = vld [vmem:[%s6 + $0x58] sm:$0x1]
      %v644 = vld [vmem:[%s6 + $0x59] sm:$0x1]
      %v645 = vld [vmem:[%s6 + $0x5a] sm:$0x1]
      %v646 = vld [vmem:[%s6 + $0x5b] sm:$0x1]
      %v647 = vld [vmem:[%s6 + $0x5c] sm:$0x1]
      %v648 = vld [vmem:[%s6 + $0x5d] sm:$0x1]
      %v649 = vld [vmem:[%s6 + $0x5e] sm:$0x1]
      %v650 = vld [vmem:[%s6 + $0x5f] sm:$0x1]
      %v651 = vld [vmem:[%s6 + $0x60] sm:$0x1]
      %v652 = vld [vmem:[%s6 + $0x61] sm:$0x1]
      %v653 = vld [vmem:[%s6 + $0x62] sm:$0x1]
      %v654 = vld [vmem:[%s6 + $0x63] sm:$0x1]
      %v675 = vlaneseq
      %v676 = vshrl.u32 %v675, 7
      %v677 = vsub.s32 0, %v676
      %v678 = vrot.slane %v555, %v677
      %v679 = vlaneseq
      %v680 = vshrl.u32 %v679, 7
      %v681 = vsub.s32 0, %v680
      %v682 = vrot.slane %v556, %v681
      %v683 = vlaneseq
      %v684 = vshrl.u32 %v683, 7
      %v685 = vsub.s32 0, %v684
      %v686 = vrot.slane %v557, %v685
      %v687 = vlaneseq
      %v688 = vshrl.u32 %v687, 7
      %v689 = vsub.s32 0, %v688
      %v690 = vrot.slane %v558, %v689
      %v691 = vlaneseq
      %v692 = vshrl.u32 %v691, 7
      %v693 = vsub.s32 0, %v692
      %v694 = vrot.slane %v559, %v693
      %v695 = vlaneseq
      %v696 = vshrl.u32 %v695, 7
      %v697 = vsub.s32 0, %v696
      %v698 = vrot.slane %v560, %v697
      %v699 = vlaneseq
      %v700 = vshrl.u32 %v699, 7
      %v701 = vsub.s32 0, %v700
      %v702 = vrot.slane %v561, %v701
      %v703 = vlaneseq
      %v704 = vshrl.u32 %v703, 7
      %v705 = vsub.s32 0, %v704
      %v706 = vrot.slane %v562, %v705
      %v707 = vlaneseq
      %v708 = vshrl.u32 %v707, 7
      %v709 = vsub.s32 0, %v708
      %v710 = vrot.slane %v563, %v709
      %v711 = vlaneseq
      %v712 = vshrl.u32 %v711, 7
      %v713 = vsub.s32 0, %v712
      %v714 = vrot.slane %v564, %v713
      %v715 = vlaneseq
      %v716 = vshrl.u32 %v715, 7
      %v717 = vsub.s32 0, %v716
      %v718 = vrot.slane %v565, %v717
      %v719 = vlaneseq
      %v720 = vshrl.u32 %v719, 7
      %v721 = vsub.s32 0, %v720
      %v722 = vrot.slane %v566, %v721
      %v723 = vlaneseq
      %v724 = vshrl.u32 %v723, 7
      %v725 = vsub.s32 0, %v724
      %v726 = vrot.slane %v567, %v725
      %v727 = vlaneseq
      %v728 = vshrl.u32 %v727, 7
      %v729 = vsub.s32 0, %v728
      %v730 = vrot.slane %v568, %v729
      %v731 = vlaneseq
      %v732 = vshrl.u32 %v731, 7
      %v733 = vsub.s32 0, %v732
      %v734 = vrot.slane %v569, %v733
      %v735 = vlaneseq
      %v736 = vshrl.u32 %v735, 7
      %v737 = vsub.s32 0, %v736
      %v738 = vrot.slane %v570, %v737
      %v739 = vlaneseq
      %v740 = vshrl.u32 %v739, 7
      %v741 = vsub.s32 0, %v740
      %v742 = vrot.slane %v571, %v741
      %v743 = vlaneseq
      %v744 = vshrl.u32 %v743, 7
      %v745 = vsub.s32 0, %v744
      %v746 = vrot.slane %v572, %v745
      %v747 = vlaneseq
      %v748 = vshrl.u32 %v747, 7
      %v749 = vsub.s32 0, %v748
      %v750 = vrot.slane %v573, %v749
      %v751 = vlaneseq
      %v752 = vshrl.u32 %v751, 7
      %v753 = vsub.s32 0, %v752
      %v754 = vrot.slane %v574, %v753
      %755 = vset.pattern.permute.xlu0 0
      %756 = vperm.xlu0 %755, %v678
      %v757 = vpop.permute.xlu0 %756
      %759 = vset.pattern.permute.xlu0 0
      %760 = vperm.xlu0 %759, %v682
      %v761 = vpop.permute.xlu0 %760
      %763 = vset.pattern.permute.xlu0 0
      %764 = vperm.xlu0 %763, %v686
      %v765 = vpop.permute.xlu0 %764
      %767 = vset.pattern.permute.xlu0 0
      %768 = vperm.xlu0 %767, %v690
      %v769 = vpop.permute.xlu0 %768
      %771 = vset.pattern.permute.xlu0 0
      %772 = vperm.xlu0 %771, %v694
      %v773 = vpop.permute.xlu0 %772
      %775 = vset.pattern.permute.xlu0 0
      %776 = vperm.xlu0 %775, %v698
      %v777 = vpop.permute.xlu0 %776
      %779 = vset.pattern.permute.xlu0 0
      %780 = vperm.xlu0 %779, %v702
      %v781 = vpop.permute.xlu0 %780
      %783 = vset.pattern.permute.xlu0 0
      %784 = vperm.xlu0 %783, %v706
      %v785 = vpop.permute.xlu0 %784
      %787 = vset.pattern.permute.xlu0 0
      %788 = vperm.xlu0 %787, %v710
      %v789 = vpop.permute.xlu0 %788
      %791 = vset.pattern.permute.xlu0 0
      %792 = vperm.xlu0 %791, %v714
      %v793 = vpop.permute.xlu0 %792
      %795 = vset.pattern.permute.xlu0 0
      %796 = vperm.xlu0 %795, %v718
      %v797 = vpop.permute.xlu0 %796
      %799 = vset.pattern.permute.xlu0 0
      %800 = vperm.xlu0 %799, %v722
      %v801 = vpop.permute.xlu0 %800
      %803 = vset.pattern.permute.xlu0 0
      %804 = vperm.xlu0 %803, %v726
      %v805 = vpop.permute.xlu0 %804
      %807 = vset.pattern.permute.xlu0 0
      %808 = vperm.xlu0 %807, %v730
      %v809 = vpop.permute.xlu0 %808
      %811 = vset.pattern.permute.xlu0 0
      %812 = vperm.xlu0 %811, %v734
      %v813 = vpop.permute.xlu0 %812
      %815 = vset.pattern.permute.xlu0 0
      %816 = vperm.xlu0 %815, %v738
      %v817 = vpop.permute.xlu0 %816
      %819 = vset.pattern.permute.xlu0 0
      %820 = vperm.xlu0 %819, %v742
      %v821 = vpop.permute.xlu0 %820
      %823 = vset.pattern.permute.xlu0 0
      %824 = vperm.xlu0 %823, %v746
      %v825 = vpop.permute.xlu0 %824
      %827 = vset.pattern.permute.xlu0 0
      %828 = vperm.xlu0 %827, %v750
      %v829 = vpop.permute.xlu0 %828
      %831 = vset.pattern.permute.xlu0 0
      %832 = vperm.xlu0 %831, %v754
      %v833 = vpop.permute.xlu0 %832
      %v835 = vmul.f32 %v511, %v757
      %v836 = vmul.f32 %v512, %v757
      %v837 = vmul.f32 %v513, %v761
      %v838 = vmul.f32 %v514, %v761
      %v839 = vmul.f32 %v515, %v765
      %v840 = vmul.f32 %v516, %v765
      %v841 = vmul.f32 %v517, %v769
      %v842 = vmul.f32 %v518, %v769
      %v843 = vmul.f32 %v519, %v773
      %v844 = vmul.f32 %v520, %v773
      %v845 = vmul.f32 %v521, %v777
      %v846 = vmul.f32 %v522, %v777
      %v847 = vmul.f32 %v523, %v781
      %v848 = vmul.f32 %v524, %v781
      %v849 = vmul.f32 %v525, %v785
      %v850 = vmul.f32 %v526, %v785
      %v851 = vmul.f32 %v527, %v789
      %v852 = vmul.f32 %v528, %v789
      %v853 = vmul.f32 %v529, %v793
      %v854 = vmul.f32 %v530, %v793
      %v855 = vmul.f32 %v531, %v797
      %v856 = vmul.f32 %v532, %v797
      %v857 = vmul.f32 %v533, %v801
      %v858 = vmul.f32 %v534, %v801
      %v859 = vmul.f32 %v535, %v805
      %v860 = vmul.f32 %v536, %v805
      %v861 = vmul.f32 %v537, %v809
      %v862 = vmul.f32 %v538, %v809
      %v863 = vmul.f32 %v539, %v813
      %v864 = vmul.f32 %v540, %v813
      %v865 = vmul.f32 %v541, %v817
      %v866 = vmul.f32 %v542, %v817
      %v867 = vmul.f32 %v543, %v821
      %v868 = vmul.f32 %v544, %v821
      %v869 = vmul.f32 %v545, %v825
      %v870 = vmul.f32 %v546, %v825
      %v871 = vmul.f32 %v547, %v829
      %v872 = vmul.f32 %v548, %v829
      %v873 = vmul.f32 %v549, %v833
      %v874 = vmul.f32 %v550, %v833
      %v895 = vlaneseq
      %v896 = vshrl.u32 %v895, 7
      %v897 = vsub.s32 0, %v896
      %v898 = vrot.slane %v575, %v897
      %v899 = vlaneseq
      %v900 = vshrl.u32 %v899, 7
      %v901 = vsub.s32 0, %v900
      %v902 = vrot.slane %v576, %v901
      %v903 = vlaneseq
      %v904 = vshrl.u32 %v903, 7
      %v905 = vsub.s32 0, %v904
      %v906 = vrot.slane %v577, %v905
      %v907 = vlaneseq
      %v908 = vshrl.u32 %v907, 7
      %v909 = vsub.s32 0, %v908
      %v910 = vrot.slane %v578, %v909
      %v911 = vlaneseq
      %v912 = vshrl.u32 %v911, 7
      %v913 = vsub.s32 0, %v912
      %v914 = vrot.slane %v579, %v913
      %v915 = vlaneseq
      %v916 = vshrl.u32 %v915, 7
      %v917 = vsub.s32 0, %v916
      %v918 = vrot.slane %v580, %v917
      %v919 = vlaneseq
      %v920 = vshrl.u32 %v919, 7
      %v921 = vsub.s32 0, %v920
      %v922 = vrot.slane %v581, %v921
      %v923 = vlaneseq
      %v924 = vshrl.u32 %v923, 7
      %v925 = vsub.s32 0, %v924
      %v926 = vrot.slane %v582, %v925
      %v927 = vlaneseq
      %v928 = vshrl.u32 %v927, 7
      %v929 = vsub.s32 0, %v928
      %v930 = vrot.slane %v583, %v929
      %v931 = vlaneseq
      %v932 = vshrl.u32 %v931, 7
      %v933 = vsub.s32 0, %v932
      %v934 = vrot.slane %v584, %v933
      %v935 = vlaneseq
      %v936 = vshrl.u32 %v935, 7
      %v937 = vsub.s32 0, %v936
      %v938 = vrot.slane %v585, %v937
      %v939 = vlaneseq
      %v940 = vshrl.u32 %v939, 7
      %v941 = vsub.s32 0, %v940
      %v942 = vrot.slane %v586, %v941
      %v943 = vlaneseq
      %v944 = vshrl.u32 %v943, 7
      %v945 = vsub.s32 0, %v944
      %v946 = vrot.slane %v587, %v945
      %v947 = vlaneseq
      %v948 = vshrl.u32 %v947, 7
      %v949 = vsub.s32 0, %v948
      %v950 = vrot.slane %v588, %v949
      %v951 = vlaneseq
      %v952 = vshrl.u32 %v951, 7
      %v953 = vsub.s32 0, %v952
      %v954 = vrot.slane %v589, %v953
      %v955 = vlaneseq
      %v956 = vshrl.u32 %v955, 7
      %v957 = vsub.s32 0, %v956
      %v958 = vrot.slane %v590, %v957
      %v959 = vlaneseq
      %v960 = vshrl.u32 %v959, 7
      %v961 = vsub.s32 0, %v960
      %v962 = vrot.slane %v591, %v961
      %v963 = vlaneseq
      %v964 = vshrl.u32 %v963, 7
      %v965 = vsub.s32 0, %v964
      %v966 = vrot.slane %v592, %v965
      %v967 = vlaneseq
      %v968 = vshrl.u32 %v967, 7
      %v969 = vsub.s32 0, %v968
      %v970 = vrot.slane %v593, %v969
      %v971 = vlaneseq
      %v972 = vshrl.u32 %v971, 7
      %v973 = vsub.s32 0, %v972
      %v974 = vrot.slane %v594, %v973
      %975 = vset.pattern.permute.xlu0 0
      %976 = vperm.xlu0 %975, %v898
      %v977 = vpop.permute.xlu0 %976
      %979 = vset.pattern.permute.xlu0 0
      %980 = vperm.xlu0 %979, %v902
      %v981 = vpop.permute.xlu0 %980
      %983 = vset.pattern.permute.xlu0 0
      %984 = vperm.xlu0 %983, %v906
      %v985 = vpop.permute.xlu0 %984
      %987 = vset.pattern.permute.xlu0 0
      %988 = vperm.xlu0 %987, %v910
      %v989 = vpop.permute.xlu0 %988
      %991 = vset.pattern.permute.xlu0 0
      %992 = vperm.xlu0 %991, %v914
      %v993 = vpop.permute.xlu0 %992
      %995 = vset.pattern.permute.xlu0 0
      %996 = vperm.xlu0 %995, %v918
      %v997 = vpop.permute.xlu0 %996
      %999 = vset.pattern.permute.xlu0 0
      %1000 = vperm.xlu0 %999, %v922
      %v1001 = vpop.permute.xlu0 %1000
      %1003 = vset.pattern.permute.xlu0 0
      %1004 = vperm.xlu0 %1003, %v926
      %v1005 = vpop.permute.xlu0 %1004
      %1007 = vset.pattern.permute.xlu0 0
      %1008 = vperm.xlu0 %1007, %v930
      %v1009 = vpop.permute.xlu0 %1008
      %1011 = vset.pattern.permute.xlu0 0
      %1012 = vperm.xlu0 %1011, %v934
      %v1013 = vpop.permute.xlu0 %1012
      %1015 = vset.pattern.permute.xlu0 0
      %1016 = vperm.xlu0 %1015, %v938
      %v1017 = vpop.permute.xlu0 %1016
      %1019 = vset.pattern.permute.xlu0 0
      %1020 = vperm.xlu0 %1019, %v942
      %v1021 = vpop.permute.xlu0 %1020
      %1023 = vset.pattern.permute.xlu0 0
      %1024 = vperm.xlu0 %1023, %v946
      %v1025 = vpop.permute.xlu0 %1024
      %1027 = vset.pattern.permute.xlu0 0
      %1028 = vperm.xlu0 %1027, %v950
      %v1029 = vpop.permute.xlu0 %1028
      %1031 = vset.pattern.permute.xlu0 0
      %1032 = vperm.xlu0 %1031, %v954
      %v1033 = vpop.permute.xlu0 %1032
      %1035 = vset.pattern.permute.xlu0 0
      %1036 = vperm.xlu0 %1035, %v958
      %v1037 = vpop.permute.xlu0 %1036
      %1039 = vset.pattern.permute.xlu0 0
      %1040 = vperm.xlu0 %1039, %v962
      %v1041 = vpop.permute.xlu0 %1040
      %1043 = vset.pattern.permute.xlu0 0
      %1044 = vperm.xlu0 %1043, %v966
      %v1045 = vpop.permute.xlu0 %1044
      %1047 = vset.pattern.permute.xlu0 0
      %1048 = vperm.xlu0 %1047, %v970
      %v1049 = vpop.permute.xlu0 %1048
      %1051 = vset.pattern.permute.xlu0 0
      %1052 = vperm.xlu0 %1051, %v974
      %v1053 = vpop.permute.xlu0 %1052
      %v1055 = vmul.f32 %v509, %v977
      %v1056 = vmul.f32 %v510, %v977
      %v1057 = vmul.f32 %v509, %v981
      %v1058 = vmul.f32 %v510, %v981
      %v1059 = vmul.f32 %v509, %v985
      %v1060 = vmul.f32 %v510, %v985
      %v1061 = vmul.f32 %v509, %v989
      %v1062 = vmul.f32 %v510, %v989
      %v1063 = vmul.f32 %v509, %v993
      %v1064 = vmul.f32 %v510, %v993
      %v1065 = vmul.f32 %v509, %v997
      %v1066 = vmul.f32 %v510, %v997
      %v1067 = vmul.f32 %v509, %v1001
      %v1068 = vmul.f32 %v510, %v1001
      %v1069 = vmul.f32 %v509, %v1005
      %v1070 = vmul.f32 %v510, %v1005
      %v1071 = vmul.f32 %v509, %v1009
      %v1072 = vmul.f32 %v510, %v1009
      %v1073 = vmul.f32 %v509, %v1013
      %v1074 = vmul.f32 %v510, %v1013
      %v1075 = vmul.f32 %v509, %v1017
      %v1076 = vmul.f32 %v510, %v1017
      %v1077 = vmul.f32 %v509, %v1021
      %v1078 = vmul.f32 %v510, %v1021
      %v1079 = vmul.f32 %v509, %v1025
      %v1080 = vmul.f32 %v510, %v1025
      %v1081 = vmul.f32 %v509, %v1029
      %v1082 = vmul.f32 %v510, %v1029
      %v1083 = vmul.f32 %v509, %v1033
      %v1084 = vmul.f32 %v510, %v1033
      %v1085 = vmul.f32 %v509, %v1037
      %v1086 = vmul.f32 %v510, %v1037
      %v1087 = vmul.f32 %v509, %v1041
      %v1088 = vmul.f32 %v510, %v1041
      %v1089 = vmul.f32 %v509, %v1045
      %v1090 = vmul.f32 %v510, %v1045
      %v1091 = vmul.f32 %v509, %v1049
      %v1092 = vmul.f32 %v510, %v1049
      %v1093 = vmul.f32 %v509, %v1053
      %v1094 = vmul.f32 %v510, %v1053
      %v1095 = vadd.f32 %v835, %v1055
      %v1096 = vadd.f32 %v836, %v1056
      %v1097 = vadd.f32 %v837, %v1057
      %v1098 = vadd.f32 %v838, %v1058
      %v1099 = vadd.f32 %v839, %v1059
      %v1100 = vadd.f32 %v840, %v1060
      %v1101 = vadd.f32 %v841, %v1061
      %v1102 = vadd.f32 %v842, %v1062
      %v1103 = vadd.f32 %v843, %v1063
      %v1104 = vadd.f32 %v844, %v1064
      %v1105 = vadd.f32 %v845, %v1065
      %v1106 = vadd.f32 %v846, %v1066
      %v1107 = vadd.f32 %v847, %v1067
      %v1108 = vadd.f32 %v848, %v1068
      %v1109 = vadd.f32 %v849, %v1069
      %v1110 = vadd.f32 %v850, %v1070
      %v1111 = vadd.f32 %v851, %v1071
      %v1112 = vadd.f32 %v852, %v1072
      %v1113 = vadd.f32 %v853, %v1073
      %v1114 = vadd.f32 %v854, %v1074
      %v1115 = vadd.f32 %v855, %v1075
      %v1116 = vadd.f32 %v856, %v1076
      %v1117 = vadd.f32 %v857, %v1077
      %v1118 = vadd.f32 %v858, %v1078
      %v1119 = vadd.f32 %v859, %v1079
      %v1120 = vadd.f32 %v860, %v1080
      %v1121 = vadd.f32 %v861, %v1081
      %v1122 = vadd.f32 %v862, %v1082
      %v1123 = vadd.f32 %v863, %v1083
      %v1124 = vadd.f32 %v864, %v1084
      %v1125 = vadd.f32 %v865, %v1085
      %v1126 = vadd.f32 %v866, %v1086
      %v1127 = vadd.f32 %v867, %v1087
      %v1128 = vadd.f32 %v868, %v1088
      %v1129 = vadd.f32 %v869, %v1089
      %v1130 = vadd.f32 %v870, %v1090
      %v1131 = vadd.f32 %v871, %v1091
      %v1132 = vadd.f32 %v872, %v1092
      %v1133 = vadd.f32 %v873, %v1093
      %v1134 = vadd.f32 %v874, %v1094
      %v1155 = vlaneseq
      %v1156 = vshrl.u32 %v1155, 7
      %v1157 = vsub.s32 0, %v1156
      %v1158 = vrot.slane %v595, %v1157
      %v1159 = vlaneseq
      %v1160 = vshrl.u32 %v1159, 7
      %v1161 = vsub.s32 0, %v1160
      %v1162 = vrot.slane %v596, %v1161
      %v1163 = vlaneseq
      %v1164 = vshrl.u32 %v1163, 7
      %v1165 = vsub.s32 0, %v1164
      %v1166 = vrot.slane %v597, %v1165
      %v1167 = vlaneseq
      %v1168 = vshrl.u32 %v1167, 7
      %v1169 = vsub.s32 0, %v1168
      %v1170 = vrot.slane %v598, %v1169
      %v1171 = vlaneseq
      %v1172 = vshrl.u32 %v1171, 7
      %v1173 = vsub.s32 0, %v1172
      %v1174 = vrot.slane %v599, %v1173
      %v1175 = vlaneseq
      %v1176 = vshrl.u32 %v1175, 7
      %v1177 = vsub.s32 0, %v1176
      %v1178 = vrot.slane %v600, %v1177
      %v1179 = vlaneseq
      %v1180 = vshrl.u32 %v1179, 7
      %v1181 = vsub.s32 0, %v1180
      %v1182 = vrot.slane %v601, %v1181
      %v1183 = vlaneseq
      %v1184 = vshrl.u32 %v1183, 7
      %v1185 = vsub.s32 0, %v1184
      %v1186 = vrot.slane %v602, %v1185
      %v1187 = vlaneseq
      %v1188 = vshrl.u32 %v1187, 7
      %v1189 = vsub.s32 0, %v1188
      %v1190 = vrot.slane %v603, %v1189
      %v1191 = vlaneseq
      %v1192 = vshrl.u32 %v1191, 7
      %v1193 = vsub.s32 0, %v1192
      %v1194 = vrot.slane %v604, %v1193
      %v1195 = vlaneseq
      %v1196 = vshrl.u32 %v1195, 7
      %v1197 = vsub.s32 0, %v1196
      %v1198 = vrot.slane %v605, %v1197
      %v1199 = vlaneseq
      %v1200 = vshrl.u32 %v1199, 7
      %v1201 = vsub.s32 0, %v1200
      %v1202 = vrot.slane %v606, %v1201
      %v1203 = vlaneseq
      %v1204 = vshrl.u32 %v1203, 7
      %v1205 = vsub.s32 0, %v1204
      %v1206 = vrot.slane %v607, %v1205
      %v1207 = vlaneseq
      %v1208 = vshrl.u32 %v1207, 7
      %v1209 = vsub.s32 0, %v1208
      %v1210 = vrot.slane %v608, %v1209
      %v1211 = vlaneseq
      %v1212 = vshrl.u32 %v1211, 7
      %v1213 = vsub.s32 0, %v1212
      %v1214 = vrot.slane %v609, %v1213
      %v1215 = vlaneseq
      %v1216 = vshrl.u32 %v1215, 7
      %v1217 = vsub.s32 0, %v1216
      %v1218 = vrot.slane %v610, %v1217
      %v1219 = vlaneseq
      %v1220 = vshrl.u32 %v1219, 7
      %v1221 = vsub.s32 0, %v1220
      %v1222 = vrot.slane %v611, %v1221
      %v1223 = vlaneseq
      %v1224 = vshrl.u32 %v1223, 7
      %v1225 = vsub.s32 0, %v1224
      %v1226 = vrot.slane %v612, %v1225
      %v1227 = vlaneseq
      %v1228 = vshrl.u32 %v1227, 7
      %v1229 = vsub.s32 0, %v1228
      %v1230 = vrot.slane %v613, %v1229
      %v1231 = vlaneseq
      %v1232 = vshrl.u32 %v1231, 7
      %v1233 = vsub.s32 0, %v1232
      %v1234 = vrot.slane %v614, %v1233
      %1235 = vset.pattern.permute.xlu0 0
      %1236 = vperm.xlu0 %1235, %v1158
      %v1237 = vpop.permute.xlu0 %1236
      %1239 = vset.pattern.permute.xlu0 0
      %1240 = vperm.xlu0 %1239, %v1162
      %v1241 = vpop.permute.xlu0 %1240
      %1243 = vset.pattern.permute.xlu0 0
      %1244 = vperm.xlu0 %1243, %v1166
      %v1245 = vpop.permute.xlu0 %1244
      %1247 = vset.pattern.permute.xlu0 0
      %1248 = vperm.xlu0 %1247, %v1170
      %v1249 = vpop.permute.xlu0 %1248
      %1251 = vset.pattern.permute.xlu0 0
      %1252 = vperm.xlu0 %1251, %v1174
      %v1253 = vpop.permute.xlu0 %1252
      %1255 = vset.pattern.permute.xlu0 0
      %1256 = vperm.xlu0 %1255, %v1178
      %v1257 = vpop.permute.xlu0 %1256
      %1259 = vset.pattern.permute.xlu0 0
      %1260 = vperm.xlu0 %1259, %v1182
      %v1261 = vpop.permute.xlu0 %1260
      %1263 = vset.pattern.permute.xlu0 0
      %1264 = vperm.xlu0 %1263, %v1186
      %v1265 = vpop.permute.xlu0 %1264
      %1267 = vset.pattern.permute.xlu0 0
      %1268 = vperm.xlu0 %1267, %v1190
      %v1269 = vpop.permute.xlu0 %1268
      %1271 = vset.pattern.permute.xlu0 0
      %1272 = vperm.xlu0 %1271, %v1194
      %v1273 = vpop.permute.xlu0 %1272
      %1275 = vset.pattern.permute.xlu0 0
      %1276 = vperm.xlu0 %1275, %v1198
      %v1277 = vpop.permute.xlu0 %1276
      %1279 = vset.pattern.permute.xlu0 0
      %1280 = vperm.xlu0 %1279, %v1202
      %v1281 = vpop.permute.xlu0 %1280
      %1283 = vset.pattern.permute.xlu0 0
      %1284 = vperm.xlu0 %1283, %v1206
      %v1285 = vpop.permute.xlu0 %1284
      %1287 = vset.pattern.permute.xlu0 0
      %1288 = vperm.xlu0 %1287, %v1210
      %v1289 = vpop.permute.xlu0 %1288
      %1291 = vset.pattern.permute.xlu0 0
      %1292 = vperm.xlu0 %1291, %v1214
      %v1293 = vpop.permute.xlu0 %1292
      %1295 = vset.pattern.permute.xlu0 0
      %1296 = vperm.xlu0 %1295, %v1218
      %v1297 = vpop.permute.xlu0 %1296
      %1299 = vset.pattern.permute.xlu0 0
      %1300 = vperm.xlu0 %1299, %v1222
      %v1301 = vpop.permute.xlu0 %1300
      %1303 = vset.pattern.permute.xlu0 0
      %1304 = vperm.xlu0 %1303, %v1226
      %v1305 = vpop.permute.xlu0 %1304
      %1307 = vset.pattern.permute.xlu0 0
      %1308 = vperm.xlu0 %1307, %v1230
      %v1309 = vpop.permute.xlu0 %1308
      %1311 = vset.pattern.permute.xlu0 0
      %1312 = vperm.xlu0 %1311, %v1234
      %v1313 = vpop.permute.xlu0 %1312
      %v1315 = vmul.f32 %v551, %v1237
      %v1316 = vmul.f32 %v552, %v1237
      %v1317 = vmul.f32 %v551, %v1241
      %v1318 = vmul.f32 %v552, %v1241
      %v1319 = vmul.f32 %v551, %v1245
      %v1320 = vmul.f32 %v552, %v1245
      %v1321 = vmul.f32 %v551, %v1249
      %v1322 = vmul.f32 %v552, %v1249
      %v1323 = vmul.f32 %v551, %v1253
      %v1324 = vmul.f32 %v552, %v1253
      %v1325 = vmul.f32 %v551, %v1257
      %v1326 = vmul.f32 %v552, %v1257
      %v1327 = vmul.f32 %v551, %v1261
      %v1328 = vmul.f32 %v552, %v1261
      %v1329 = vmul.f32 %v551, %v1265
      %v1330 = vmul.f32 %v552, %v1265
      %v1331 = vmul.f32 %v551, %v1269
      %v1332 = vmul.f32 %v552, %v1269
      %v1333 = vmul.f32 %v551, %v1273
      %v1334 = vmul.f32 %v552, %v1273
      %v1335 = vmul.f32 %v551, %v1277
      %v1336 = vmul.f32 %v552, %v1277
      %v1337 = vmul.f32 %v551, %v1281
      %v1338 = vmul.f32 %v552, %v1281
      %v1339 = vmul.f32 %v551, %v1285
      %v1340 = vmul.f32 %v552, %v1285
      %v1341 = vmul.f32 %v551, %v1289
      %v1342 = vmul.f32 %v552, %v1289
      %v1343 = vmul.f32 %v551, %v1293
      %v1344 = vmul.f32 %v552, %v1293
      %v1345 = vmul.f32 %v551, %v1297
      %v1346 = vmul.f32 %v552, %v1297
      %v1347 = vmul.f32 %v551, %v1301
      %v1348 = vmul.f32 %v552, %v1301
      %v1349 = vmul.f32 %v551, %v1305
      %v1350 = vmul.f32 %v552, %v1305
      %v1351 = vmul.f32 %v551, %v1309
      %v1352 = vmul.f32 %v552, %v1309
      %v1353 = vmul.f32 %v551, %v1313
      %v1354 = vmul.f32 %v552, %v1313
      %v1355 = vadd.f32 %v1095, %v1315
      %v1356 = vadd.f32 %v1096, %v1316
      %v1357 = vadd.f32 %v1097, %v1317
      %v1358 = vadd.f32 %v1098, %v1318
      %v1359 = vadd.f32 %v1099, %v1319
      %v1360 = vadd.f32 %v1100, %v1320
      %v1361 = vadd.f32 %v1101, %v1321
      %v1362 = vadd.f32 %v1102, %v1322
      %v1363 = vadd.f32 %v1103, %v1323
      %v1364 = vadd.f32 %v1104, %v1324
      %v1365 = vadd.f32 %v1105, %v1325
      %v1366 = vadd.f32 %v1106, %v1326
      %v1367 = vadd.f32 %v1107, %v1327
      %v1368 = vadd.f32 %v1108, %v1328
      %v1369 = vadd.f32 %v1109, %v1329
      %v1370 = vadd.f32 %v1110, %v1330
      %v1371 = vadd.f32 %v1111, %v1331
      %v1372 = vadd.f32 %v1112, %v1332
      %v1373 = vadd.f32 %v1113, %v1333
      %v1374 = vadd.f32 %v1114, %v1334
      %v1375 = vadd.f32 %v1115, %v1335
      %v1376 = vadd.f32 %v1116, %v1336
      %v1377 = vadd.f32 %v1117, %v1337
      %v1378 = vadd.f32 %v1118, %v1338
      %v1379 = vadd.f32 %v1119, %v1339
      %v1380 = vadd.f32 %v1120, %v1340
      %v1381 = vadd.f32 %v1121, %v1341
      %v1382 = vadd.f32 %v1122, %v1342
      %v1383 = vadd.f32 %v1123, %v1343
      %v1384 = vadd.f32 %v1124, %v1344
      %v1385 = vadd.f32 %v1125, %v1345
      %v1386 = vadd.f32 %v1126, %v1346
      %v1387 = vadd.f32 %v1127, %v1347
      %v1388 = vadd.f32 %v1128, %v1348
      %v1389 = vadd.f32 %v1129, %v1349
      %v1390 = vadd.f32 %v1130, %v1350
      %v1391 = vadd.f32 %v1131, %v1351
      %v1392 = vadd.f32 %v1132, %v1352
      %v1393 = vadd.f32 %v1133, %v1353
      %v1394 = vadd.f32 %v1134, %v1354
      %v1415 = vlaneseq
      %v1416 = vshrl.u32 %v1415, 7
      %v1417 = vsub.s32 0, %v1416
      %v1418 = vrot.slane %v615, %v1417
      %v1419 = vlaneseq
      %v1420 = vshrl.u32 %v1419, 7
      %v1421 = vsub.s32 0, %v1420
      %v1422 = vrot.slane %v616, %v1421
      %v1423 = vlaneseq
      %v1424 = vshrl.u32 %v1423, 7
      %v1425 = vsub.s32 0, %v1424
      %v1426 = vrot.slane %v617, %v1425
      %v1427 = vlaneseq
      %v1428 = vshrl.u32 %v1427, 7
      %v1429 = vsub.s32 0, %v1428
      %v1430 = vrot.slane %v618, %v1429
      %v1431 = vlaneseq
      %v1432 = vshrl.u32 %v1431, 7
      %v1433 = vsub.s32 0, %v1432
      %v1434 = vrot.slane %v619, %v1433
      %v1435 = vlaneseq
      %v1436 = vshrl.u32 %v1435, 7
      %v1437 = vsub.s32 0, %v1436
      %v1438 = vrot.slane %v620, %v1437
      %v1439 = vlaneseq
      %v1440 = vshrl.u32 %v1439, 7
      %v1441 = vsub.s32 0, %v1440
      %v1442 = vrot.slane %v621, %v1441
      %v1443 = vlaneseq
      %v1444 = vshrl.u32 %v1443, 7
      %v1445 = vsub.s32 0, %v1444
      %v1446 = vrot.slane %v622, %v1445
      %v1447 = vlaneseq
      %v1448 = vshrl.u32 %v1447, 7
      %v1449 = vsub.s32 0, %v1448
      %v1450 = vrot.slane %v623, %v1449
      %v1451 = vlaneseq
      %v1452 = vshrl.u32 %v1451, 7
      %v1453 = vsub.s32 0, %v1452
      %v1454 = vrot.slane %v624, %v1453
      %v1455 = vlaneseq
      %v1456 = vshrl.u32 %v1455, 7
      %v1457 = vsub.s32 0, %v1456
      %v1458 = vrot.slane %v625, %v1457
      %v1459 = vlaneseq
      %v1460 = vshrl.u32 %v1459, 7
      %v1461 = vsub.s32 0, %v1460
      %v1462 = vrot.slane %v626, %v1461
      %v1463 = vlaneseq
      %v1464 = vshrl.u32 %v1463, 7
      %v1465 = vsub.s32 0, %v1464
      %v1466 = vrot.slane %v627, %v1465
      %v1467 = vlaneseq
      %v1468 = vshrl.u32 %v1467, 7
      %v1469 = vsub.s32 0, %v1468
      %v1470 = vrot.slane %v628, %v1469
      %v1471 = vlaneseq
      %v1472 = vshrl.u32 %v1471, 7
      %v1473 = vsub.s32 0, %v1472
      %v1474 = vrot.slane %v629, %v1473
      %v1475 = vlaneseq
      %v1476 = vshrl.u32 %v1475, 7
      %v1477 = vsub.s32 0, %v1476
      %v1478 = vrot.slane %v630, %v1477
      %v1479 = vlaneseq
      %v1480 = vshrl.u32 %v1479, 7
      %v1481 = vsub.s32 0, %v1480
      %v1482 = vrot.slane %v631, %v1481
      %v1483 = vlaneseq
      %v1484 = vshrl.u32 %v1483, 7
      %v1485 = vsub.s32 0, %v1484
      %v1486 = vrot.slane %v632, %v1485
      %v1487 = vlaneseq
      %v1488 = vshrl.u32 %v1487, 7
      %v1489 = vsub.s32 0, %v1488
      %v1490 = vrot.slane %v633, %v1489
      %v1491 = vlaneseq
      %v1492 = vshrl.u32 %v1491, 7
      %v1493 = vsub.s32 0, %v1492
      %v1494 = vrot.slane %v634, %v1493
      %1495 = vset.pattern.permute.xlu0 0
      %1496 = vperm.xlu0 %1495, %v1418
      %v1497 = vpop.permute.xlu0 %1496
      %1499 = vset.pattern.permute.xlu0 0
      %1500 = vperm.xlu0 %1499, %v1422
      %v1501 = vpop.permute.xlu0 %1500
      %1503 = vset.pattern.permute.xlu0 0
      %1504 = vperm.xlu0 %1503, %v1426
      %v1505 = vpop.permute.xlu0 %1504
      %1507 = vset.pattern.permute.xlu0 0
      %1508 = vperm.xlu0 %1507, %v1430
      %v1509 = vpop.permute.xlu0 %1508
      %1511 = vset.pattern.permute.xlu0 0
      %1512 = vperm.xlu0 %1511, %v1434
      %v1513 = vpop.permute.xlu0 %1512
      %1515 = vset.pattern.permute.xlu0 0
      %1516 = vperm.xlu0 %1515, %v1438
      %v1517 = vpop.permute.xlu0 %1516
      %1519 = vset.pattern.permute.xlu0 0
      %1520 = vperm.xlu0 %1519, %v1442
      %v1521 = vpop.permute.xlu0 %1520
      %1523 = vset.pattern.permute.xlu0 0
      %1524 = vperm.xlu0 %1523, %v1446
      %v1525 = vpop.permute.xlu0 %1524
      %1527 = vset.pattern.permute.xlu0 0
      %1528 = vperm.xlu0 %1527, %v1450
      %v1529 = vpop.permute.xlu0 %1528
      %1531 = vset.pattern.permute.xlu0 0
      %1532 = vperm.xlu0 %1531, %v1454
      %v1533 = vpop.permute.xlu0 %1532
      %1535 = vset.pattern.permute.xlu0 0
      %1536 = vperm.xlu0 %1535, %v1458
      %v1537 = vpop.permute.xlu0 %1536
      %1539 = vset.pattern.permute.xlu0 0
      %1540 = vperm.xlu0 %1539, %v1462
      %v1541 = vpop.permute.xlu0 %1540
      %1543 = vset.pattern.permute.xlu0 0
      %1544 = vperm.xlu0 %1543, %v1466
      %v1545 = vpop.permute.xlu0 %1544
      %1547 = vset.pattern.permute.xlu0 0
      %1548 = vperm.xlu0 %1547, %v1470
      %v1549 = vpop.permute.xlu0 %1548
      %1551 = vset.pattern.permute.xlu0 0
      %1552 = vperm.xlu0 %1551, %v1474
      %v1553 = vpop.permute.xlu0 %1552
      %1555 = vset.pattern.permute.xlu0 0
      %1556 = vperm.xlu0 %1555, %v1478
      %v1557 = vpop.permute.xlu0 %1556
      %1559 = vset.pattern.permute.xlu0 0
      %1560 = vperm.xlu0 %1559, %v1482
      %v1561 = vpop.permute.xlu0 %1560
      %1563 = vset.pattern.permute.xlu0 0
      %1564 = vperm.xlu0 %1563, %v1486
      %v1565 = vpop.permute.xlu0 %1564
      %1567 = vset.pattern.permute.xlu0 0
      %1568 = vperm.xlu0 %1567, %v1490
      %v1569 = vpop.permute.xlu0 %1568
      %1571 = vset.pattern.permute.xlu0 0
      %1572 = vperm.xlu0 %1571, %v1494
      %v1573 = vpop.permute.xlu0 %1572
      %v1575 = vmul.f32 %v553, %v1497
      %v1576 = vmul.f32 %v554, %v1497
      %v1577 = vmul.f32 %v553, %v1501
      %v1578 = vmul.f32 %v554, %v1501
      %v1579 = vmul.f32 %v553, %v1505
      %v1580 = vmul.f32 %v554, %v1505
      %v1581 = vmul.f32 %v553, %v1509
      %v1582 = vmul.f32 %v554, %v1509
      %v1583 = vmul.f32 %v553, %v1513
      %v1584 = vmul.f32 %v554, %v1513
      %v1585 = vmul.f32 %v553, %v1517
      %v1586 = vmul.f32 %v554, %v1517
      %v1587 = vmul.f32 %v553, %v1521
      %v1588 = vmul.f32 %v554, %v1521
      %v1589 = vmul.f32 %v553, %v1525
      %v1590 = vmul.f32 %v554, %v1525
      %v1591 = vmul.f32 %v553, %v1529
      %v1592 = vmul.f32 %v554, %v1529
      %v1593 = vmul.f32 %v553, %v1533
      %v1594 = vmul.f32 %v554, %v1533
      %v1595 = vmul.f32 %v553, %v1537
      %v1596 = vmul.f32 %v554, %v1537
      %v1597 = vmul.f32 %v553, %v1541
      %v1598 = vmul.f32 %v554, %v1541
      %v1599 = vmul.f32 %v553, %v1545
      %v1600 = vmul.f32 %v554, %v1545
      %v1601 = vmul.f32 %v553, %v1549
      %v1602 = vmul.f32 %v554, %v1549
      %v1603 = vmul.f32 %v553, %v1553
      %v1604 = vmul.f32 %v554, %v1553
      %v1605 = vmul.f32 %v553, %v1557
      %v1606 = vmul.f32 %v554, %v1557
      %v1607 = vmul.f32 %v553, %v1561
      %v1608 = vmul.f32 %v554, %v1561
      %v1609 = vmul.f32 %v553, %v1565
      %v1610 = vmul.f32 %v554, %v1565
      %v1611 = vmul.f32 %v553, %v1569
      %v1612 = vmul.f32 %v554, %v1569
      %v1613 = vmul.f32 %v553, %v1573
      %v1614 = vmul.f32 %v554, %v1573
      %v1615 = vadd.f32 %v1355, %v1575
      %v1616 = vadd.f32 %v1356, %v1576
      %v1617 = vadd.f32 %v1357, %v1577
      %v1618 = vadd.f32 %v1358, %v1578
      %v1619 = vadd.f32 %v1359, %v1579
      %v1620 = vadd.f32 %v1360, %v1580
      %v1621 = vadd.f32 %v1361, %v1581
      %v1622 = vadd.f32 %v1362, %v1582
      %v1623 = vadd.f32 %v1363, %v1583
      %v1624 = vadd.f32 %v1364, %v1584
      %v1625 = vadd.f32 %v1365, %v1585
      %v1626 = vadd.f32 %v1366, %v1586
      %v1627 = vadd.f32 %v1367, %v1587
      %v1628 = vadd.f32 %v1368, %v1588
      %v1629 = vadd.f32 %v1369, %v1589
      %v1630 = vadd.f32 %v1370, %v1590
      %v1631 = vadd.f32 %v1371, %v1591
      %v1632 = vadd.f32 %v1372, %v1592
      %v1633 = vadd.f32 %v1373, %v1593
      %v1634 = vadd.f32 %v1374, %v1594
      %v1635 = vadd.f32 %v1375, %v1595
      %v1636 = vadd.f32 %v1376, %v1596
      %v1637 = vadd.f32 %v1377, %v1597
      %v1638 = vadd.f32 %v1378, %v1598
      %v1639 = vadd.f32 %v1379, %v1599
      %v1640 = vadd.f32 %v1380, %v1600
      %v1641 = vadd.f32 %v1381, %v1601
      %v1642 = vadd.f32 %v1382, %v1602
      %v1643 = vadd.f32 %v1383, %v1603
      %v1644 = vadd.f32 %v1384, %v1604
      %v1645 = vadd.f32 %v1385, %v1605
      %v1646 = vadd.f32 %v1386, %v1606
      %v1647 = vadd.f32 %v1387, %v1607
      %v1648 = vadd.f32 %v1388, %v1608
      %v1649 = vadd.f32 %v1389, %v1609
      %v1650 = vadd.f32 %v1390, %v1610
      %v1651 = vadd.f32 %v1391, %v1611
      %v1652 = vadd.f32 %v1392, %v1612
      %v1653 = vadd.f32 %v1393, %v1613
      %v1654 = vadd.f32 %v1394, %v1614
      %v1675 = vlaneseq
      %v1676 = vshrl.u32 %v1675, 7
      %v1677 = vsub.s32 0, %v1676
      %v1678 = vrot.slane %v635, %v1677
      %v1679 = vlaneseq
      %v1680 = vshrl.u32 %v1679, 7
      %v1681 = vsub.s32 0, %v1680
      %v1682 = vrot.slane %v636, %v1681
      %v1683 = vlaneseq
      %v1684 = vshrl.u32 %v1683, 7
      %v1685 = vsub.s32 0, %v1684
      %v1686 = vrot.slane %v637, %v1685
      %v1687 = vlaneseq
      %v1688 = vshrl.u32 %v1687, 7
      %v1689 = vsub.s32 0, %v1688
      %v1690 = vrot.slane %v638, %v1689
      %v1691 = vlaneseq
      %v1692 = vshrl.u32 %v1691, 7
      %v1693 = vsub.s32 0, %v1692
      %v1694 = vrot.slane %v639, %v1693
      %v1695 = vlaneseq
      %v1696 = vshrl.u32 %v1695, 7
      %v1697 = vsub.s32 0, %v1696
      %v1698 = vrot.slane %v640, %v1697
      %v1699 = vlaneseq
      %v1700 = vshrl.u32 %v1699, 7
      %v1701 = vsub.s32 0, %v1700
      %v1702 = vrot.slane %v641, %v1701
      %v1703 = vlaneseq
      %v1704 = vshrl.u32 %v1703, 7
      %v1705 = vsub.s32 0, %v1704
      %v1706 = vrot.slane %v642, %v1705
      %v1707 = vlaneseq
      %v1708 = vshrl.u32 %v1707, 7
      %v1709 = vsub.s32 0, %v1708
      %v1710 = vrot.slane %v643, %v1709
      %v1711 = vlaneseq
      %v1712 = vshrl.u32 %v1711, 7
      %v1713 = vsub.s32 0, %v1712
      %v1714 = vrot.slane %v644, %v1713
      %v1715 = vlaneseq
      %v1716 = vshrl.u32 %v1715, 7
      %v1717 = vsub.s32 0, %v1716
      %v1718 = vrot.slane %v645, %v1717
      %v1719 = vlaneseq
      %v1720 = vshrl.u32 %v1719, 7
      %v1721 = vsub.s32 0, %v1720
      %v1722 = vrot.slane %v646, %v1721
      %v1723 = vlaneseq
      %v1724 = vshrl.u32 %v1723, 7
      %v1725 = vsub.s32 0, %v1724
      %v1726 = vrot.slane %v647, %v1725
      %v1727 = vlaneseq
      %v1728 = vshrl.u32 %v1727, 7
      %v1729 = vsub.s32 0, %v1728
      %v1730 = vrot.slane %v648, %v1729
      %v1731 = vlaneseq
      %v1732 = vshrl.u32 %v1731, 7
      %v1733 = vsub.s32 0, %v1732
      %v1734 = vrot.slane %v649, %v1733
      %v1735 = vlaneseq
      %v1736 = vshrl.u32 %v1735, 7
      %v1737 = vsub.s32 0, %v1736
      %v1738 = vrot.slane %v650, %v1737
      %v1739 = vlaneseq
      %v1740 = vshrl.u32 %v1739, 7
      %v1741 = vsub.s32 0, %v1740
      %v1742 = vrot.slane %v651, %v1741
      %v1743 = vlaneseq
      %v1744 = vshrl.u32 %v1743, 7
      %v1745 = vsub.s32 0, %v1744
      %v1746 = vrot.slane %v652, %v1745
      %v1747 = vlaneseq
      %v1748 = vshrl.u32 %v1747, 7
      %v1749 = vsub.s32 0, %v1748
      %v1750 = vrot.slane %v653, %v1749
      %v1751 = vlaneseq
      %v1752 = vshrl.u32 %v1751, 7
      %v1753 = vsub.s32 0, %v1752
      %v1754 = vrot.slane %v654, %v1753
      %1755 = vset.pattern.permute.xlu0 0
      %1756 = vperm.xlu0 %1755, %v1678
      %v1757 = vpop.permute.xlu0 %1756
      %1759 = vset.pattern.permute.xlu0 0
      %1760 = vperm.xlu0 %1759, %v1682
      %v1761 = vpop.permute.xlu0 %1760
      %1763 = vset.pattern.permute.xlu0 0
      %1764 = vperm.xlu0 %1763, %v1686
      %v1765 = vpop.permute.xlu0 %1764
      %1767 = vset.pattern.permute.xlu0 0
      %1768 = vperm.xlu0 %1767, %v1690
      %v1769 = vpop.permute.xlu0 %1768
      %1771 = vset.pattern.permute.xlu0 0
      %1772 = vperm.xlu0 %1771, %v1694
      %v1773 = vpop.permute.xlu0 %1772
      %1775 = vset.pattern.permute.xlu0 0
      %1776 = vperm.xlu0 %1775, %v1698
      %v1777 = vpop.permute.xlu0 %1776
      %1779 = vset.pattern.permute.xlu0 0
      %1780 = vperm.xlu0 %1779, %v1702
      %v1781 = vpop.permute.xlu0 %1780
      %1783 = vset.pattern.permute.xlu0 0
      %1784 = vperm.xlu0 %1783, %v1706
      %v1785 = vpop.permute.xlu0 %1784
      %1787 = vset.pattern.permute.xlu0 0
      %1788 = vperm.xlu0 %1787, %v1710
      %v1789 = vpop.permute.xlu0 %1788
      %1791 = vset.pattern.permute.xlu0 0
      %1792 = vperm.xlu0 %1791, %v1714
      %v1793 = vpop.permute.xlu0 %1792
      %1795 = vset.pattern.permute.xlu0 0
      %1796 = vperm.xlu0 %1795, %v1718
      %v1797 = vpop.permute.xlu0 %1796
      %1799 = vset.pattern.permute.xlu0 0
      %1800 = vperm.xlu0 %1799, %v1722
      %v1801 = vpop.permute.xlu0 %1800
      %1803 = vset.pattern.permute.xlu0 0
      %1804 = vperm.xlu0 %1803, %v1726
      %v1805 = vpop.permute.xlu0 %1804
      %1807 = vset.pattern.permute.xlu0 0
      %1808 = vperm.xlu0 %1807, %v1730
      %v1809 = vpop.permute.xlu0 %1808
      %1811 = vset.pattern.permute.xlu0 0
      %1812 = vperm.xlu0 %1811, %v1734
      %v1813 = vpop.permute.xlu0 %1812
      %1815 = vset.pattern.permute.xlu0 0
      %1816 = vperm.xlu0 %1815, %v1738
      %v1817 = vpop.permute.xlu0 %1816
      %1819 = vset.pattern.permute.xlu0 0
      %1820 = vperm.xlu0 %1819, %v1742
      %v1821 = vpop.permute.xlu0 %1820
      %1823 = vset.pattern.permute.xlu0 0
      %1824 = vperm.xlu0 %1823, %v1746
      %v1825 = vpop.permute.xlu0 %1824
      %1827 = vset.pattern.permute.xlu0 0
      %1828 = vperm.xlu0 %1827, %v1750
      %v1829 = vpop.permute.xlu0 %1828
      %1831 = vset.pattern.permute.xlu0 0
      %1832 = vperm.xlu0 %1831, %v1754
      %v1833 = vpop.permute.xlu0 %1832
      %v1835 = vadd.f32 %v1615, %v1757
      %v1836 = vadd.f32 %v1616, %v1757
      %v1837 = vadd.f32 %v1617, %v1761
      %v1838 = vadd.f32 %v1618, %v1761
      %v1839 = vadd.f32 %v1619, %v1765
      %v1840 = vadd.f32 %v1620, %v1765
      %v1841 = vadd.f32 %v1621, %v1769
      %v1842 = vadd.f32 %v1622, %v1769
      %v1843 = vadd.f32 %v1623, %v1773
      %v1844 = vadd.f32 %v1624, %v1773
      %v1845 = vadd.f32 %v1625, %v1777
      %v1846 = vadd.f32 %v1626, %v1777
      %v1847 = vadd.f32 %v1627, %v1781
      %v1848 = vadd.f32 %v1628, %v1781
      %v1849 = vadd.f32 %v1629, %v1785
      %v1850 = vadd.f32 %v1630, %v1785
      %v1851 = vadd.f32 %v1631, %v1789
      %v1852 = vadd.f32 %v1632, %v1789
      %v1853 = vadd.f32 %v1633, %v1793
      %v1854 = vadd.f32 %v1634, %v1793
      %v1855 = vadd.f32 %v1635, %v1797
      %v1856 = vadd.f32 %v1636, %v1797
      %v1857 = vadd.f32 %v1637, %v1801
      %v1858 = vadd.f32 %v1638, %v1801
      %v1859 = vadd.f32 %v1639, %v1805
      %v1860 = vadd.f32 %v1640, %v1805
      %v1861 = vadd.f32 %v1641, %v1809
      %v1862 = vadd.f32 %v1642, %v1809
      %v1863 = vadd.f32 %v1643, %v1813
      %v1864 = vadd.f32 %v1644, %v1813
      %v1865 = vadd.f32 %v1645, %v1817
      %v1866 = vadd.f32 %v1646, %v1817
      %v1867 = vadd.f32 %v1647, %v1821
      %v1868 = vadd.f32 %v1648, %v1821
      %v1869 = vadd.f32 %v1649, %v1825
      %v1870 = vadd.f32 %v1650, %v1825
      %v1871 = vadd.f32 %v1651, %v1829
      %v1872 = vadd.f32 %v1652, %v1829
      %v1873 = vadd.f32 %v1653, %v1833
      %v1874 = vadd.f32 %v1654, %v1833
      %1875 = vst.msk [vmem:[%s426] sm:$0xff] %vm484, %v1835
      %1876 = vst.msk [vmem:[%s426 + $0x8] sm:$0xff] %vm484, %v1836
      %1877 = vst.msk [vmem:[%s426 + $0x10] sm:$0xff] %vm484, %v1837
      %1878 = vst.msk [vmem:[%s426 + $0x18] sm:$0xff] %vm484, %v1838
      %1879 = vst.msk [vmem:[%s426 + $0x20] sm:$0xff] %vm484, %v1839
      %1880 = vst.msk [vmem:[%s426 + $0x28] sm:$0xff] %vm484, %v1840
      %1881 = vst.msk [vmem:[%s426 + $0x30] sm:$0xff] %vm484, %v1841
      %1882 = vst.msk [vmem:[%s426 + $0x38] sm:$0xff] %vm484, %v1842
      %1883 = vst.msk [vmem:[%s426 + $0x40] sm:$0xff] %vm484, %v1843
      %1884 = vst.msk [vmem:[%s426 + $0x48] sm:$0xff] %vm484, %v1844
      %1885 = vst.msk [vmem:[%s426 + $0x50] sm:$0xff] %vm484, %v1845
      %1886 = vst.msk [vmem:[%s426 + $0x58] sm:$0xff] %vm484, %v1846
      %1887 = vst.msk [vmem:[%s426 + $0x60] sm:$0xff] %vm484, %v1847
      %1888 = vst.msk [vmem:[%s426 + $0x68] sm:$0xff] %vm484, %v1848
      %1889 = vst.msk [vmem:[%s426 + $0x70] sm:$0xff] %vm484, %v1849
      %1890 = vst.msk [vmem:[%s426 + $0x78] sm:$0xff] %vm484, %v1850
      %1891 = vst.msk [vmem:[%s426 + $0x80] sm:$0xff] %vm484, %v1851
      %1892 = vst.msk [vmem:[%s426 + $0x88] sm:$0xff] %vm484, %v1852
      %1893 = vst.msk [vmem:[%s426 + $0x90] sm:$0xff] %vm484, %v1853
      %1894 = vst.msk [vmem:[%s426 + $0x98] sm:$0xff] %vm484, %v1854
      %1895 = vst.msk [vmem:[%s426 + $0xa0] sm:$0xff] %vm484, %v1855
      %1896 = vst.msk [vmem:[%s426 + $0xa8] sm:$0xff] %vm484, %v1856
      %1897 = vst.msk [vmem:[%s426 + $0xb0] sm:$0xff] %vm484, %v1857
      %1898 = vst.msk [vmem:[%s426 + $0xb8] sm:$0xff] %vm484, %v1858
      %1899 = vst.msk [vmem:[%s426 + $0xc0] sm:$0xff] %vm484, %v1859
      %1900 = vst.msk [vmem:[%s426 + $0xc8] sm:$0xff] %vm484, %v1860
      %1901 = vst.msk [vmem:[%s426 + $0xd0] sm:$0xff] %vm484, %v1861
      %1902 = vst.msk [vmem:[%s426 + $0xd8] sm:$0xff] %vm484, %v1862
      %1903 = vst.msk [vmem:[%s426 + $0xe0] sm:$0xff] %vm484, %v1863
      %1904 = vst.msk [vmem:[%s426 + $0xe8] sm:$0xff] %vm484, %v1864
      %1905 = vst.msk [vmem:[%s426 + $0xf0] sm:$0xff] %vm484, %v1865
      %1906 = vst.msk [vmem:[%s426 + $0xf8] sm:$0xff] %vm484, %v1866
      %1907 = vst.msk [vmem:[%s426 + $0x100] sm:$0xff] %vm484, %v1867
      %1908 = vst.msk [vmem:[%s426 + $0x108] sm:$0xff] %vm484, %v1868
      %1909 = vst.msk [vmem:[%s426 + $0x110] sm:$0xff] %vm484, %v1869
      %1910 = vst.msk [vmem:[%s426 + $0x118] sm:$0xff] %vm484, %v1870
      %1911 = vst.msk [vmem:[%s426 + $0x120] sm:$0xff] %vm484, %v1871
      %1912 = vst.msk [vmem:[%s426 + $0x128] sm:$0xff] %vm484, %v1872
      %1913 = vst.msk [vmem:[%s426 + $0x130] sm:$0xff] %vm484, %v1873
      %1914 = vst.msk [vmem:[%s426 + $0x138] sm:$0xff] %vm484, %v1874
      %s1915 = smul.u32 2, %s25
      %p1916 = scmp.lt.s32.totalorder %s24, 1
      %s1917 = scalar_select %p1916, %s24, 1
      %p1918 = scmp.lt.s32.totalorder %s1915, 1
      %s1919 = scalar_select %p1918, %s1915, 1
      %s1920 = smul.addr %s1917, 40
      %s1921 = sadd.s32 %s1919, %s1920
      %s1922 = smul.addr %s1921, 8
      %s1923 = scalar_lea.vmem %s7, %s1922
      // Predicated region
      $region49: #{casenet_forward.13} parent=47 // pred_check
        %p1924 = pneg %p227
      $region50: #{casenet_forward.13} parent=47 // pred_check_branch
        %1926 = sbr.rel (%p1924) target = $region52
      $region51: #{casenet_forward.13} parent=47 // pred_region
        %s1927 = smul.u32 2, %s25
      $region52: #{casenet_forward.13} parent=47 // pred_fallthru
        _
    $region48: #{casenet_forward.13} parent=5 // pred_fallthru
      _
    %p1928 = scmp.le.s32.totalorder 2, %s15
    // Predicated region
    $region53: #{casenet_forward.13} parent=5 // pred_check
      %p1929 = pneg %p1928
    $region54: #{casenet_forward.13} parent=5 // pred_check_branch
      %1931 = sbr.rel (%p1929) target = $region56
    $region55: #{casenet_forward.13} parent=5 // pred_region
      %s1932 = ssub.s32 %s15, 2
      // Predicated region
      $region57: #{casenet_forward.13} parent=55 // pred_check
        %p1933 = pneg %p233
      $region58: #{casenet_forward.13} parent=55 // pred_check_branch
        %1935 = sbr.rel (%p1933) target = $region60
      $region59: #{casenet_forward.13} parent=55 // pred_region
        %s1936 = smul.u32 2, %s27
        %p1937 = scmp.lt.s32.totalorder %s26, 1
        %s1938 = scalar_select %p1937, %s26, 1
        %p1939 = scmp.lt.s32.totalorder %s1936, 1
        %s1940 = scalar_select %p1939, %s1936, 1
        %s1941 = smul.addr %s1938, 40
        %s1942 = sadd.s32 %s1940, %s1941
        %s1943 = smul.addr %s1942, 8
        %s1944 = scalar_lea.vmem %s7, %s1943
      $region60: #{casenet_forward.13} parent=55 // pred_fallthru
        _
    $region56: #{casenet_forward.13} parent=5 // pred_fallthru
      _
  $region6: #{casenet_forward.13} parent=0 // loop_footer
    %s19 = sadd.s32 1, %s15
  $region7: #{casenet_forward.13} parent=0 // loop_footer_branch
    %14 = sbr.rel target = $region3
  $region8: #{casenet_forward.13} parent=0 // loop_exit
    _

</llo_original>
